<compile_context>
chip_gen: v7x
topology: tpu7x:2x2x1
jax: 0.10.0
libtpu: 0.0.40
codegen_flags: <defaults>
</compile_context>

<pallas_src>
import functools

import jax
import jax.numpy as jnp
import numpy as np
from jax.experimental import pallas as pl
from jax.experimental.pallas import tpu as pltpu


def _conv_geometry(H, W):
    """Padded flat-layout geometry shared by the host weight builder and kernel."""
    HW = H * W
    pad = ((3 * W + 3 + 127) // 128) * 128      # lane-aligned halo, >= 3*W + 3
    l0 = HW + 2 * pad                           # stride between the avg and max slabs
    lw = l0 + HW                                # width of one shifted read / weight row
    return HW, pad, l0, lw


def _build_spatial_weight_rows(conv_w, H, W):
    """(49, LW) rows: per (dy, dx) the column-masked 7x7 weights for [avg | max]."""
    k = np.asarray(conv_w, np.float32).reshape(2, 7, 7)     # (in_ch=2, 7, 7)
    HW, pad, l0, lw = _conv_geometry(H, W)
    col = np.arange(HW) % W                                 # output column of each flat pos
    wv = np.zeros((49, lw), np.float32)
    for dy in range(7):
        for dx in range(7):
            idx = dy * 7 + dx
            valid = ((col + dx - 3 >= 0) & (col + dx - 3 < W)).astype(np.float32)
            wv[idx, 0:HW] = k[0, dy, dx] * valid            # avg-map contribution
            wv[idx, l0:l0 + HW] = k[1, dy, dx] * valid      # max-map contribution
    return wv


def _lam_kernel(x_ref, w1_ref, b1_ref, w2_ref, b2_ref, wv_ref, bs_ref,
                out_ref, xg_ref, mpad_ref, *, H, W):
    Bt, C, HW = x_ref.shape
    _, PAD, L0, LW = _conv_geometry(H, W)

    w1 = w1_ref[...]                      # (C//8, C)
    b1 = b1_ref[...]                      # (C//8, 1)
    w2 = w2_ref[...]                      # (C, C//8)
    b2 = b2_ref[...]                      # (C, 1)
    lane2 = jax.lax.broadcasted_iota(jnp.int32, (1, 2), 1)      # [[0, 1]]

    # Zero only the halo regions of the padded spatial scratch (lane-aligned,
    # cheap).  The map interiors are fully overwritten below every grid step, so
    # this stays correct even when the parallel batch axis is split across cores.
    mpad_ref[:, 0:PAD] = jnp.zeros((Bt, PAD), jnp.float32)
    mpad_ref[:, PAD + HW:L0 + PAD] = jnp.zeros((Bt, 2 * PAD), jnp.float32)
    mpad_ref[:, L0 + PAD + HW:2 * L0] = jnp.zeros((Bt, PAD), jnp.float32)

    for b in range(Bt):
        xb = x_ref[b].astype(jnp.float32)                       # (C, HW) lane-dense

        # ---- channel attention: global avg/max pool + fused 1x1-conv MLP ----
        avg_c = jnp.mean(xb, axis=1, keepdims=True)             # (C, 1)
        max_c = jnp.max(xb, axis=1, keepdims=True)              # (C, 1)
        pooled = jnp.where(lane2 == 0, avg_c, max_c)            # (C, 2): [avg | max]
        hid = jnp.maximum(
            jnp.dot(w1, pooled, preferred_element_type=jnp.float32) + b1, 0.0)
        mlp = jnp.dot(w2, hid, preferred_element_type=jnp.float32) + b2   # (C, 2)
        gate = jax.nn.sigmoid(jnp.sum(mlp, axis=1, keepdims=True))        # (C, 1)

        xcb = xb * gate                                         # (C, HW)
        xg_ref[b] = xcb                                         # stage in VMEM scratch

        # ---- spatial mean/max maps, written into the padded flat scratch ----
        mpad_ref[b:b + 1, PAD:PAD + HW] = jnp.mean(xcb, axis=0, keepdims=True)
        mpad_ref[b:b + 1, L0 + PAD:L0 + PAD + HW] = jnp.max(xcb, axis=0, keepdims=True)

    # ---- 7x7 spatial conv in the flat layout: 49 shifted reads of the
    #      [avg | max] slab, weighted by precomputed column-masked rows ----
    acc0 = jnp.zeros((Bt, LW), jnp.float32)
    acc1 = jnp.zeros((Bt, LW), jnp.float32)
    for dy in range(7):
        for dx in range(7):
            idx = dy * 7 + dx
            a0 = PAD + (dy - 3) * W + (dx - 3)
            term = wv_ref[idx:idx + 1, :] * mpad_ref[:, a0:a0 + LW]
            if idx % 2 == 0:
                acc0 = acc0 + term
            else:
                acc1 = acc1 + term
    acc = acc0 + acc1
    conv = acc[:, 0:HW] + acc[:, L0:L0 + HW] + bs_ref[0]        # (Bt, HW)
    sp_att = jax.nn.sigmoid(conv)

    # Single vectorized gated store (sublane broadcast of sp_att over C).
    out_ref[...] = (xg_ref[...] * sp_att[:, None, :]).astype(out_ref.dtype)


def _pick_block_b(B, C, HW, vmem_budget_bytes=8 * 1024 * 1024):
    """Largest divisor of B whose block (in/out double-buffers + gated scratch) fits."""
    slab = 5 * C * HW * 4
    best = 1
    for cand in range(1, B + 1):
        if B % cand == 0 and cand * slab <= vmem_budget_bytes:
            best = cand
    return best


@functools.partial(jax.jit, static_argnames=("block_b",))
def _lam_call(x, w1, b1c, w2, b2c, wv, bs, *, block_b):
    B, C, H, W = x.shape
    HW, pad, l0, lw = _conv_geometry(H, W)
    C8 = w1.shape[0]
    x_flat = x.reshape(B, C, HW)

    kernel = functools.partial(_lam_kernel, H=H, W=W)
    grid_spec = pltpu.PrefetchScalarGridSpec(
        num_scalar_prefetch=0,
        grid=(B // block_b,),
        in_specs=[
            pl.BlockSpec((block_b, C, HW), lambda i: (i, 0, 0)),   # x (lane-dense)
            pl.BlockSpec((C8, C), lambda i: (0, 0)),               # fc1 weight
            pl.BlockSpec((C8, 1), lambda i: (0, 0)),               # fc1 bias (col)
            pl.BlockSpec((C, C8), lambda i: (0, 0)),               # fc2 weight
            pl.BlockSpec((C, 1), lambda i: (0, 0)),                # fc2 bias (col)
            pl.BlockSpec((49, lw), lambda i: (0, 0)),              # conv weight rows
            pl.BlockSpec(memory_space=pltpu.MemorySpace.SMEM),     # conv bias scalar
        ],
        out_specs=pl.BlockSpec((block_b, C, HW), lambda i: (i, 0, 0)),
        scratch_shapes=[
            pltpu.VMEM((block_b, C, HW), jnp.float32),             # gated activations
            pltpu.VMEM((block_b, 2 * l0), jnp.float32),            # padded spatial maps
        ],
    )
    out_flat = pl.pallas_call(
        kernel,
        out_shape=jax.ShapeDtypeStruct((B, C, HW), x.dtype),
        grid_spec=grid_spec,
        compiler_params=pltpu.CompilerParams(
            dimension_semantics=("parallel",)),
    )(x_flat, w1, b1c, w2, b2c, wv, bs)
    return out_flat.reshape(B, C, H, W)


def lesion_attention(x, w1, b1, w2, b2, ws4, bs):
    """Forward pass of LesionAttentionModule.

    x: (B, C, H, W); w1: (C//8, C); b1: (C//8,); w2: (C, C//8); b2: (C,);
    ws4: (1, 2, 7, 7) spatial conv weight; bs: (1,) spatial conv bias.
    """
    B, C, H, W = x.shape
    wv = jnp.asarray(_build_spatial_weight_rows(np.asarray(ws4, np.float32), H, W))
    w1f = jnp.asarray(w1, jnp.float32)
    w2f = jnp.asarray(w2, jnp.float32)
    b1c = jnp.asarray(b1, jnp.float32).reshape(-1, 1)
    b2c = jnp.asarray(b2, jnp.float32).reshape(-1, 1)
    bsf = jnp.asarray(bs, jnp.float32).reshape(1)
    block_b = _pick_block_b(B, C, H * W)
    return _lam_call(x, w1f, b1c, w2f, b2c, wv, bsf, block_b=block_b)


def _reference(x, w1, b1, w2, b2, ws4, bs):
    """Pure-JAX reference matching the PyTorch forward."""
    avg = jnp.mean(x, axis=(2, 3))
    mx = jnp.max(x, axis=(2, 3))

    def mlp(p):
        h = jnp.maximum(
            jnp.dot(p, w1.T, precision=jax.lax.Precision.HIGHEST) + b1[None, :], 0.0)
        return jnp.dot(h, w2.T, precision=jax.lax.Precision.HIGHEST) + b2[None, :]

    att = jax.nn.sigmoid(mlp(avg) + mlp(mx))[:, :, None, None]
    xc = x * att
    a_sp = jnp.mean(xc, axis=1, keepdims=True)
    m_sp = jnp.max(xc, axis=1, keepdims=True)
    sp_in = jnp.concatenate([a_sp, m_sp], axis=1)
    conv = jax.lax.conv_general_dilated(
        sp_in, ws4, window_strides=(1, 1), padding=((3, 3), (3, 3)),
        dimension_numbers=("NCHW", "OIHW", "NCHW"),
        precision=jax.lax.Precision.HIGHEST) + bs[0]
    return xc * jax.nn.sigmoid(conv)


if __name__ == "__main__":
    # in_channels must be >= 8 (fc1 reduces channels by 8x), so use C = 16.
    B, C, H, W = 2, 16, 16, 16
    C8 = C // 8

    ks = jax.random.split(jax.random.PRNGKey(0), 7)
    x = jax.random.normal(ks[0], (B, C, H, W), jnp.float32)
    # fc1: Conv2d(C, C//8, 1) -> weight (C//8, C), bias (C//8,)
    w1 = jax.random.normal(ks[1], (C8, C), jnp.float32) * 0.2
    b1 = jax.random.normal(ks[2], (C8,), jnp.float32) * 0.1
    # fc2: Conv2d(C//8, C, 1) -> weight (C, C//8), bias (C,)
    w2 = jax.random.normal(ks[3], (C, C8), jnp.float32) * 0.2
    b2 = jax.random.normal(ks[4], (C,), jnp.float32) * 0.1
    # conv_spatial: Conv2d(2, 1, 7, padding=3) -> weight (1, 2, 7, 7), bias (1,)
    ws4 = jax.random.normal(ks[5], (1, 2, 7, 7), jnp.float32) * 0.1
    bs = jax.random.normal(ks[6], (1,), jnp.float32) * 0.1

    out = lesion_attention(x, w1, b1, w2, b2, ws4, bs)
    out = jax.block_until_ready(out)

    ref = _reference(x, w1, b1, w2, b2, ws4, bs)
    np.testing.assert_allclose(np.asarray(out), np.asarray(ref), rtol=1e-3, atol=1e-3)
    print("KERNEL_OK")
</pallas_src>

<mosaic_0001>
module attributes {stable_mosaic.version = 11 : i64} {
  func.func @_lam_kernel(%arg0: i32, %arg1: memref<2x16x256xf32, #tpu.memory_space<vmem>>, %arg2: memref<2x16xf32, #tpu.memory_space<vmem>>, %arg3: memref<2x1xf32, #tpu.memory_space<vmem>>, %arg4: memref<16x2xf32, #tpu.memory_space<vmem>>, %arg5: memref<16x1xf32, #tpu.memory_space<vmem>>, %arg6: memref<49x768xf32, #tpu.memory_space<vmem>>, %arg7: memref<1xf32, #tpu.memory_space<smem>>, %arg8: memref<2x16x256xf32, #tpu.memory_space<vmem>>, %arg9: memref<2x16x256xf32, #tpu.memory_space<vmem>>, %arg10: memref<2x1024xf32, #tpu.memory_space<vmem>>) attributes {dimension_semantics = [#tpu.dimension_semantics<parallel>], iteration_bounds = array<i64: 1>, scalar_prefetch = 0 : i64, scratch_operands = 2 : i64, tpu.core_type = #tpu.core_type<tc>, window_params = [{transform_indices = @transform_0, window_bounds = array<i64: 2, 16, 256>}, {pipeline_mode = #tpu.pipeline_mode<synchronous>, transform_indices = @transform_1, window_bounds = array<i64: 2, 16>}, {pipeline_mode = #tpu.pipeline_mode<synchronous>, transform_indices = @transform_2, window_bounds = array<i64: 2, 1>}, {pipeline_mode = #tpu.pipeline_mode<synchronous>, transform_indices = @transform_3, window_bounds = array<i64: 16, 2>}, {pipeline_mode = #tpu.pipeline_mode<synchronous>, transform_indices = @transform_4, window_bounds = array<i64: 16, 1>}, {pipeline_mode = #tpu.pipeline_mode<synchronous>, transform_indices = @transform_5, window_bounds = array<i64: 49, 768>}, {transform_indices = @transform_6, window_bounds = array<i64: 1>}, {transform_indices = @transform_7, window_bounds = array<i64: 2, 16, 256>}]} {
    %c0 = arith.constant 0 : index
    %c0_0 = arith.constant 0 : index
    %0 = vector.load %arg2[%c0, %c0_0] : memref<2x16xf32, #tpu.memory_space<vmem>>, vector<2x16xf32>
    %c0_1 = arith.constant 0 : index
    %c0_2 = arith.constant 0 : index
    %1 = vector.load %arg3[%c0_1, %c0_2] : memref<2x1xf32, #tpu.memory_space<vmem>>, vector<2x1xf32>
    %c0_3 = arith.constant 0 : index
    %c0_4 = arith.constant 0 : index
    %2 = vector.load %arg4[%c0_3, %c0_4] : memref<16x2xf32, #tpu.memory_space<vmem>>, vector<16x2xf32>
    %c0_5 = arith.constant 0 : index
    %c0_6 = arith.constant 0 : index
    %3 = vector.load %arg5[%c0_5, %c0_6] : memref<16x1xf32, #tpu.memory_space<vmem>>, vector<16x1xf32>
    %4 = tpu.iota {dimensions = array<i32: 1>} : vector<1x2xi32>
    %cst = arith.constant 0.000000e+00 : f32
    %5 = vector.broadcast %cst : f32 to vector<2x128xf32>
    %c0_7 = arith.constant 0 : index
    %c0_8 = arith.constant 0 : index
    %6 = vector.load %arg10[%c0_7, %c0_8] : memref<2x1024xf32, #tpu.memory_space<vmem>>, vector<2x128xf32>
    tpu.vector_store %arg10[%c0_7, %c0_8], %5 {strides = array<i32>} : memref<2x1024xf32, #tpu.memory_space<vmem>>, vector<2x128xf32>,
    %cst_9 = arith.constant 0.000000e+00 : f32
    %7 = vector.broadcast %cst_9 : f32 to vector<2x256xf32>
    %c0_10 = arith.constant 0 : index
    %c384 = arith.constant 384 : index
    %8 = vector.load %arg10[%c0_10, %c384] : memref<2x1024xf32, #tpu.memory_space<vmem>>, vector<2x256xf32>
    tpu.vector_store %arg10[%c0_10, %c384], %7 {strides = array<i32>} : memref<2x1024xf32, #tpu.memory_space<vmem>>, vector<2x256xf32>,
    %cst_11 = arith.constant 0.000000e+00 : f32
    %9 = vector.broadcast %cst_11 : f32 to vector<2x128xf32>
    %c0_12 = arith.constant 0 : index
    %c896 = arith.constant 896 : index
    %10 = vector.load %arg10[%c0_12, %c896] : memref<2x1024xf32, #tpu.memory_space<vmem>>, vector<2x128xf32>
    tpu.vector_store %arg10[%c0_12, %c896], %9 {strides = array<i32>} : memref<2x1024xf32, #tpu.memory_space<vmem>>, vector<2x128xf32>,
    %c0_13 = arith.constant 0 : index
    %c0_14 = arith.constant 0 : index
    %c0_15 = arith.constant 0 : index
    %11 = vector.load %arg1[%c0_13, %c0_14, %c0_15] : memref<2x16x256xf32, #tpu.memory_space<vmem>>, vector<1x16x256xf32>
    %12 = vector.shape_cast %11 : vector<1x16x256xf32> to vector<16x256xf32>
    %cst_16 = arith.constant dense<0.000000e+00> : vector<16xf32>
    %13 = vector.multi_reduction <add>, %12, %cst_16 [1] : vector<16x256xf32> to vector<16xf32>
    %14 = vector.shape_cast %13 : vector<16xf32> to vector<16x1xf32>
    %cst_17 = arith.constant 2.560000e+02 : f32
    %15 = vector.broadcast %cst_17 : f32 to vector<16x1xf32>
    %16 = arith.divf %14, %15 : vector<16x1xf32>
    %cst_18 = arith.constant dense<0xFF800000> : vector<16xf32>
    %17 = vector.multi_reduction <maximumf>, %12, %cst_18 [1] : vector<16x256xf32> to vector<16xf32>
    %18 = vector.shape_cast %17 : vector<16xf32> to vector<16x1xf32>
    %c0_i32 = arith.constant 0 : i32
    %19 = vector.broadcast %c0_i32 : i32 to vector<1x2xi32>
    %20 = arith.cmpi eq, %4, %19 : vector<1x2xi32>
    %21 = vector.shape_cast %20 : vector<1x2xi1> to vector<1x2xi1>
    %22 = vector.broadcast %21 : vector<1x2xi1> to vector<16x2xi1>
    %23 = vector.shape_cast %16 : vector<16x1xf32> to vector<16x1xf32>
    %24 = vector.broadcast %23 : vector<16x1xf32> to vector<16x2xf32>
    %25 = vector.shape_cast %18 : vector<16x1xf32> to vector<16x1xf32>
    %26 = vector.broadcast %25 : vector<16x1xf32> to vector<16x2xf32>
    %27 = arith.select %22, %24, %26 : vector<16x2xi1>, vector<16x2xf32>
    %cst_19 = arith.constant dense<0.000000e+00> : vector<2x2xf32>
    %28 = tpu.matmul %0, %27, %cst_19 {dimension_numbers = #tpu.dot_dimension_numbers<[1], [0], [0], [1], [0, 0, 1, 1], [], []>} : vector<2x16xf32>, vector<16x2xf32>, vector<2x2xf32> -> vector<2x2xf32>
    %29 = vector.broadcast %1 : vector<2x1xf32> to vector<2x2xf32>
    %30 = arith.addf %28, %29 : vector<2x2xf32>
    %cst_20 = arith.constant 0.000000e+00 : f32
    %31 = vector.broadcast %cst_20 : f32 to vector<2x2xf32>
    %32 = arith.maximumf %30, %31 : vector<2x2xf32>
    %cst_21 = arith.constant dense<0.000000e+00> : vector<16x2xf32>
    %33 = tpu.matmul %2, %32, %cst_21 {dimension_numbers = #tpu.dot_dimension_numbers<[1], [0], [0], [1], [0, 0, 1, 1], [], []>} : vector<16x2xf32>, vector<2x2xf32>, vector<16x2xf32> -> vector<16x2xf32>
    %34 = vector.broadcast %3 : vector<16x1xf32> to vector<16x2xf32>
    %35 = arith.addf %33, %34 : vector<16x2xf32>
    %cst_22 = arith.constant dense<0.000000e+00> : vector<16xf32>
    %36 = vector.multi_reduction <add>, %35, %cst_22 [1] : vector<16x2xf32> to vector<16xf32>
    %37 = vector.shape_cast %36 : vector<16xf32> to vector<16x1xf32>
    %38 = arith.negf %37 : vector<16x1xf32>
    %39 = math.exp %38 : vector<16x1xf32>
    %cst_23 = arith.constant 1.000000e+00 : f32
    %40 = vector.broadcast %cst_23 : f32 to vector<16x1xf32>
    %41 = arith.addf %40, %39 : vector<16x1xf32>
    %42 = arith.divf %40, %41 : vector<16x1xf32>
    %43 = vector.broadcast %42 : vector<16x1xf32> to vector<16x256xf32>
    %44 = arith.mulf %12, %43 : vector<16x256xf32>
    %c0_24 = arith.constant 0 : index
    %c0_25 = arith.constant 0 : index
    %c0_26 = arith.constant 0 : index
    %45 = vector.load %arg9[%c0_24, %c0_25, %c0_26] : memref<2x16x256xf32, #tpu.memory_space<vmem>>, vector<1x16x256xf32>
    %46 = vector.shape_cast %45 : vector<1x16x256xf32> to vector<16x256xf32>
    %47 = vector.shape_cast %44 : vector<16x256xf32> to vector<1x16x256xf32>
    tpu.vector_store %arg9[%c0_24, %c0_25, %c0_26], %47 {strides = array<i32>} : memref<2x16x256xf32, #tpu.memory_space<vmem>>, vector<1x16x256xf32>,
    %cst_27 = arith.constant dense<0.000000e+00> : vector<256xf32>
    %48 = vector.multi_reduction <add>, %44, %cst_27 [0] : vector<16x256xf32> to vector<256xf32>
    %49 = vector.shape_cast %48 : vector<256xf32> to vector<1x256xf32>
    %cst_28 = arith.constant 1.600000e+01 : f32
    %50 = vector.broadcast %cst_28 : f32 to vector<1x256xf32>
    %51 = arith.divf %49, %50 : vector<1x256xf32>
    %c0_29 = arith.constant 0 : index
    %c128 = arith.constant 128 : index
    %52 = vector.load %arg10[%c0_29, %c128] : memref<2x1024xf32, #tpu.memory_space<vmem>>, vector<1x256xf32>
    tpu.vector_store %arg10[%c0_29, %c128], %51 {strides = array<i32>} : memref<2x1024xf32, #tpu.memory_space<vmem>>, vector<1x256xf32>,
    %cst_30 = arith.constant dense<0xFF800000> : vector<256xf32>
    %53 = vector.multi_reduction <maximumf>, %44, %cst_30 [0] : vector<16x256xf32> to vector<256xf32>
    %54 = vector.shape_cast %53 : vector<256xf32> to vector<1x256xf32>
    %c0_31 = arith.constant 0 : index
    %c640 = arith.constant 640 : index
    %55 = vector.load %arg10[%c0_31, %c640] : memref<2x1024xf32, #tpu.memory_space<vmem>>, vector<1x256xf32>
    tpu.vector_store %arg10[%c0_31, %c640], %54 {strides = array<i32>} : memref<2x1024xf32, #tpu.memory_space<vmem>>, vector<1x256xf32>,
    %c1 = arith.constant 1 : index
    %c0_32 = arith.constant 0 : index
    %c0_33 = arith.constant 0 : index
    %56 = vector.load %arg1[%c1, %c0_32, %c0_33] : memref<2x16x256xf32, #tpu.memory_space<vmem>>, vector<1x16x256xf32>
    %57 = vector.shape_cast %56 : vector<1x16x256xf32> to vector<16x256xf32>
    %cst_34 = arith.constant dense<0.000000e+00> : vector<16xf32>
    %58 = vector.multi_reduction <add>, %57, %cst_34 [1] : vector<16x256xf32> to vector<16xf32>
    %59 = vector.shape_cast %58 : vector<16xf32> to vector<16x1xf32>
    %cst_35 = arith.constant 2.560000e+02 : f32
    %60 = vector.broadcast %cst_35 : f32 to vector<16x1xf32>
    %61 = arith.divf %59, %60 : vector<16x1xf32>
    %cst_36 = arith.constant dense<0xFF800000> : vector<16xf32>
    %62 = vector.multi_reduction <maximumf>, %57, %cst_36 [1] : vector<16x256xf32> to vector<16xf32>
    %63 = vector.shape_cast %62 : vector<16xf32> to vector<16x1xf32>
    %c0_i32_37 = arith.constant 0 : i32
    %64 = vector.broadcast %c0_i32_37 : i32 to vector<1x2xi32>
    %65 = arith.cmpi eq, %4, %64 : vector<1x2xi32>
    %66 = vector.shape_cast %65 : vector<1x2xi1> to vector<1x2xi1>
    %67 = vector.broadcast %66 : vector<1x2xi1> to vector<16x2xi1>
    %68 = vector.shape_cast %61 : vector<16x1xf32> to vector<16x1xf32>
    %69 = vector.broadcast %68 : vector<16x1xf32> to vector<16x2xf32>
    %70 = vector.shape_cast %63 : vector<16x1xf32> to vector<16x1xf32>
    %71 = vector.broadcast %70 : vector<16x1xf32> to vector<16x2xf32>
    %72 = arith.select %67, %69, %71 : vector<16x2xi1>, vector<16x2xf32>
    %cst_38 = arith.constant dense<0.000000e+00> : vector<2x2xf32>
    %73 = tpu.matmul %0, %72, %cst_38 {dimension_numbers = #tpu.dot_dimension_numbers<[1], [0], [0], [1], [0, 0, 1, 1], [], []>} : vector<2x16xf32>, vector<16x2xf32>, vector<2x2xf32> -> vector<2x2xf32>
    %74 = vector.broadcast %1 : vector<2x1xf32> to vector<2x2xf32>
    %75 = arith.addf %73, %74 : vector<2x2xf32>
    %cst_39 = arith.constant 0.000000e+00 : f32
    %76 = vector.broadcast %cst_39 : f32 to vector<2x2xf32>
    %77 = arith.maximumf %75, %76 : vector<2x2xf32>
    %cst_40 = arith.constant dense<0.000000e+00> : vector<16x2xf32>
    %78 = tpu.matmul %2, %77, %cst_40 {dimension_numbers = #tpu.dot_dimension_numbers<[1], [0], [0], [1], [0, 0, 1, 1], [], []>} : vector<16x2xf32>, vector<2x2xf32>, vector<16x2xf32> -> vector<16x2xf32>
    %79 = vector.broadcast %3 : vector<16x1xf32> to vector<16x2xf32>
    %80 = arith.addf %78, %79 : vector<16x2xf32>
    %cst_41 = arith.constant dense<0.000000e+00> : vector<16xf32>
    %81 = vector.multi_reduction <add>, %80, %cst_41 [1] : vector<16x2xf32> to vector<16xf32>
    %82 = vector.shape_cast %81 : vector<16xf32> to vector<16x1xf32>
    %83 = arith.negf %82 : vector<16x1xf32>
    %84 = math.exp %83 : vector<16x1xf32>
    %cst_42 = arith.constant 1.000000e+00 : f32
    %85 = vector.broadcast %cst_42 : f32 to vector<16x1xf32>
    %86 = arith.addf %85, %84 : vector<16x1xf32>
    %87 = arith.divf %85, %86 : vector<16x1xf32>
    %88 = vector.broadcast %87 : vector<16x1xf32> to vector<16x256xf32>
    %89 = arith.mulf %57, %88 : vector<16x256xf32>
    %c1_43 = arith.constant 1 : index
    %c0_44 = arith.constant 0 : index
    %c0_45 = arith.constant 0 : index
    %90 = vector.load %arg9[%c1_43, %c0_44, %c0_45] : memref<2x16x256xf32, #tpu.memory_space<vmem>>, vector<1x16x256xf32>
    %91 = vector.shape_cast %90 : vector<1x16x256xf32> to vector<16x256xf32>
    %92 = vector.shape_cast %89 : vector<16x256xf32> to vector<1x16x256xf32>
    tpu.vector_store %arg9[%c1_43, %c0_44, %c0_45], %92 {strides = array<i32>} : memref<2x16x256xf32, #tpu.memory_space<vmem>>, vector<1x16x256xf32>,
    %cst_46 = arith.constant dense<0.000000e+00> : vector<256xf32>
    %93 = vector.multi_reduction <add>, %89, %cst_46 [0] : vector<16x256xf32> to vector<256xf32>
    %94 = vector.shape_cast %93 : vector<256xf32> to vector<1x256xf32>
    %cst_47 = arith.constant 1.600000e+01 : f32
    %95 = vector.broadcast %cst_47 : f32 to vector<1x256xf32>
    %96 = arith.divf %94, %95 : vector<1x256xf32>
    %c1_48 = arith.constant 1 : index
    %c128_49 = arith.constant 128 : index
    %97 = vector.load %arg10[%c1_48, %c128_49] : memref<2x1024xf32, #tpu.memory_space<vmem>>, vector<1x256xf32>
    tpu.vector_store %arg10[%c1_48, %c128_49], %96 {strides = array<i32>} : memref<2x1024xf32, #tpu.memory_space<vmem>>, vector<1x256xf32>,
    %cst_50 = arith.constant dense<0xFF800000> : vector<256xf32>
    %98 = vector.multi_reduction <maximumf>, %89, %cst_50 [0] : vector<16x256xf32> to vector<256xf32>
    %99 = vector.shape_cast %98 : vector<256xf32> to vector<1x256xf32>
    %c1_51 = arith.constant 1 : index
    %c640_52 = arith.constant 640 : index
    %100 = vector.load %arg10[%c1_51, %c640_52] : memref<2x1024xf32, #tpu.memory_space<vmem>>, vector<1x256xf32>
    tpu.vector_store %arg10[%c1_51, %c640_52], %99 {strides = array<i32>} : memref<2x1024xf32, #tpu.memory_space<vmem>>, vector<1x256xf32>,
    %cst_53 = arith.constant 0.000000e+00 : f32
    %101 = vector.broadcast %cst_53 : f32 to vector<2x768xf32>
    %cst_54 = arith.constant 0.000000e+00 : f32
    %102 = vector.broadcast %cst_54 : f32 to vector<2x768xf32>
    %c0_55 = arith.constant 0 : index
    %c0_56 = arith.constant 0 : index
    %103 = vector.load %arg6[%c0_55, %c0_56] : memref<49x768xf32, #tpu.memory_space<vmem>>, vector<1x768xf32>
    %c0_57 = arith.constant 0 : index
    %c77 = arith.constant 77 : index
    %104 = vector.load %arg10[%c0_57, %c77] : memref<2x1024xf32, #tpu.memory_space<vmem>>, vector<2x768xf32>
    %105 = vector.broadcast %103 : vector<1x768xf32> to vector<2x768xf32>
    %106 = arith.mulf %105, %104 : vector<2x768xf32>
    %107 = arith.addf %101, %106 : vector<2x768xf32>
    %c1_58 = arith.constant 1 : index
    %c0_59 = arith.constant 0 : index
    %108 = vector.load %arg6[%c1_58, %c0_59] : memref<49x768xf32, #tpu.memory_space<vmem>>, vector<1x768xf32>
    %c0_60 = arith.constant 0 : index
    %c78 = arith.constant 78 : index
    %109 = vector.load %arg10[%c0_60, %c78] : memref<2x1024xf32, #tpu.memory_space<vmem>>, vector<2x768xf32>
    %110 = vector.broadcast %108 : vector<1x768xf32> to vector<2x768xf32>
    %111 = arith.mulf %110, %109 : vector<2x768xf32>
    %112 = arith.addf %102, %111 : vector<2x768xf32>
    %c2 = arith.constant 2 : index
    %c0_61 = arith.constant 0 : index
    %113 = vector.load %arg6[%c2, %c0_61] : memref<49x768xf32, #tpu.memory_space<vmem>>, vector<1x768xf32>
    %c0_62 = arith.constant 0 : index
    %c79 = arith.constant 79 : index
    %114 = vector.load %arg10[%c0_62, %c79] : memref<2x1024xf32, #tpu.memory_space<vmem>>, vector<2x768xf32>
    %115 = vector.broadcast %113 : vector<1x768xf32> to vector<2x768xf32>
    %116 = arith.mulf %115, %114 : vector<2x768xf32>
    %117 = arith.addf %107, %116 : vector<2x768xf32>
    %c3 = arith.constant 3 : index
    %c0_63 = arith.constant 0 : index
    %118 = vector.load %arg6[%c3, %c0_63] : memref<49x768xf32, #tpu.memory_space<vmem>>, vector<1x768xf32>
    %c0_64 = arith.constant 0 : index
    %c80 = arith.constant 80 : index
    %119 = vector.load %arg10[%c0_64, %c80] : memref<2x1024xf32, #tpu.memory_space<vmem>>, vector<2x768xf32>
    %120 = vector.broadcast %118 : vector<1x768xf32> to vector<2x768xf32>
    %121 = arith.mulf %120, %119 : vector<2x768xf32>
    %122 = arith.addf %112, %121 : vector<2x768xf32>
    %c4 = arith.constant 4 : index
    %c0_65 = arith.constant 0 : index
    %123 = vector.load %arg6[%c4, %c0_65] : memref<49x768xf32, #tpu.memory_space<vmem>>, vector<1x768xf32>
    %c0_66 = arith.constant 0 : index
    %c81 = arith.constant 81 : index
    %124 = vector.load %arg10[%c0_66, %c81] : memref<2x1024xf32, #tpu.memory_space<vmem>>, vector<2x768xf32>
    %125 = vector.broadcast %123 : vector<1x768xf32> to vector<2x768xf32>
    %126 = arith.mulf %125, %124 : vector<2x768xf32>
    %127 = arith.addf %117, %126 : vector<2x768xf32>
    %c5 = arith.constant 5 : index
    %c0_67 = arith.constant 0 : index
    %128 = vector.load %arg6[%c5, %c0_67] : memref<49x768xf32, #tpu.memory_space<vmem>>, vector<1x768xf32>
    %c0_68 = arith.constant 0 : index
    %c82 = arith.constant 82 : index
    %129 = vector.load %arg10[%c0_68, %c82] : memref<2x1024xf32, #tpu.memory_space<vmem>>, vector<2x768xf32>
    %130 = vector.broadcast %128 : vector<1x768xf32> to vector<2x768xf32>
    %131 = arith.mulf %130, %129 : vector<2x768xf32>
    %132 = arith.addf %122, %131 : vector<2x768xf32>
    %c6 = arith.constant 6 : index
    %c0_69 = arith.constant 0 : index
    %133 = vector.load %arg6[%c6, %c0_69] : memref<49x768xf32, #tpu.memory_space<vmem>>, vector<1x768xf32>
    %c0_70 = arith.constant 0 : index
    %c83 = arith.constant 83 : index
    %134 = vector.load %arg10[%c0_70, %c83] : memref<2x1024xf32, #tpu.memory_space<vmem>>, vector<2x768xf32>
    %135 = vector.broadcast %133 : vector<1x768xf32> to vector<2x768xf32>
    %136 = arith.mulf %135, %134 : vector<2x768xf32>
    %137 = arith.addf %127, %136 : vector<2x768xf32>
    %c7 = arith.constant 7 : index
    %c0_71 = arith.constant 0 : index
    %138 = vector.load %arg6[%c7, %c0_71] : memref<49x768xf32, #tpu.memory_space<vmem>>, vector<1x768xf32>
    %c0_72 = arith.constant 0 : index
    %c93 = arith.constant 93 : index
    %139 = vector.load %arg10[%c0_72, %c93] : memref<2x1024xf32, #tpu.memory_space<vmem>>, vector<2x768xf32>
    %140 = vector.broadcast %138 : vector<1x768xf32> to vector<2x768xf32>
    %141 = arith.mulf %140, %139 : vector<2x768xf32>
    %142 = arith.addf %132, %141 : vector<2x768xf32>
    %c8 = arith.constant 8 : index
    %c0_73 = arith.constant 0 : index
    %143 = vector.load %arg6[%c8, %c0_73] : memref<49x768xf32, #tpu.memory_space<vmem>>, vector<1x768xf32>
    %c0_74 = arith.constant 0 : index
    %c94 = arith.constant 94 : index
    %144 = vector.load %arg10[%c0_74, %c94] : memref<2x1024xf32, #tpu.memory_space<vmem>>, vector<2x768xf32>
    %145 = vector.broadcast %143 : vector<1x768xf32> to vector<2x768xf32>
    %146 = arith.mulf %145, %144 : vector<2x768xf32>
    %147 = arith.addf %137, %146 : vector<2x768xf32>
    %c9 = arith.constant 9 : index
    %c0_75 = arith.constant 0 : index
    %148 = vector.load %arg6[%c9, %c0_75] : memref<49x768xf32, #tpu.memory_space<vmem>>, vector<1x768xf32>
    %c0_76 = arith.constant 0 : index
    %c95 = arith.constant 95 : index
    %149 = vector.load %arg10[%c0_76, %c95] : memref<2x1024xf32, #tpu.memory_space<vmem>>, vector<2x768xf32>
    %150 = vector.broadcast %148 : vector<1x768xf32> to vector<2x768xf32>
    %151 = arith.mulf %150, %149 : vector<2x768xf32>
    %152 = arith.addf %142, %151 : vector<2x768xf32>
    %c10 = arith.constant 10 : index
    %c0_77 = arith.constant 0 : index
    %153 = vector.load %arg6[%c10, %c0_77] : memref<49x768xf32, #tpu.memory_space<vmem>>, vector<1x768xf32>
    %c0_78 = arith.constant 0 : index
    %c96 = arith.constant 96 : index
    %154 = vector.load %arg10[%c0_78, %c96] : memref<2x1024xf32, #tpu.memory_space<vmem>>, vector<2x768xf32>
    %155 = vector.broadcast %153 : vector<1x768xf32> to vector<2x768xf32>
    %156 = arith.mulf %155, %154 : vector<2x768xf32>
    %157 = arith.addf %147, %156 : vector<2x768xf32>
    %c11 = arith.constant 11 : index
    %c0_79 = arith.constant 0 : index
    %158 = vector.load %arg6[%c11, %c0_79] : memref<49x768xf32, #tpu.memory_space<vmem>>, vector<1x768xf32>
    %c0_80 = arith.constant 0 : index
    %c97 = arith.constant 97 : index
    %159 = vector.load %arg10[%c0_80, %c97] : memref<2x1024xf32, #tpu.memory_space<vmem>>, vector<2x768xf32>
    %160 = vector.broadcast %158 : vector<1x768xf32> to vector<2x768xf32>
    %161 = arith.mulf %160, %159 : vector<2x768xf32>
    %162 = arith.addf %152, %161 : vector<2x768xf32>
    %c12 = arith.constant 12 : index
    %c0_81 = arith.constant 0 : index
    %163 = vector.load %arg6[%c12, %c0_81] : memref<49x768xf32, #tpu.memory_space<vmem>>, vector<1x768xf32>
    %c0_82 = arith.constant 0 : index
    %c98 = arith.constant 98 : index
    %164 = vector.load %arg10[%c0_82, %c98] : memref<2x1024xf32, #tpu.memory_space<vmem>>, vector<2x768xf32>
    %165 = vector.broadcast %163 : vector<1x768xf32> to vector<2x768xf32>
    %166 = arith.mulf %165, %164 : vector<2x768xf32>
    %167 = arith.addf %157, %166 : vector<2x768xf32>
    %c13 = arith.constant 13 : index
    %c0_83 = arith.constant 0 : index
    %168 = vector.load %arg6[%c13, %c0_83] : memref<49x768xf32, #tpu.memory_space<vmem>>, vector<1x768xf32>
    %c0_84 = arith.constant 0 : index
    %c99 = arith.constant 99 : index
    %169 = vector.load %arg10[%c0_84, %c99] : memref<2x1024xf32, #tpu.memory_space<vmem>>, vector<2x768xf32>
    %170 = vector.broadcast %168 : vector<1x768xf32> to vector<2x768xf32>
    %171 = arith.mulf %170, %169 : vector<2x768xf32>
    %172 = arith.addf %162, %171 : vector<2x768xf32>
    %c14 = arith.constant 14 : index
    %c0_85 = arith.constant 0 : index
    %173 = vector.load %arg6[%c14, %c0_85] : memref<49x768xf32, #tpu.memory_space<vmem>>, vector<1x768xf32>
    %c0_86 = arith.constant 0 : index
    %c109 = arith.constant 109 : index
    %174 = vector.load %arg10[%c0_86, %c109] : memref<2x1024xf32, #tpu.memory_space<vmem>>, vector<2x768xf32>
    %175 = vector.broadcast %173 : vector<1x768xf32> to vector<2x768xf32>
    %176 = arith.mulf %175, %174 : vector<2x768xf32>
    %177 = arith.addf %167, %176 : vector<2x768xf32>
    %c15 = arith.constant 15 : index
    %c0_87 = arith.constant 0 : index
    %178 = vector.load %arg6[%c15, %c0_87] : memref<49x768xf32, #tpu.memory_space<vmem>>, vector<1x768xf32>
    %c0_88 = arith.constant 0 : index
    %c110 = arith.constant 110 : index
    %179 = vector.load %arg10[%c0_88, %c110] : memref<2x1024xf32, #tpu.memory_space<vmem>>, vector<2x768xf32>
    %180 = vector.broadcast %178 : vector<1x768xf32> to vector<2x768xf32>
    %181 = arith.mulf %180, %179 : vector<2x768xf32>
    %182 = arith.addf %172, %181 : vector<2x768xf32>
    %c16 = arith.constant 16 : index
    %c0_89 = arith.constant 0 : index
    %183 = vector.load %arg6[%c16, %c0_89] : memref<49x768xf32, #tpu.memory_space<vmem>>, vector<1x768xf32>
    %c0_90 = arith.constant 0 : index
    %c111 = arith.constant 111 : index
    %184 = vector.load %arg10[%c0_90, %c111] : memref<2x1024xf32, #tpu.memory_space<vmem>>, vector<2x768xf32>
    %185 = vector.broadcast %183 : vector<1x768xf32> to vector<2x768xf32>
    %186 = arith.mulf %185, %184 : vector<2x768xf32>
    %187 = arith.addf %177, %186 : vector<2x768xf32>
    %c17 = arith.constant 17 : index
    %c0_91 = arith.constant 0 : index
    %188 = vector.load %arg6[%c17, %c0_91] : memref<49x768xf32, #tpu.memory_space<vmem>>, vector<1x768xf32>
    %c0_92 = arith.constant 0 : index
    %c112 = arith.constant 112 : index
    %189 = vector.load %arg10[%c0_92, %c112] : memref<2x1024xf32, #tpu.memory_space<vmem>>, vector<2x768xf32>
    %190 = vector.broadcast %188 : vector<1x768xf32> to vector<2x768xf32>
    %191 = arith.mulf %190, %189 : vector<2x768xf32>
    %192 = arith.addf %182, %191 : vector<2x768xf32>
    %c18 = arith.constant 18 : index
    %c0_93 = arith.constant 0 : index
    %193 = vector.load %arg6[%c18, %c0_93] : memref<49x768xf32, #tpu.memory_space<vmem>>, vector<1x768xf32>
    %c0_94 = arith.constant 0 : index
    %c113 = arith.constant 113 : index
    %194 = vector.load %arg10[%c0_94, %c113] : memref<2x1024xf32, #tpu.memory_space<vmem>>, vector<2x768xf32>
    %195 = vector.broadcast %193 : vector<1x768xf32> to vector<2x768xf32>
    %196 = arith.mulf %195, %194 : vector<2x768xf32>
    %197 = arith.addf %187, %196 : vector<2x768xf32>
    %c19 = arith.constant 19 : index
    %c0_95 = arith.constant 0 : index
    %198 = vector.load %arg6[%c19, %c0_95] : memref<49x768xf32, #tpu.memory_space<vmem>>, vector<1x768xf32>
    %c0_96 = arith.constant 0 : index
    %c114 = arith.constant 114 : index
    %199 = vector.load %arg10[%c0_96, %c114] : memref<2x1024xf32, #tpu.memory_space<vmem>>, vector<2x768xf32>
    %200 = vector.broadcast %198 : vector<1x768xf32> to vector<2x768xf32>
    %201 = arith.mulf %200, %199 : vector<2x768xf32>
    %202 = arith.addf %192, %201 : vector<2x768xf32>
    %c20 = arith.constant 20 : index
    %c0_97 = arith.constant 0 : index
    %203 = vector.load %arg6[%c20, %c0_97] : memref<49x768xf32, #tpu.memory_space<vmem>>, vector<1x768xf32>
    %c0_98 = arith.constant 0 : index
    %c115 = arith.constant 115 : index
    %204 = vector.load %arg10[%c0_98, %c115] : memref<2x1024xf32, #tpu.memory_space<vmem>>, vector<2x768xf32>
    %205 = vector.broadcast %203 : vector<1x768xf32> to vector<2x768xf32>
    %206 = arith.mulf %205, %204 : vector<2x768xf32>
    %207 = arith.addf %197, %206 : vector<2x768xf32>
    %c21 = arith.constant 21 : index
    %c0_99 = arith.constant 0 : index
    %208 = vector.load %arg6[%c21, %c0_99] : memref<49x768xf32, #tpu.memory_space<vmem>>, vector<1x768xf32>
    %c0_100 = arith.constant 0 : index
    %c125 = arith.constant 125 : index
    %209 = vector.load %arg10[%c0_100, %c125] : memref<2x1024xf32, #tpu.memory_space<vmem>>, vector<2x768xf32>
    %210 = vector.broadcast %208 : vector<1x768xf32> to vector<2x768xf32>
    %211 = arith.mulf %210, %209 : vector<2x768xf32>
    %212 = arith.addf %202, %211 : vector<2x768xf32>
    %c22 = arith.constant 22 : index
    %c0_101 = arith.constant 0 : index
    %213 = vector.load %arg6[%c22, %c0_101] : memref<49x768xf32, #tpu.memory_space<vmem>>, vector<1x768xf32>
    %c0_102 = arith.constant 0 : index
    %c126 = arith.constant 126 : index
    %214 = vector.load %arg10[%c0_102, %c126] : memref<2x1024xf32, #tpu.memory_space<vmem>>, vector<2x768xf32>
    %215 = vector.broadcast %213 : vector<1x768xf32> to vector<2x768xf32>
    %216 = arith.mulf %215, %214 : vector<2x768xf32>
    %217 = arith.addf %207, %216 : vector<2x768xf32>
    %c23 = arith.constant 23 : index
    %c0_103 = arith.constant 0 : index
    %218 = vector.load %arg6[%c23, %c0_103] : memref<49x768xf32, #tpu.memory_space<vmem>>, vector<1x768xf32>
    %c0_104 = arith.constant 0 : index
    %c127 = arith.constant 127 : index
    %219 = vector.load %arg10[%c0_104, %c127] : memref<2x1024xf32, #tpu.memory_space<vmem>>, vector<2x768xf32>
    %220 = vector.broadcast %218 : vector<1x768xf32> to vector<2x768xf32>
    %221 = arith.mulf %220, %219 : vector<2x768xf32>
    %222 = arith.addf %212, %221 : vector<2x768xf32>
    %c24 = arith.constant 24 : index
    %c0_105 = arith.constant 0 : index
    %223 = vector.load %arg6[%c24, %c0_105] : memref<49x768xf32, #tpu.memory_space<vmem>>, vector<1x768xf32>
    %c0_106 = arith.constant 0 : index
    %c128_107 = arith.constant 128 : index
    %224 = vector.load %arg10[%c0_106, %c128_107] : memref<2x1024xf32, #tpu.memory_space<vmem>>, vector<2x768xf32>
    %225 = vector.broadcast %223 : vector<1x768xf32> to vector<2x768xf32>
    %226 = arith.mulf %225, %224 : vector<2x768xf32>
    %227 = arith.addf %217, %226 : vector<2x768xf32>
    %c25 = arith.constant 25 : index
    %c0_108 = arith.constant 0 : index
    %228 = vector.load %arg6[%c25, %c0_108] : memref<49x768xf32, #tpu.memory_space<vmem>>, vector<1x768xf32>
    %c0_109 = arith.constant 0 : index
    %c129 = arith.constant 129 : index
    %229 = vector.load %arg10[%c0_109, %c129] : memref<2x1024xf32, #tpu.memory_space<vmem>>, vector<2x768xf32>
    %230 = vector.broadcast %228 : vector<1x768xf32> to vector<2x768xf32>
    %231 = arith.mulf %230, %229 : vector<2x768xf32>
    %232 = arith.addf %222, %231 : vector<2x768xf32>
    %c26 = arith.constant 26 : index
    %c0_110 = arith.constant 0 : index
    %233 = vector.load %arg6[%c26, %c0_110] : memref<49x768xf32, #tpu.memory_space<vmem>>, vector<1x768xf32>
    %c0_111 = arith.constant 0 : index
    %c130 = arith.constant 130 : index
    %234 = vector.load %arg10[%c0_111, %c130] : memref<2x1024xf32, #tpu.memory_space<vmem>>, vector<2x768xf32>
    %235 = vector.broadcast %233 : vector<1x768xf32> to vector<2x768xf32>
    %236 = arith.mulf %235, %234 : vector<2x768xf32>
    %237 = arith.addf %227, %236 : vector<2x768xf32>
    %c27 = arith.constant 27 : index
    %c0_112 = arith.constant 0 : index
    %238 = vector.load %arg6[%c27, %c0_112] : memref<49x768xf32, #tpu.memory_space<vmem>>, vector<1x768xf32>
    %c0_113 = arith.constant 0 : index
    %c131 = arith.constant 131 : index
    %239 = vector.load %arg10[%c0_113, %c131] : memref<2x1024xf32, #tpu.memory_space<vmem>>, vector<2x768xf32>
    %240 = vector.broadcast %238 : vector<1x768xf32> to vector<2x768xf32>
    %241 = arith.mulf %240, %239 : vector<2x768xf32>
    %242 = arith.addf %232, %241 : vector<2x768xf32>
    %c28 = arith.constant 28 : index
    %c0_114 = arith.constant 0 : index
    %243 = vector.load %arg6[%c28, %c0_114] : memref<49x768xf32, #tpu.memory_space<vmem>>, vector<1x768xf32>
    %c0_115 = arith.constant 0 : index
    %c141 = arith.constant 141 : index
    %244 = vector.load %arg10[%c0_115, %c141] : memref<2x1024xf32, #tpu.memory_space<vmem>>, vector<2x768xf32>
    %245 = vector.broadcast %243 : vector<1x768xf32> to vector<2x768xf32>
    %246 = arith.mulf %245, %244 : vector<2x768xf32>
    %247 = arith.addf %237, %246 : vector<2x768xf32>
    %c29 = arith.constant 29 : index
    %c0_116 = arith.constant 0 : index
    %248 = vector.load %arg6[%c29, %c0_116] : memref<49x768xf32, #tpu.memory_space<vmem>>, vector<1x768xf32>
    %c0_117 = arith.constant 0 : index
    %c142 = arith.constant 142 : index
    %249 = vector.load %arg10[%c0_117, %c142] : memref<2x1024xf32, #tpu.memory_space<vmem>>, vector<2x768xf32>
    %250 = vector.broadcast %248 : vector<1x768xf32> to vector<2x768xf32>
    %251 = arith.mulf %250, %249 : vector<2x768xf32>
    %252 = arith.addf %242, %251 : vector<2x768xf32>
    %c30 = arith.constant 30 : index
    %c0_118 = arith.constant 0 : index
    %253 = vector.load %arg6[%c30, %c0_118] : memref<49x768xf32, #tpu.memory_space<vmem>>, vector<1x768xf32>
    %c0_119 = arith.constant 0 : index
    %c143 = arith.constant 143 : index
    %254 = vector.load %arg10[%c0_119, %c143] : memref<2x1024xf32, #tpu.memory_space<vmem>>, vector<2x768xf32>
    %255 = vector.broadcast %253 : vector<1x768xf32> to vector<2x768xf32>
    %256 = arith.mulf %255, %254 : vector<2x768xf32>
    %257 = arith.addf %247, %256 : vector<2x768xf32>
    %c31 = arith.constant 31 : index
    %c0_120 = arith.constant 0 : index
    %258 = vector.load %arg6[%c31, %c0_120] : memref<49x768xf32, #tpu.memory_space<vmem>>, vector<1x768xf32>
    %c0_121 = arith.constant 0 : index
    %c144 = arith.constant 144 : index
    %259 = vector.load %arg10[%c0_121, %c144] : memref<2x1024xf32, #tpu.memory_space<vmem>>, vector<2x768xf32>
    %260 = vector.broadcast %258 : vector<1x768xf32> to vector<2x768xf32>
    %261 = arith.mulf %260, %259 : vector<2x768xf32>
    %262 = arith.addf %252, %261 : vector<2x768xf32>
    %c32 = arith.constant 32 : index
    %c0_122 = arith.constant 0 : index
    %263 = vector.load %arg6[%c32, %c0_122] : memref<49x768xf32, #tpu.memory_space<vmem>>, vector<1x768xf32>
    %c0_123 = arith.constant 0 : index
    %c145 = arith.constant 145 : index
    %264 = vector.load %arg10[%c0_123, %c145] : memref<2x1024xf32, #tpu.memory_space<vmem>>, vector<2x768xf32>
    %265 = vector.broadcast %263 : vector<1x768xf32> to vector<2x768xf32>
    %266 = arith.mulf %265, %264 : vector<2x768xf32>
    %267 = arith.addf %257, %266 : vector<2x768xf32>
    %c33 = arith.constant 33 : index
    %c0_124 = arith.constant 0 : index
    %268 = vector.load %arg6[%c33, %c0_124] : memref<49x768xf32, #tpu.memory_space<vmem>>, vector<1x768xf32>
    %c0_125 = arith.constant 0 : index
    %c146 = arith.constant 146 : index
    %269 = vector.load %arg10[%c0_125, %c146] : memref<2x1024xf32, #tpu.memory_space<vmem>>, vector<2x768xf32>
    %270 = vector.broadcast %268 : vector<1x768xf32> to vector<2x768xf32>
    %271 = arith.mulf %270, %269 : vector<2x768xf32>
    %272 = arith.addf %262, %271 : vector<2x768xf32>
    %c34 = arith.constant 34 : index
    %c0_126 = arith.constant 0 : index
    %273 = vector.load %arg6[%c34, %c0_126] : memref<49x768xf32, #tpu.memory_space<vmem>>, vector<1x768xf32>
    %c0_127 = arith.constant 0 : index
    %c147 = arith.constant 147 : index
    %274 = vector.load %arg10[%c0_127, %c147] : memref<2x1024xf32, #tpu.memory_space<vmem>>, vector<2x768xf32>
    %275 = vector.broadcast %273 : vector<1x768xf32> to vector<2x768xf32>
    %276 = arith.mulf %275, %274 : vector<2x768xf32>
    %277 = arith.addf %267, %276 : vector<2x768xf32>
    %c35 = arith.constant 35 : index
    %c0_128 = arith.constant 0 : index
    %278 = vector.load %arg6[%c35, %c0_128] : memref<49x768xf32, #tpu.memory_space<vmem>>, vector<1x768xf32>
    %c0_129 = arith.constant 0 : index
    %c157 = arith.constant 157 : index
    %279 = vector.load %arg10[%c0_129, %c157] : memref<2x1024xf32, #tpu.memory_space<vmem>>, vector<2x768xf32>
    %280 = vector.broadcast %278 : vector<1x768xf32> to vector<2x768xf32>
    %281 = arith.mulf %280, %279 : vector<2x768xf32>
    %282 = arith.addf %272, %281 : vector<2x768xf32>
    %c36 = arith.constant 36 : index
    %c0_130 = arith.constant 0 : index
    %283 = vector.load %arg6[%c36, %c0_130] : memref<49x768xf32, #tpu.memory_space<vmem>>, vector<1x768xf32>
    %c0_131 = arith.constant 0 : index
    %c158 = arith.constant 158 : index
    %284 = vector.load %arg10[%c0_131, %c158] : memref<2x1024xf32, #tpu.memory_space<vmem>>, vector<2x768xf32>
    %285 = vector.broadcast %283 : vector<1x768xf32> to vector<2x768xf32>
    %286 = arith.mulf %285, %284 : vector<2x768xf32>
    %287 = arith.addf %277, %286 : vector<2x768xf32>
    %c37 = arith.constant 37 : index
    %c0_132 = arith.constant 0 : index
    %288 = vector.load %arg6[%c37, %c0_132] : memref<49x768xf32, #tpu.memory_space<vmem>>, vector<1x768xf32>
    %c0_133 = arith.constant 0 : index
    %c159 = arith.constant 159 : index
    %289 = vector.load %arg10[%c0_133, %c159] : memref<2x1024xf32, #tpu.memory_space<vmem>>, vector<2x768xf32>
    %290 = vector.broadcast %288 : vector<1x768xf32> to vector<2x768xf32>
    %291 = arith.mulf %290, %289 : vector<2x768xf32>
    %292 = arith.addf %282, %291 : vector<2x768xf32>
    %c38 = arith.constant 38 : index
    %c0_134 = arith.constant 0 : index
    %293 = vector.load %arg6[%c38, %c0_134] : memref<49x768xf32, #tpu.memory_space<vmem>>, vector<1x768xf32>
    %c0_135 = arith.constant 0 : index
    %c160 = arith.constant 160 : index
    %294 = vector.load %arg10[%c0_135, %c160] : memref<2x1024xf32, #tpu.memory_space<vmem>>, vector<2x768xf32>
    %295 = vector.broadcast %293 : vector<1x768xf32> to vector<2x768xf32>
    %296 = arith.mulf %295, %294 : vector<2x768xf32>
    %297 = arith.addf %287, %296 : vector<2x768xf32>
    %c39 = arith.constant 39 : index
    %c0_136 = arith.constant 0 : index
    %298 = vector.load %arg6[%c39, %c0_136] : memref<49x768xf32, #tpu.memory_space<vmem>>, vector<1x768xf32>
    %c0_137 = arith.constant 0 : index
    %c161 = arith.constant 161 : index
    %299 = vector.load %arg10[%c0_137, %c161] : memref<2x1024xf32, #tpu.memory_space<vmem>>, vector<2x768xf32>
    %300 = vector.broadcast %298 : vector<1x768xf32> to vector<2x768xf32>
    %301 = arith.mulf %300, %299 : vector<2x768xf32>
    %302 = arith.addf %292, %301 : vector<2x768xf32>
    %c40 = arith.constant 40 : index
    %c0_138 = arith.constant 0 : index
    %303 = vector.load %arg6[%c40, %c0_138] : memref<49x768xf32, #tpu.memory_space<vmem>>, vector<1x768xf32>
    %c0_139 = arith.constant 0 : index
    %c162 = arith.constant 162 : index
    %304 = vector.load %arg10[%c0_139, %c162] : memref<2x1024xf32, #tpu.memory_space<vmem>>, vector<2x768xf32>
    %305 = vector.broadcast %303 : vector<1x768xf32> to vector<2x768xf32>
    %306 = arith.mulf %305, %304 : vector<2x768xf32>
    %307 = arith.addf %297, %306 : vector<2x768xf32>
    %c41 = arith.constant 41 : index
    %c0_140 = arith.constant 0 : index
    %308 = vector.load %arg6[%c41, %c0_140] : memref<49x768xf32, #tpu.memory_space<vmem>>, vector<1x768xf32>
    %c0_141 = arith.constant 0 : index
    %c163 = arith.constant 163 : index
    %309 = vector.load %arg10[%c0_141, %c163] : memref<2x1024xf32, #tpu.memory_space<vmem>>, vector<2x768xf32>
    %310 = vector.broadcast %308 : vector<1x768xf32> to vector<2x768xf32>
    %311 = arith.mulf %310, %309 : vector<2x768xf32>
    %312 = arith.addf %302, %311 : vector<2x768xf32>
    %c42 = arith.constant 42 : index
    %c0_142 = arith.constant 0 : index
    %313 = vector.load %arg6[%c42, %c0_142] : memref<49x768xf32, #tpu.memory_space<vmem>>, vector<1x768xf32>
    %c0_143 = arith.constant 0 : index
    %c173 = arith.constant 173 : index
    %314 = vector.load %arg10[%c0_143, %c173] : memref<2x1024xf32, #tpu.memory_space<vmem>>, vector<2x768xf32>
    %315 = vector.broadcast %313 : vector<1x768xf32> to vector<2x768xf32>
    %316 = arith.mulf %315, %314 : vector<2x768xf32>
    %317 = arith.addf %307, %316 : vector<2x768xf32>
    %c43 = arith.constant 43 : index
    %c0_144 = arith.constant 0 : index
    %318 = vector.load %arg6[%c43, %c0_144] : memref<49x768xf32, #tpu.memory_space<vmem>>, vector<1x768xf32>
    %c0_145 = arith.constant 0 : index
    %c174 = arith.constant 174 : index
    %319 = vector.load %arg10[%c0_145, %c174] : memref<2x1024xf32, #tpu.memory_space<vmem>>, vector<2x768xf32>
    %320 = vector.broadcast %318 : vector<1x768xf32> to vector<2x768xf32>
    %321 = arith.mulf %320, %319 : vector<2x768xf32>
    %322 = arith.addf %312, %321 : vector<2x768xf32>
    %c44 = arith.constant 44 : index
    %c0_146 = arith.constant 0 : index
    %323 = vector.load %arg6[%c44, %c0_146] : memref<49x768xf32, #tpu.memory_space<vmem>>, vector<1x768xf32>
    %c0_147 = arith.constant 0 : index
    %c175 = arith.constant 175 : index
    %324 = vector.load %arg10[%c0_147, %c175] : memref<2x1024xf32, #tpu.memory_space<vmem>>, vector<2x768xf32>
    %325 = vector.broadcast %323 : vector<1x768xf32> to vector<2x768xf32>
    %326 = arith.mulf %325, %324 : vector<2x768xf32>
    %327 = arith.addf %317, %326 : vector<2x768xf32>
    %c45 = arith.constant 45 : index
    %c0_148 = arith.constant 0 : index
    %328 = vector.load %arg6[%c45, %c0_148] : memref<49x768xf32, #tpu.memory_space<vmem>>, vector<1x768xf32>
    %c0_149 = arith.constant 0 : index
    %c176 = arith.constant 176 : index
    %329 = vector.load %arg10[%c0_149, %c176] : memref<2x1024xf32, #tpu.memory_space<vmem>>, vector<2x768xf32>
    %330 = vector.broadcast %328 : vector<1x768xf32> to vector<2x768xf32>
    %331 = arith.mulf %330, %329 : vector<2x768xf32>
    %332 = arith.addf %322, %331 : vector<2x768xf32>
    %c46 = arith.constant 46 : index
    %c0_150 = arith.constant 0 : index
    %333 = vector.load %arg6[%c46, %c0_150] : memref<49x768xf32, #tpu.memory_space<vmem>>, vector<1x768xf32>
    %c0_151 = arith.constant 0 : index
    %c177 = arith.constant 177 : index
    %334 = vector.load %arg10[%c0_151, %c177] : memref<2x1024xf32, #tpu.memory_space<vmem>>, vector<2x768xf32>
    %335 = vector.broadcast %333 : vector<1x768xf32> to vector<2x768xf32>
    %336 = arith.mulf %335, %334 : vector<2x768xf32>
    %337 = arith.addf %327, %336 : vector<2x768xf32>
    %c47 = arith.constant 47 : index
    %c0_152 = arith.constant 0 : index
    %338 = vector.load %arg6[%c47, %c0_152] : memref<49x768xf32, #tpu.memory_space<vmem>>, vector<1x768xf32>
    %c0_153 = arith.constant 0 : index
    %c178 = arith.constant 178 : index
    %339 = vector.load %arg10[%c0_153, %c178] : memref<2x1024xf32, #tpu.memory_space<vmem>>, vector<2x768xf32>
    %340 = vector.broadcast %338 : vector<1x768xf32> to vector<2x768xf32>
    %341 = arith.mulf %340, %339 : vector<2x768xf32>
    %342 = arith.addf %332, %341 : vector<2x768xf32>
    %c48 = arith.constant 48 : index
    %c0_154 = arith.constant 0 : index
    %343 = vector.load %arg6[%c48, %c0_154] : memref<49x768xf32, #tpu.memory_space<vmem>>, vector<1x768xf32>
    %c0_155 = arith.constant 0 : index
    %c179 = arith.constant 179 : index
    %344 = vector.load %arg10[%c0_155, %c179] : memref<2x1024xf32, #tpu.memory_space<vmem>>, vector<2x768xf32>
    %345 = vector.broadcast %343 : vector<1x768xf32> to vector<2x768xf32>
    %346 = arith.mulf %345, %344 : vector<2x768xf32>
    %347 = arith.addf %337, %346 : vector<2x768xf32>
    %348 = arith.addf %347, %342 : vector<2x768xf32>
    %349 = vector.extract_strided_slice %348 {offsets = [0, 0], sizes = [2, 256], strides = [1, 1]} : vector<2x768xf32> to vector<2x256xf32>
    %350 = vector.extract_strided_slice %348 {offsets = [0, 512], sizes = [2, 256], strides = [1, 1]} : vector<2x768xf32> to vector<2x256xf32>
    %351 = arith.addf %349, %350 : vector<2x256xf32>
    %c0_156 = arith.constant 0 : index
    %352 = memref.load %arg7[%c0_156] : memref<1xf32, #tpu.memory_space<smem>>
    %353 = vector.broadcast %352 : f32 to vector<2x256xf32>
    %354 = arith.addf %351, %353 : vector<2x256xf32>
    %355 = arith.negf %354 : vector<2x256xf32>
    %356 = math.exp %355 : vector<2x256xf32>
    %cst_157 = arith.constant 1.000000e+00 : f32
    %357 = vector.broadcast %cst_157 : f32 to vector<2x256xf32>
    %358 = arith.addf %357, %356 : vector<2x256xf32>
    %359 = arith.divf %357, %358 : vector<2x256xf32>
    %c0_158 = arith.constant 0 : index
    %c0_159 = arith.constant 0 : index
    %c0_160 = arith.constant 0 : index
    %360 = vector.load %arg9[%c0_158, %c0_159, %c0_160] : memref<2x16x256xf32, #tpu.memory_space<vmem>>, vector<2x16x256xf32>
    %361 = vector.shape_cast %359 : vector<2x256xf32> to vector<2x1x256xf32>
    %362 = vector.broadcast %361 : vector<2x1x256xf32> to vector<2x16x256xf32>
    %363 = arith.mulf %360, %362 : vector<2x16x256xf32>
    %c0_161 = arith.constant 0 : index
    %c0_162 = arith.constant 0 : index
    %c0_163 = arith.constant 0 : index
    %364 = vector.load %arg8[%c0_161, %c0_162, %c0_163] : memref<2x16x256xf32, #tpu.memory_space<vmem>>, vector<2x16x256xf32>
    tpu.vector_store %arg8[%c0_161, %c0_162, %c0_163], %363 {strides = array<i32>} : memref<2x16x256xf32, #tpu.memory_space<vmem>>, vector<2x16x256xf32>,
    return
  }
  func.func @transform_0(%arg0: i32) -> (i32, i32, i32) {
    %c0_i32 = arith.constant 0 : i32
    %c0_i32_0 = arith.constant 0 : i32
    %c0_i32_1 = arith.constant 0 : i32
    return %arg0, %c0_i32, %c0_i32_0 : i32, i32, i32
  }
  func.func @transform_1(%arg0: i32) -> (i32, i32) {
    %c0_i32 = arith.constant 0 : i32
    %c0_i32_0 = arith.constant 0 : i32
    %c0_i32_1 = arith.constant 0 : i32
    return %c0_i32, %c0_i32_0 : i32, i32
  }
  func.func @transform_2(%arg0: i32) -> (i32, i32) {
    %c0_i32 = arith.constant 0 : i32
    %c0_i32_0 = arith.constant 0 : i32
    %c0_i32_1 = arith.constant 0 : i32
    return %c0_i32, %c0_i32_0 : i32, i32
  }
  func.func @transform_3(%arg0: i32) -> (i32, i32) {
    %c0_i32 = arith.constant 0 : i32
    %c0_i32_0 = arith.constant 0 : i32
    %c0_i32_1 = arith.constant 0 : i32
    return %c0_i32, %c0_i32_0 : i32, i32
  }
  func.func @transform_4(%arg0: i32) -> (i32, i32) {
    %c0_i32 = arith.constant 0 : i32
    %c0_i32_0 = arith.constant 0 : i32
    %c0_i32_1 = arith.constant 0 : i32
    return %c0_i32, %c0_i32_0 : i32, i32
  }
  func.func @transform_5(%arg0: i32) -> (i32, i32) {
    %c0_i32 = arith.constant 0 : i32
    %c0_i32_0 = arith.constant 0 : i32
    %c0_i32_1 = arith.constant 0 : i32
    return %c0_i32, %c0_i32_0 : i32, i32
  }
  func.func @transform_6(%arg0: i32) -> i32 {
    %c0_i32 = arith.constant 0 : i32
    %c0_i32_0 = arith.constant 0 : i32
    return %c0_i32 : i32
  }
  func.func @transform_7(%arg0: i32) -> (i32, i32, i32) {
    %c0_i32 = arith.constant 0 : i32
    %c0_i32_0 = arith.constant 0 : i32
    %c0_i32_1 = arith.constant 0 : i32
    return %arg0, %c0_i32, %c0_i32_0 : i32, i32, i32
  }
}

</mosaic_0001>

<llo_original>
// kernel: _lam_call.1
$region0: #{_lam_call.1}
  #allocation0 [shape = 'u32[]', space=smem, size = 0x4, offset = 0x4, fixed_abs, tag = 'smem constant byte address 0x4 - core index']
  #allocation1 [shape = 'u32[144,128]{1,0:T(1,128)}', space=vmem, size = 0x12000, scoped, tag = 'internal scratch']
  #allocation2 [shape = 'f32[2,16,256]{2,1,0:T(8,128)}', space=vmem, size = 0x8000, scoped, tag = 'scratch operand']
  #allocation3 [shape = 'f32[2,1024]{1,0:T(2,128)}', space=vmem, size = 0x2000, scoped, tag = 'scratch operand']
  #allocation4 [shape = 'f32[1]{0:T(128)S(6)}', space=smem, size = 0x200, scoped, tag = 'scoped memory for _lam_call.1']
  %s0 = inlined_call_operand.vmem [shape: f32[2,16,256], index: 0, kind: input, shape index: {}]
  %s1 = inlined_call_operand.vmem [shape: f32[2,16], index: 1, kind: input, shape index: {}]
  %s2 = inlined_call_operand.vmem [shape: f32[2,1], index: 2, kind: input, shape index: {}]
  %s3 = inlined_call_operand.vmem [shape: f32[16,2], index: 3, kind: input, shape index: {}]
  %s4 = inlined_call_operand.vmem [shape: f32[16,1], index: 4, kind: input, shape index: {}]
  %s5 = inlined_call_operand.vmem [shape: f32[49,768], index: 5, kind: input, shape index: {}]
  %s6 = inlined_call_operand.<no memory space> [shape: f32[1], index: 6, kind: input, shape index: {}]
  %s7 = inlined_call_operand.vmem [shape: f32[2,16,256], index: 7, kind: output, shape index: {}]
  %s8 = sld [smem:[#allocation0]]
  $region38: #{_lam_call.1} parent=0
    _
  %s10 = ssub.s32 1, %s8
  %s11 = scalar_select 0, %s10, %s8
  %12 = sst [smem:[#allocation4]] %s6
  // Predicated region
  $region2: #{_lam_call.1} parent=0 // pred_check
    _
  $region3: #{_lam_call.1} parent=0 // pred_check_branch
    %14 = sbr.rel (0) target = $region5
  $region4: #{_lam_call.1} parent=0 // pred_region
    _
  $region5: #{_lam_call.1} parent=0 // pred_fallthru
    _
  // Predicated region
  $region6: #{_lam_call.1} parent=0 // pred_check
    _
  $region7: #{_lam_call.1} parent=0 // pred_check_branch
    %16 = sbr.rel (0) target = $region9
  $region8: #{_lam_call.1} parent=0 // pred_region
    _
  $region9: #{_lam_call.1} parent=0 // pred_fallthru
    _
  // Predicated region
  $region10: #{_lam_call.1} parent=0 // pred_check
    _
  $region11: #{_lam_call.1} parent=0 // pred_check_branch
    %18 = sbr.rel (0) target = $region13
  $region12: #{_lam_call.1} parent=0 // pred_region
    _
  $region13: #{_lam_call.1} parent=0 // pred_fallthru
    _
  // Predicated region
  $region14: #{_lam_call.1} parent=0 // pred_check
    _
  $region15: #{_lam_call.1} parent=0 // pred_check_branch
    %20 = sbr.rel (0) target = $region17
  $region16: #{_lam_call.1} parent=0 // pred_region
    _
  $region17: #{_lam_call.1} parent=0 // pred_fallthru
    _
  // Predicated region
  $region18: #{_lam_call.1} parent=0 // pred_check
    _
  $region19: #{_lam_call.1} parent=0 // pred_check_branch
    %22 = sbr.rel (0) target = $region21
  $region20: #{_lam_call.1} parent=0 // pred_region
    _
  $region21: #{_lam_call.1} parent=0 // pred_fallthru
    _
  // Predicated region
  $region22: #{_lam_call.1} parent=0 // pred_check
    _
  $region23: #{_lam_call.1} parent=0 // pred_check_branch
    %24 = sbr.rel (0) target = $region25
  $region24: #{_lam_call.1} parent=0 // pred_region
    _
  $region25: #{_lam_call.1} parent=0 // pred_fallthru
    _
  // Predicated region
  $region26: #{_lam_call.1} parent=0 // pred_check
    _
  $region27: #{_lam_call.1} parent=0 // pred_check_branch
    %26 = sbr.rel (0) target = $region29
  $region28: #{_lam_call.1} parent=0 // pred_region
    _
  $region29: #{_lam_call.1} parent=0 // pred_fallthru
    _
  %v27 = vld [vmem:[%s1] sm:$0x3]
  %v28 = vld [vmem:[%s2] sm:$0x3]
  %v29 = vld [vmem:[%s3] sm:$0xff]
  %v30 = vld [vmem:[%s3 + $0x8] sm:$0xff]
  %v31 = vld [vmem:[%s4] sm:$0xff]
  %v32 = vld [vmem:[%s4 + $0x8] sm:$0xff]
  %v33 = vlaneseq
  %v34 = vand.u32 %v33, 127
  %35 = vst [vmem:[#allocation3] sm:$0x3] 0.0
  %36 = vst [vmem:[#allocation3 + $0x6] sm:$0xf] 0.0
  %37 = vst [vmem:[#allocation3 + $0xe] sm:$0x3] 0.0
  %v38 = vld [vmem:[%s0] sm:$0xff]
  %v39 = vld [vmem:[%s0 + $0x8] sm:$0xff]
  %v40 = vld [vmem:[%s0 + $0x10] sm:$0xff]
  %v41 = vld [vmem:[%s0 + $0x18] sm:$0xff]
  %v42 = vadd.f32 %v38, %v39
  %43 = vadd.xlane.f32.xlu0 %v42
  %v44 = vpop.xlane.xlu0 %43
  %v45 = vadd.f32 %v40, %v41
  %46 = vadd.xlane.f32.xlu0 %v45
  %v47 = vpop.xlane.xlu0 %46
  %v48 = vrcp.pop 256.0
  %v49 = vmul.f32 %v44, %v48
  %v50 = vmul.f32 %v47, %v48
  %v51 = vmax.f32 %v38, %v39
  %52 = vmax.xlane.f32.xlu0 %v51
  %v53 = vpop.xlane.xlu0 %52
  %v54 = vmax.f32 %v40, %v41
  %55 = vmax.xlane.f32.xlu0 %v54
  %v56 = vpop.xlane.xlu0 %55
  %vm57 = vcmp.eq.s32.totalorder %v34, 0
  %v58 = vsel %vm57, 1, 0
  %vm59 = vcmp.eq.s32.totalorder %v58, 1
  %v60 = vsel %vm59, %v49, %v53
  %v61 = vsel %vm59, %v50, %v56
  %63 = vset.pattern.permute.xlu0 0
  %64 = vperm.xlu0 %63, %v28
  %v65 = vpop.permute.xlu0 %64
  %vm67 = vcmask 130048
  %v69 = vsel %vm67, %v27, 0
  %71 = vmatprep.subr.mxu0 0.0
  %72 = vmatpush1.msra.mxu0 %v60
  %73 = vmatprep.subr.mxu0 0.0
  %74 = vmatpush1.msra.mxu0 %v61
  %75 = vmatprep.subr.mxu0 0.0
  %76 = vmatpush1.msra.mxu0 0.0
  %77 = vmatprep.subr.mxu0 0.0
  %78 = vmatpush1.msra.mxu0 0.0
  %79 = vmatprep.subr.mxu0 0.0
  %80 = vmatpush1.msra.mxu0 0.0
  %81 = vmatprep.subr.mxu0 0.0
  %82 = vmatpush1.msra.mxu0 0.0
  %83 = vmatprep.subr.mxu0 0.0
  %84 = vmatpush1.msra.mxu0 0.0
  %85 = vmatprep.subr.mxu0 0.0
  %86 = vmatpush1.msra.mxu0 0.0
  %87 = vmatprep.subr.mxu0 0.0
  %88 = vmatpush1.msra.mxu0 0.0
  %89 = vmatprep.subr.mxu0 0.0
  %90 = vmatpush1.msra.mxu0 0.0
  %91 = vmatprep.subr.mxu0 0.0
  %92 = vmatpush1.msra.mxu0 0.0
  %93 = vmatprep.subr.mxu0 0.0
  %94 = vmatpush1.msra.mxu0 0.0
  %95 = vmatprep.subr.mxu0 0.0
  %96 = vmatpush1.msra.mxu0 0.0
  %97 = vmatprep.subr.mxu0 0.0
  %98 = vmatpush1.msra.mxu0 0.0
  %99 = vmatprep.subr.mxu0 0.0
  %100 = vmatpush1.msra.mxu0 0.0
  %101 = vmatprep.subr.mxu0 0.0
  %102 = vmatpush1.msra.mxu0 0.0
  %103 = vmatprep.subr.mxu0 0.0
  %104 = vmatpush1.msra.mxu0 0.0
  %105 = vmatprep.subr.mxu0 0.0
  %106 = vmatpush1.msra.mxu0 0.0
  %107 = vmatprep.subr.mxu0 0.0
  %108 = vmatpush1.msra.mxu0 0.0
  %109 = vmatprep.subr.mxu0 0.0
  %110 = vmatpush1.msra.mxu0 0.0
  %111 = vmatprep.subr.mxu0 0.0
  %112 = vmatpush1.msra.mxu0 0.0
  %113 = vmatprep.subr.mxu0 0.0
  %114 = vmatpush1.msra.mxu0 0.0
  %115 = vmatprep.subr.mxu0 0.0
  %116 = vmatpush1.msra.mxu0 0.0
  %117 = vmatprep.subr.mxu0 0.0
  %118 = vmatpush1.msra.mxu0 0.0
  %119 = vmatprep.subr.mxu0 0.0
  %120 = vmatpush1.msra.mxu0 0.0
  %121 = vmatprep.subr.mxu0 0.0
  %122 = vmatpush1.msra.mxu0 0.0
  %123 = vmatprep.subr.mxu0 0.0
  %124 = vmatpush1.msra.mxu0 0.0
  %125 = vmatprep.subr.mxu0 0.0
  %126 = vmatpush1.msra.mxu0 0.0
  %127 = vmatprep.subr.mxu0 0.0
  %128 = vmatpush1.msra.mxu0 0.0
  %129 = vmatprep.subr.mxu0 0.0
  %130 = vmatpush1.msra.mxu0 0.0
  %131 = vmatprep.subr.mxu0 0.0
  %132 = vmatpush1.msra.mxu0 0.0
  %133 = vmatprep.subr.mxu0 0.0
  %134 = vmatpush1.msra.mxu0 0.0
  %135 = vmatprep.mubr.f32.mxu0 0.0
  %136 = vmatmul.mubr.f32.gmra.mrb[0].mxu0 %v69
  %v137 = vpop.f32.mrb[0].mxu0
  %v138 = vadd.f32 %v65, %v137
  %v139 = vpop.f32.mrb[0].mxu0
  %140 = vdwg.mxu0
  %v141 = vmax.f32 %v138, 0.0
  %143 = vset.pattern.permute.xlu0 0
  %144 = vperm.xlu0 %143, %v31
  %v145 = vpop.permute.xlu0 %144
  %148 = vset.pattern.permute.xlu0 0
  %149 = vperm.xlu0 %148, %v32
  %v150 = vpop.permute.xlu0 %149
  %vm152 = vcmask 15360
  %v154 = vsel %vm152, %v29, 0
  %v157 = vsel %vm152, %v30, 0
  %vm159 = vcmask 1041408
  %v161 = vsel %vm159, %v141, 0
  %163 = vmatprep.subr.mxu0 0.0
  %164 = vmatpush1.msra.mxu0 %v161
  %165 = vmatprep.subr.mxu0 0.0
  %166 = vmatpush1.msra.mxu0 0.0
  %167 = vmatprep.subr.mxu0 0.0
  %168 = vmatpush1.msra.mxu0 0.0
  %169 = vmatprep.subr.mxu0 0.0
  %170 = vmatpush1.msra.mxu0 0.0
  %171 = vmatprep.subr.mxu0 0.0
  %172 = vmatpush1.msra.mxu0 0.0
  %173 = vmatprep.subr.mxu0 0.0
  %174 = vmatpush1.msra.mxu0 0.0
  %175 = vmatprep.subr.mxu0 0.0
  %176 = vmatpush1.msra.mxu0 0.0
  %177 = vmatprep.subr.mxu0 0.0
  %178 = vmatpush1.msra.mxu0 0.0
  %179 = vmatprep.subr.mxu0 0.0
  %180 = vmatpush1.msra.mxu0 0.0
  %181 = vmatprep.subr.mxu0 0.0
  %182 = vmatpush1.msra.mxu0 0.0
  %183 = vmatprep.subr.mxu0 0.0
  %184 = vmatpush1.msra.mxu0 0.0
  %185 = vmatprep.subr.mxu0 0.0
  %186 = vmatpush1.msra.mxu0 0.0
  %187 = vmatprep.subr.mxu0 0.0
  %188 = vmatpush1.msra.mxu0 0.0
  %189 = vmatprep.subr.mxu0 0.0
  %190 = vmatpush1.msra.mxu0 0.0
  %191 = vmatprep.subr.mxu0 0.0
  %192 = vmatpush1.msra.mxu0 0.0
  %193 = vmatprep.subr.mxu0 0.0
  %194 = vmatpush1.msra.mxu0 0.0
  %195 = vmatprep.subr.mxu0 0.0
  %196 = vmatpush1.msra.mxu0 0.0
  %197 = vmatprep.subr.mxu0 0.0
  %198 = vmatpush1.msra.mxu0 0.0
  %199 = vmatprep.subr.mxu0 0.0
  %200 = vmatpush1.msra.mxu0 0.0
  %201 = vmatprep.subr.mxu0 0.0
  %202 = vmatpush1.msra.mxu0 0.0
  %203 = vmatprep.subr.mxu0 0.0
  %204 = vmatpush1.msra.mxu0 0.0
  %205 = vmatprep.subr.mxu0 0.0
  %206 = vmatpush1.msra.mxu0 0.0
  %207 = vmatprep.subr.mxu0 0.0
  %208 = vmatpush1.msra.mxu0 0.0
  %209 = vmatprep.subr.mxu0 0.0
  %210 = vmatpush1.msra.mxu0 0.0
  %211 = vmatprep.subr.mxu0 0.0
  %212 = vmatpush1.msra.mxu0 0.0
  %213 = vmatprep.subr.mxu0 0.0
  %214 = vmatpush1.msra.mxu0 0.0
  %215 = vmatprep.subr.mxu0 0.0
  %216 = vmatpush1.msra.mxu0 0.0
  %217 = vmatprep.subr.mxu0 0.0
  %218 = vmatpush1.msra.mxu0 0.0
  %219 = vmatprep.subr.mxu0 0.0
  %220 = vmatpush1.msra.mxu0 0.0
  %221 = vmatprep.subr.mxu0 0.0
  %222 = vmatpush1.msra.mxu0 0.0
  %223 = vmatprep.subr.mxu0 0.0
  %224 = vmatpush1.msra.mxu0 0.0
  %225 = vmatprep.subr.mxu0 0.0
  %226 = vmatpush1.msra.mxu0 0.0
  %227 = vmatprep.mubr.f32.mxu0 0.0
  %228 = vmatmul.mubr.f32.gmra.mrb[0].mxu0 %v154
  %v229 = vpop.f32.mrb[0].mxu0
  %v230 = vadd.f32 %v145, %v229
  %v231 = vpop.f32.mrb[0].mxu0
  %232 = vmatprep.mubr.f32.mxu0 0.0
  %233 = vmatmul.mubr.f32.gmra.mrb[0].mxu0 %v157
  %v234 = vpop.f32.mrb[0].mxu0
  %v235 = vadd.f32 %v150, %v234
  %v236 = vpop.f32.mrb[0].mxu0
  %237 = vdwg.mxu0
  %v238 = vsel %vm152, %v230, 0.0
  %239 = vadd.xlane.f32.xlu0 %v238
  %v240 = vpop.xlane.xlu0 %239
  %v241 = vsel %vm152, %v235, 0.0
  %242 = vadd.xlane.f32.xlu0 %v241
  %v243 = vpop.xlane.xlu0 %242
  %v244 = vxor.u32 %v240, 2147483648
  %v245 = vxor.u32 %v243, 2147483648
  %v246 = vmul.f32 %v244, 1.442695
  %v247 = vpow.pop %v246
  %v248 = vmul.f32 %v245, 1.442695
  %v249 = vpow.pop %v248
  %v250 = vadd.f32 %v247, 1.0
  %v251 = vadd.f32 %v249, 1.0
  %v252 = vrcp.pop %v250
  %v253 = vmul.f32 1.0, %v252
  %v254 = vrcp.pop %v251
  %v255 = vmul.f32 1.0, %v254
  %v256 = vmul.f32 %v38, %v253
  %v257 = vmul.f32 %v39, %v253
  %v258 = vmul.f32 %v40, %v255
  %v259 = vmul.f32 %v41, %v255
  %260 = vst [vmem:[#allocation2] sm:$0xff] %v256
  %261 = vst [vmem:[#allocation2 + $0x8] sm:$0xff] %v257
  %262 = vst [vmem:[#allocation2 + $0x10] sm:$0xff] %v258
  %263 = vst [vmem:[#allocation2 + $0x18] sm:$0xff] %v259
  %v264 = vadd.f32 %v256, %v258
  %v265 = vrot.slane %v264, 4
  %v266 = vadd.f32 %v264, %v265
  %v267 = vrot.slane %v266, 2
  %v268 = vadd.f32 %v266, %v267
  %v269 = vrot.slane %v268, 1
  %v270 = vadd.f32 %v268, %v269
  %v271 = vadd.f32 %v257, %v259
  %v272 = vrot.slane %v271, 4
  %v273 = vadd.f32 %v271, %v272
  %v274 = vrot.slane %v273, 2
  %v275 = vadd.f32 %v273, %v274
  %v276 = vrot.slane %v275, 1
  %v277 = vadd.f32 %v275, %v276
  %v278 = vrcp.pop 16.0
  %v279 = vmul.f32 %v270, %v278
  %v280 = vmul.f32 %v277, %v278
  %v283 = vcombine.low %v279, %v280
  %v285 = vunpack.c.l.s4 1966171168
  %v286 = vunpack.c.0.s8 %v285
  %v287 = vlaneseq
  %v288 = vshrl.u32 %v287, 7
  %v289 = vsub.s32 %v286, %v288
  %v290 = vrot.slane %v283, %v289
  %v292 = vunpack.c.l.s4 1966171168
  %v293 = vunpack.c.0.s8 %v292
  %v294 = vlaneseq
  %v295 = vshrl.u32 %v294, 7
  %v296 = vsub.s32 %v293, %v295
  %v297 = vrot.slane %v290, %v296
  %v299 = vlaneseq
  %vm300 = vcmp.ge.s32.totalorder %v299, 0
  %vm301 = vcmp.lt.s32.totalorder %v299, 256
  %vm302 = vmand %vm300, %vm301
  %s303 = scalar_lea.vmem [#allocation3], 2
  %304 = vst.msk [vmem:[%s303] ss:$2 sm:$0x3] %vm302, %v297
  %v305 = vmax.f32 %v256, %v258
  %v306 = vrot.slane %v305, 4
  %v307 = vmax.f32 %v305, %v306
  %v308 = vrot.slane %v307, 2
  %v309 = vmax.f32 %v307, %v308
  %v310 = vrot.slane %v309, 1
  %v311 = vmax.f32 %v309, %v310
  %v312 = vmax.f32 %v257, %v259
  %v313 = vrot.slane %v312, 4
  %v314 = vmax.f32 %v312, %v313
  %v315 = vrot.slane %v314, 2
  %v316 = vmax.f32 %v314, %v315
  %v317 = vrot.slane %v316, 1
  %v318 = vmax.f32 %v316, %v317
  %v321 = vcombine.low %v311, %v318
  %v323 = vunpack.c.l.s4 1966171168
  %v324 = vunpack.c.0.s8 %v323
  %v325 = vlaneseq
  %v326 = vshrl.u32 %v325, 7
  %v327 = vsub.s32 %v324, %v326
  %v328 = vrot.slane %v321, %v327
  %v330 = vunpack.c.l.s4 1966171168
  %v331 = vunpack.c.0.s8 %v330
  %v332 = vlaneseq
  %v333 = vshrl.u32 %v332, 7
  %v334 = vsub.s32 %v331, %v333
  %v335 = vrot.slane %v328, %v334
  %s337 = scalar_lea.vmem [#allocation3], 10
  %338 = vst.msk [vmem:[%s337] ss:$2 sm:$0x3] %vm302, %v335
  %s339 = scalar_lea.vmem %s0, 32
  %v340 = vld [vmem:[%s339] sm:$0xff]
  %v341 = vld [vmem:[%s339 + $0x8] sm:$0xff]
  %v342 = vld [vmem:[%s339 + $0x10] sm:$0xff]
  %v343 = vld [vmem:[%s339 + $0x18] sm:$0xff]
  %v344 = vadd.f32 %v340, %v341
  %345 = vadd.xlane.f32.xlu0 %v344
  %v346 = vpop.xlane.xlu0 %345
  %v347 = vadd.f32 %v342, %v343
  %348 = vadd.xlane.f32.xlu0 %v347
  %v349 = vpop.xlane.xlu0 %348
  %v350 = vmul.f32 %v346, %v48
  %v351 = vmul.f32 %v349, %v48
  %v352 = vmax.f32 %v340, %v341
  %353 = vmax.xlane.f32.xlu0 %v352
  %v354 = vpop.xlane.xlu0 %353
  %v355 = vmax.f32 %v342, %v343
  %356 = vmax.xlane.f32.xlu0 %v355
  %v357 = vpop.xlane.xlu0 %356
  %v358 = vsel %vm59, %v350, %v354
  %v359 = vsel %vm59, %v351, %v357
  %360 = vmatprep.subr.mxu0 0.0
  %361 = vmatpush1.msra.mxu0 %v358
  %362 = vmatprep.subr.mxu0 0.0
  %363 = vmatpush1.msra.mxu0 %v359
  %364 = vmatprep.subr.mxu0 0.0
  %365 = vmatpush1.msra.mxu0 0.0
  %366 = vmatprep.subr.mxu0 0.0
  %367 = vmatpush1.msra.mxu0 0.0
  %368 = vmatprep.subr.mxu0 0.0
  %369 = vmatpush1.msra.mxu0 0.0
  %370 = vmatprep.subr.mxu0 0.0
  %371 = vmatpush1.msra.mxu0 0.0
  %372 = vmatprep.subr.mxu0 0.0
  %373 = vmatpush1.msra.mxu0 0.0
  %374 = vmatprep.subr.mxu0 0.0
  %375 = vmatpush1.msra.mxu0 0.0
  %376 = vmatprep.subr.mxu0 0.0
  %377 = vmatpush1.msra.mxu0 0.0
  %378 = vmatprep.subr.mxu0 0.0
  %379 = vmatpush1.msra.mxu0 0.0
  %380 = vmatprep.subr.mxu0 0.0
  %381 = vmatpush1.msra.mxu0 0.0
  %382 = vmatprep.subr.mxu0 0.0
  %383 = vmatpush1.msra.mxu0 0.0
  %384 = vmatprep.subr.mxu0 0.0
  %385 = vmatpush1.msra.mxu0 0.0
  %386 = vmatprep.subr.mxu0 0.0
  %387 = vmatpush1.msra.mxu0 0.0
  %388 = vmatprep.subr.mxu0 0.0
  %389 = vmatpush1.msra.mxu0 0.0
  %390 = vmatprep.subr.mxu0 0.0
  %391 = vmatpush1.msra.mxu0 0.0
  %392 = vmatprep.subr.mxu0 0.0
  %393 = vmatpush1.msra.mxu0 0.0
  %394 = vmatprep.subr.mxu0 0.0
  %395 = vmatpush1.msra.mxu0 0.0
  %396 = vmatprep.subr.mxu0 0.0
  %397 = vmatpush1.msra.mxu0 0.0
  %398 = vmatprep.subr.mxu0 0.0
  %399 = vmatpush1.msra.mxu0 0.0
  %400 = vmatprep.subr.mxu0 0.0
  %401 = vmatpush1.msra.mxu0 0.0
  %402 = vmatprep.subr.mxu0 0.0
  %403 = vmatpush1.msra.mxu0 0.0
  %404 = vmatprep.subr.mxu0 0.0
  %405 = vmatpush1.msra.mxu0 0.0
  %406 = vmatprep.subr.mxu0 0.0
  %407 = vmatpush1.msra.mxu0 0.0
  %408 = vmatprep.subr.mxu0 0.0
  %409 = vmatpush1.msra.mxu0 0.0
  %410 = vmatprep.subr.mxu0 0.0
  %411 = vmatpush1.msra.mxu0 0.0
  %412 = vmatprep.subr.mxu0 0.0
  %413 = vmatpush1.msra.mxu0 0.0
  %414 = vmatprep.subr.mxu0 0.0
  %415 = vmatpush1.msra.mxu0 0.0
  %416 = vmatprep.subr.mxu0 0.0
  %417 = vmatpush1.msra.mxu0 0.0
  %418 = vmatprep.subr.mxu0 0.0
  %419 = vmatpush1.msra.mxu0 0.0
  %420 = vmatprep.subr.mxu0 0.0
  %421 = vmatpush1.msra.mxu0 0.0
  %422 = vmatprep.subr.mxu0 0.0
  %423 = vmatpush1.msra.mxu0 0.0
  %424 = vmatprep.mubr.f32.mxu0 0.0
  %425 = vmatmul.mubr.f32.gmra.mrb[0].mxu0 %v69
  %v426 = vpop.f32.mrb[0].mxu0
  %v427 = vadd.f32 %v65, %v426
  %v428 = vpop.f32.mrb[0].mxu0
  %429 = vdwg.mxu0
  %v430 = vmax.f32 %v427, 0.0
  %v432 = vsel %vm159, %v430, 0
  %434 = vmatprep.subr.mxu0 0.0
  %435 = vmatpush1.msra.mxu0 %v432
  %436 = vmatprep.subr.mxu0 0.0
  %437 = vmatpush1.msra.mxu0 0.0
  %438 = vmatprep.subr.mxu0 0.0
  %439 = vmatpush1.msra.mxu0 0.0
  %440 = vmatprep.subr.mxu0 0.0
  %441 = vmatpush1.msra.mxu0 0.0
  %442 = vmatprep.subr.mxu0 0.0
  %443 = vmatpush1.msra.mxu0 0.0
  %444 = vmatprep.subr.mxu0 0.0
  %445 = vmatpush1.msra.mxu0 0.0
  %446 = vmatprep.subr.mxu0 0.0
  %447 = vmatpush1.msra.mxu0 0.0
  %448 = vmatprep.subr.mxu0 0.0
  %449 = vmatpush1.msra.mxu0 0.0
  %450 = vmatprep.subr.mxu0 0.0
  %451 = vmatpush1.msra.mxu0 0.0
  %452 = vmatprep.subr.mxu0 0.0
  %453 = vmatpush1.msra.mxu0 0.0
  %454 = vmatprep.subr.mxu0 0.0
  %455 = vmatpush1.msra.mxu0 0.0
  %456 = vmatprep.subr.mxu0 0.0
  %457 = vmatpush1.msra.mxu0 0.0
  %458 = vmatprep.subr.mxu0 0.0
  %459 = vmatpush1.msra.mxu0 0.0
  %460 = vmatprep.subr.mxu0 0.0
  %461 = vmatpush1.msra.mxu0 0.0
  %462 = vmatprep.subr.mxu0 0.0
  %463 = vmatpush1.msra.mxu0 0.0
  %464 = vmatprep.subr.mxu0 0.0
  %465 = vmatpush1.msra.mxu0 0.0
  %466 = vmatprep.subr.mxu0 0.0
  %467 = vmatpush1.msra.mxu0 0.0
  %468 = vmatprep.subr.mxu0 0.0
  %469 = vmatpush1.msra.mxu0 0.0
  %470 = vmatprep.subr.mxu0 0.0
  %471 = vmatpush1.msra.mxu0 0.0
  %472 = vmatprep.subr.mxu0 0.0
  %473 = vmatpush1.msra.mxu0 0.0
  %474 = vmatprep.subr.mxu0 0.0
  %475 = vmatpush1.msra.mxu0 0.0
  %476 = vmatprep.subr.mxu0 0.0
  %477 = vmatpush1.msra.mxu0 0.0
  %478 = vmatprep.subr.mxu0 0.0
  %479 = vmatpush1.msra.mxu0 0.0
  %480 = vmatprep.subr.mxu0 0.0
  %481 = vmatpush1.msra.mxu0 0.0
  %482 = vmatprep.subr.mxu0 0.0
  %483 = vmatpush1.msra.mxu0 0.0
  %484 = vmatprep.subr.mxu0 0.0
  %485 = vmatpush1.msra.mxu0 0.0
  %486 = vmatprep.subr.mxu0 0.0
  %487 = vmatpush1.msra.mxu0 0.0
  %488 = vmatprep.subr.mxu0 0.0
  %489 = vmatpush1.msra.mxu0 0.0
  %490 = vmatprep.subr.mxu0 0.0
  %491 = vmatpush1.msra.mxu0 0.0
  %492 = vmatprep.subr.mxu0 0.0
  %493 = vmatpush1.msra.mxu0 0.0
  %494 = vmatprep.subr.mxu0 0.0
  %495 = vmatpush1.msra.mxu0 0.0
  %496 = vmatprep.subr.mxu0 0.0
  %497 = vmatpush1.msra.mxu0 0.0
  %498 = vmatprep.mubr.f32.mxu0 0.0
  %499 = vmatmul.mubr.f32.gmra.mrb[0].mxu0 %v154
  %v500 = vpop.f32.mrb[0].mxu0
  %v501 = vadd.f32 %v145, %v500
  %v502 = vpop.f32.mrb[0].mxu0
  %503 = vmatprep.mubr.f32.mxu0 0.0
  %504 = vmatmul.mubr.f32.gmra.mrb[0].mxu0 %v157
  %v505 = vpop.f32.mrb[0].mxu0
  %v506 = vadd.f32 %v150, %v505
  %v507 = vpop.f32.mrb[0].mxu0
  %508 = vdwg.mxu0
  %v509 = vsel %vm152, %v501, 0.0
  %510 = vadd.xlane.f32.xlu0 %v509
  %v511 = vpop.xlane.xlu0 %510
  %v512 = vsel %vm152, %v506, 0.0
  %513 = vadd.xlane.f32.xlu0 %v512
  %v514 = vpop.xlane.xlu0 %513
  %v515 = vxor.u32 %v511, 2147483648
  %v516 = vxor.u32 %v514, 2147483648
  %v517 = vmul.f32 %v515, 1.442695
  %v518 = vpow.pop %v517
  %v519 = vmul.f32 %v516, 1.442695
  %v520 = vpow.pop %v519
  %v521 = vadd.f32 %v518, 1.0
  %v522 = vadd.f32 %v520, 1.0
  %v523 = vrcp.pop %v521
  %v524 = vmul.f32 1.0, %v523
  %v525 = vrcp.pop %v522
  %v526 = vmul.f32 1.0, %v525
  %v527 = vmul.f32 %v340, %v524
  %v528 = vmul.f32 %v341, %v524
  %v529 = vmul.f32 %v342, %v526
  %v530 = vmul.f32 %v343, %v526
  %s531 = scalar_lea.vmem [#allocation2], 32
  %532 = vst [vmem:[%s531] sm:$0xff] %v527
  %533 = vst [vmem:[%s531 + $0x8] sm:$0xff] %v528
  %534 = vst [vmem:[%s531 + $0x10] sm:$0xff] %v529
  %535 = vst [vmem:[%s531 + $0x18] sm:$0xff] %v530
  %v536 = vadd.f32 %v527, %v529
  %v537 = vrot.slane %v536, 4
  %v538 = vadd.f32 %v536, %v537
  %v539 = vrot.slane %v538, 2
  %v540 = vadd.f32 %v538, %v539
  %v541 = vrot.slane %v540, 1
  %v542 = vadd.f32 %v540, %v541
  %v543 = vadd.f32 %v528, %v530
  %v544 = vrot.slane %v543, 4
  %v545 = vadd.f32 %v543, %v544
  %v546 = vrot.slane %v545, 2
  %v547 = vadd.f32 %v545, %v546
  %v548 = vrot.slane %v547, 1
  %v549 = vadd.f32 %v547, %v548
  %v550 = vmul.f32 %v542, %v278
  %v551 = vmul.f32 %v549, %v278
  %v554 = vcombine.low %v550, %v551
  %v556 = vunpack.c.l.s4 1966171168
  %v557 = vunpack.c.0.s8 %v556
  %v558 = vlaneseq
  %v559 = vshrl.u32 %v558, 7
  %v560 = vsub.s32 %v557, %v559
  %v561 = vrot.slane %v554, %v560
  %v563 = vunpack.c.l.s4 1966171168
  %v564 = vunpack.c.0.s8 %v563
  %v565 = vlaneseq
  %v566 = vshrl.u32 %v565, 7
  %v567 = vsub.s32 %v564, %v566
  %v568 = vrot.slane %v561, %v567
  %s570 = scalar_lea.vmem [#allocation3], 3
  %571 = vst.msk [vmem:[%s570] ss:$2 sm:$0x3] %vm302, %v568
  %v572 = vmax.f32 %v527, %v529
  %v573 = vrot.slane %v572, 4
  %v574 = vmax.f32 %v572, %v573
  %v575 = vrot.slane %v574, 2
  %v576 = vmax.f32 %v574, %v575
  %v577 = vrot.slane %v576, 1
  %v578 = vmax.f32 %v576, %v577
  %v579 = vmax.f32 %v528, %v530
  %v580 = vrot.slane %v579, 4
  %v581 = vmax.f32 %v579, %v580
  %v582 = vrot.slane %v581, 2
  %v583 = vmax.f32 %v581, %v582
  %v584 = vrot.slane %v583, 1
  %v585 = vmax.f32 %v583, %v584
  %v588 = vcombine.low %v578, %v585
  %v590 = vunpack.c.l.s4 1966171168
  %v591 = vunpack.c.0.s8 %v590
  %v592 = vlaneseq
  %v593 = vshrl.u32 %v592, 7
  %v594 = vsub.s32 %v591, %v593
  %v595 = vrot.slane %v588, %v594
  %v597 = vunpack.c.l.s4 1966171168
  %v598 = vunpack.c.0.s8 %v597
  %v599 = vlaneseq
  %v600 = vshrl.u32 %v599, 7
  %v601 = vsub.s32 %v598, %v600
  %v602 = vrot.slane %v595, %v601
  %s604 = scalar_lea.vmem [#allocation3], 11
  %605 = vst.msk [vmem:[%s604] ss:$2 sm:$0x3] %vm302, %v602
  %v606 = vld [vmem:[%s5] ss:$8 sm:$0xf]
  %v607 = vld [vmem:[%s5] ss:$8 sm:$0x30]
  %v608 = vor.u32 %v606, %v607
  %v609 = vld [vmem:[#allocation3] sm:$0xff]
  %v610 = vld [vmem:[#allocation3 + $0x8] sm:$0x3f]
  %v612 = vlaneseq
  %v613 = vshrl.u32 %v612, 7
  %v614 = vsub.s32 0, %v613
  %v615 = vrot.slane %v608, %v614
  %v616 = vlaneseq
  %v617 = vshrl.u32 %v616, 7
  %v618 = vsub.s32 1, %v617
  %v619 = vrot.slane %v608, %v618
  %v620 = vlaneseq
  %v621 = vshrl.u32 %v620, 7
  %v622 = vsub.s32 4, %v621
  %v623 = vrot.slane %v608, %v622
  %v624 = vlaneseq
  %v625 = vshrl.u32 %v624, 7
  %v626 = vsub.s32 5, %v625
  %v627 = vrot.slane %v608, %v626
  %v634 = vcombine.high %v609, %v609
  %v636 = vunpack.c.l.s4 1983009808
  %v637 = vunpack.c.0.s8 %v636
  %v638 = vlaneseq
  %v639 = vshrl.u32 %v638, 7
  %v640 = vsub.s32 %v637, %v639
  %v641 = vrot.slane %v609, %v640
  %v643 = vunpack.c.l.s4 1983009808
  %v644 = vunpack.c.0.s8 %v643
  %v645 = vlaneseq
  %v646 = vshrl.u32 %v645, 7
  %v647 = vsub.s32 %v644, %v646
  %v648 = vrot.slane %v634, %v647
  %v649 = vcombine.high %v641, %v641
  %v650 = vcombine.high %v610, %v610
  %v652 = vunpack.c.l.s4 1983009808
  %v653 = vunpack.c.0.s8 %v652
  %v654 = vlaneseq
  %v655 = vshrl.u32 %v654, 7
  %v656 = vsub.s32 %v653, %v655
  %v657 = vrot.slane %v610, %v656
  %v659 = vunpack.c.l.s4 1983009808
  %v660 = vunpack.c.0.s8 %v659
  %v661 = vlaneseq
  %v662 = vshrl.u32 %v661, 7
  %v663 = vsub.s32 %v660, %v662
  %v664 = vrot.slane %v650, %v663
  %v665 = vcombine.high %v657, %v657
  %666 = vrot.lane.b32.xlu0 %v641, 51
  %v667 = vpop.permute.xlu0 %666
  %668 = vrot.lane.b32.xlu0 %v649, 51
  %v669 = vpop.permute.xlu0 %668
  %670 = vrot.lane.b32.xlu0 %v648, 51
  %v671 = vpop.permute.xlu0 %670
  %672 = vrot.lane.b32.xlu0 %v657, 51
  %v673 = vpop.permute.xlu0 %672
  %674 = vrot.lane.b32.xlu0 %v665, 51
  %v675 = vpop.permute.xlu0 %674
  %676 = vrot.lane.b32.xlu0 %v664, 51
  %v677 = vpop.permute.xlu0 %676
  %vm678 = vcmask 416768
  %v679 = vsel %vm678, %v667, %v669
  %v680 = vsel %vm678, %v669, %v671
  %v681 = vsel %vm678, %v673, %v675
  %v682 = vsel %vm678, %v675, %v677
  %v687 = vmul.f32 %v615, %v679
  %v688 = vmul.f32 %v619, %v680
  %v689 = vmul.f32 %v623, %v681
  %v690 = vmul.f32 %v627, %v682
  %v691 = vadd.f32 %v687, 0.0
  %v692 = vadd.f32 %v688, 0.0
  %v693 = vadd.f32 %v689, 0.0
  %v694 = vadd.f32 %v690, 0.0
  %s695 = scalar_lea.vmem %s5, 1
  %v696 = vld [vmem:[%s695] ss:$8 sm:$0xf]
  %v697 = vld [vmem:[%s695] ss:$8 sm:$0x30]
  %v698 = vor.u32 %v696, %v697
  %v700 = vlaneseq
  %v701 = vshrl.u32 %v700, 7
  %v702 = vsub.s32 0, %v701
  %v703 = vrot.slane %v698, %v702
  %v704 = vlaneseq
  %v705 = vshrl.u32 %v704, 7
  %v706 = vsub.s32 1, %v705
  %v707 = vrot.slane %v698, %v706
  %v708 = vlaneseq
  %v709 = vshrl.u32 %v708, 7
  %v710 = vsub.s32 4, %v709
  %v711 = vrot.slane %v698, %v710
  %v712 = vlaneseq
  %v713 = vshrl.u32 %v712, 7
  %v714 = vsub.s32 5, %v713
  %v715 = vrot.slane %v698, %v714
  %720 = vrot.lane.b32.xlu0 %v641, 50
  %v721 = vpop.permute.xlu0 %720
  %722 = vrot.lane.b32.xlu0 %v649, 50
  %v723 = vpop.permute.xlu0 %722
  %724 = vrot.lane.b32.xlu0 %v648, 50
  %v725 = vpop.permute.xlu0 %724
  %726 = vrot.lane.b32.xlu0 %v657, 50
  %v727 = vpop.permute.xlu0 %726
  %728 = vrot.lane.b32.xlu0 %v665, 50
  %v729 = vpop.permute.xlu0 %728
  %730 = vrot.lane.b32.xlu0 %v664, 50
  %v731 = vpop.permute.xlu0 %730
  %vm732 = vcmask 408576
  %v733 = vsel %vm732, %v721, %v723
  %v734 = vsel %vm732, %v723, %v725
  %v735 = vsel %vm732, %v727, %v729
  %v736 = vsel %vm732, %v729, %v731
  %v741 = vmul.f32 %v703, %v733
  %v742 = vmul.f32 %v707, %v734
  %v743 = vmul.f32 %v711, %v735
  %v744 = vmul.f32 %v715, %v736
  %v745 = vadd.f32 %v741, 0.0
  %v746 = vadd.f32 %v742, 0.0
  %v747 = vadd.f32 %v743, 0.0
  %v748 = vadd.f32 %v744, 0.0
  %s749 = scalar_lea.vmem %s5, 2
  %v750 = vld [vmem:[%s749] ss:$8 sm:$0xf]
  %v751 = vld [vmem:[%s749] ss:$8 sm:$0x30]
  %v752 = vor.u32 %v750, %v751
  %v754 = vlaneseq
  %v755 = vshrl.u32 %v754, 7
  %v756 = vsub.s32 0, %v755
  %v757 = vrot.slane %v752, %v756
  %v758 = vlaneseq
  %v759 = vshrl.u32 %v758, 7
  %v760 = vsub.s32 1, %v759
  %v761 = vrot.slane %v752, %v760
  %v762 = vlaneseq
  %v763 = vshrl.u32 %v762, 7
  %v764 = vsub.s32 4, %v763
  %v765 = vrot.slane %v752, %v764
  %v766 = vlaneseq
  %v767 = vshrl.u32 %v766, 7
  %v768 = vsub.s32 5, %v767
  %v769 = vrot.slane %v752, %v768
  %774 = vrot.lane.b32.xlu0 %v641, 49
  %v775 = vpop.permute.xlu0 %774
  %776 = vrot.lane.b32.xlu0 %v649, 49
  %v777 = vpop.permute.xlu0 %776
  %778 = vrot.lane.b32.xlu0 %v648, 49
  %v779 = vpop.permute.xlu0 %778
  %780 = vrot.lane.b32.xlu0 %v657, 49
  %v781 = vpop.permute.xlu0 %780
  %782 = vrot.lane.b32.xlu0 %v665, 49
  %v783 = vpop.permute.xlu0 %782
  %784 = vrot.lane.b32.xlu0 %v664, 49
  %v785 = vpop.permute.xlu0 %784
  %vm786 = vcmask 400384
  %v787 = vsel %vm786, %v775, %v777
  %v788 = vsel %vm786, %v777, %v779
  %v789 = vsel %vm786, %v781, %v783
  %v790 = vsel %vm786, %v783, %v785
  %v795 = vmul.f32 %v757, %v787
  %v796 = vmul.f32 %v761, %v788
  %v797 = vmul.f32 %v765, %v789
  %v798 = vmul.f32 %v769, %v790
  %v799 = vadd.f32 %v691, %v795
  %v800 = vadd.f32 %v692, %v796
  %v801 = vadd.f32 %v693, %v797
  %v802 = vadd.f32 %v694, %v798
  %s803 = scalar_lea.vmem %s5, 3
  %v804 = vld [vmem:[%s803] ss:$8 sm:$0xf]
  %v805 = vld [vmem:[%s803] ss:$8 sm:$0x30]
  %v806 = vor.u32 %v804, %v805
  %v808 = vlaneseq
  %v809 = vshrl.u32 %v808, 7
  %v810 = vsub.s32 0, %v809
  %v811 = vrot.slane %v806, %v810
  %v812 = vlaneseq
  %v813 = vshrl.u32 %v812, 7
  %v814 = vsub.s32 1, %v813
  %v815 = vrot.slane %v806, %v814
  %v816 = vlaneseq
  %v817 = vshrl.u32 %v816, 7
  %v818 = vsub.s32 4, %v817
  %v819 = vrot.slane %v806, %v818
  %v820 = vlaneseq
  %v821 = vshrl.u32 %v820, 7
  %v822 = vsub.s32 5, %v821
  %v823 = vrot.slane %v806, %v822
  %828 = vrot.lane.b32.xlu0 %v641, 48
  %v829 = vpop.permute.xlu0 %828
  %830 = vrot.lane.b32.xlu0 %v649, 48
  %v831 = vpop.permute.xlu0 %830
  %832 = vrot.lane.b32.xlu0 %v648, 48
  %v833 = vpop.permute.xlu0 %832
  %834 = vrot.lane.b32.xlu0 %v657, 48
  %v835 = vpop.permute.xlu0 %834
  %836 = vrot.lane.b32.xlu0 %v665, 48
  %v837 = vpop.permute.xlu0 %836
  %838 = vrot.lane.b32.xlu0 %v664, 48
  %v839 = vpop.permute.xlu0 %838
  %vm840 = vcmask 392192
  %v841 = vsel %vm840, %v829, %v831
  %v842 = vsel %vm840, %v831, %v833
  %v843 = vsel %vm840, %v835, %v837
  %v844 = vsel %vm840, %v837, %v839
  %v849 = vmul.f32 %v811, %v841
  %v850 = vmul.f32 %v815, %v842
  %v851 = vmul.f32 %v819, %v843
  %v852 = vmul.f32 %v823, %v844
  %v853 = vadd.f32 %v745, %v849
  %v854 = vadd.f32 %v746, %v850
  %v855 = vadd.f32 %v747, %v851
  %v856 = vadd.f32 %v748, %v852
  %s857 = scalar_lea.vmem %s5, 4
  %v858 = vld [vmem:[%s857] ss:$8 sm:$0xf]
  %v859 = vld [vmem:[%s857] ss:$8 sm:$0x30]
  %v860 = vor.u32 %v858, %v859
  %v862 = vlaneseq
  %v863 = vshrl.u32 %v862, 7
  %v864 = vsub.s32 0, %v863
  %v865 = vrot.slane %v860, %v864
  %v866 = vlaneseq
  %v867 = vshrl.u32 %v866, 7
  %v868 = vsub.s32 1, %v867
  %v869 = vrot.slane %v860, %v868
  %v870 = vlaneseq
  %v871 = vshrl.u32 %v870, 7
  %v872 = vsub.s32 4, %v871
  %v873 = vrot.slane %v860, %v872
  %v874 = vlaneseq
  %v875 = vshrl.u32 %v874, 7
  %v876 = vsub.s32 5, %v875
  %v877 = vrot.slane %v860, %v876
  %882 = vrot.lane.b32.xlu0 %v641, 47
  %v883 = vpop.permute.xlu0 %882
  %884 = vrot.lane.b32.xlu0 %v649, 47
  %v885 = vpop.permute.xlu0 %884
  %886 = vrot.lane.b32.xlu0 %v648, 47
  %v887 = vpop.permute.xlu0 %886
  %888 = vrot.lane.b32.xlu0 %v657, 47
  %v889 = vpop.permute.xlu0 %888
  %890 = vrot.lane.b32.xlu0 %v665, 47
  %v891 = vpop.permute.xlu0 %890
  %892 = vrot.lane.b32.xlu0 %v664, 47
  %v893 = vpop.permute.xlu0 %892
  %vm894 = vcmask 384000
  %v895 = vsel %vm894, %v883, %v885
  %v896 = vsel %vm894, %v885, %v887
  %v897 = vsel %vm894, %v889, %v891
  %v898 = vsel %vm894, %v891, %v893
  %v903 = vmul.f32 %v865, %v895
  %v904 = vmul.f32 %v869, %v896
  %v905 = vmul.f32 %v873, %v897
  %v906 = vmul.f32 %v877, %v898
  %v907 = vadd.f32 %v799, %v903
  %v908 = vadd.f32 %v800, %v904
  %v909 = vadd.f32 %v801, %v905
  %v910 = vadd.f32 %v802, %v906
  %s911 = scalar_lea.vmem %s5, 5
  %v912 = vld [vmem:[%s911] ss:$8 sm:$0xf]
  %v913 = vld [vmem:[%s911] ss:$8 sm:$0x30]
  %v914 = vor.u32 %v912, %v913
  %v916 = vlaneseq
  %v917 = vshrl.u32 %v916, 7
  %v918 = vsub.s32 0, %v917
  %v919 = vrot.slane %v914, %v918
  %v920 = vlaneseq
  %v921 = vshrl.u32 %v920, 7
  %v922 = vsub.s32 1, %v921
  %v923 = vrot.slane %v914, %v922
  %v924 = vlaneseq
  %v925 = vshrl.u32 %v924, 7
  %v926 = vsub.s32 4, %v925
  %v927 = vrot.slane %v914, %v926
  %v928 = vlaneseq
  %v929 = vshrl.u32 %v928, 7
  %v930 = vsub.s32 5, %v929
  %v931 = vrot.slane %v914, %v930
  %936 = vrot.lane.b32.xlu0 %v641, 46
  %v937 = vpop.permute.xlu0 %936
  %938 = vrot.lane.b32.xlu0 %v649, 46
  %v939 = vpop.permute.xlu0 %938
  %940 = vrot.lane.b32.xlu0 %v648, 46
  %v941 = vpop.permute.xlu0 %940
  %942 = vrot.lane.b32.xlu0 %v657, 46
  %v943 = vpop.permute.xlu0 %942
  %944 = vrot.lane.b32.xlu0 %v665, 46
  %v945 = vpop.permute.xlu0 %944
  %946 = vrot.lane.b32.xlu0 %v664, 46
  %v947 = vpop.permute.xlu0 %946
  %vm948 = vcmask 375808
  %v949 = vsel %vm948, %v937, %v939
  %v950 = vsel %vm948, %v939, %v941
  %v951 = vsel %vm948, %v943, %v945
  %v952 = vsel %vm948, %v945, %v947
  %v957 = vmul.f32 %v919, %v949
  %v958 = vmul.f32 %v923, %v950
  %v959 = vmul.f32 %v927, %v951
  %v960 = vmul.f32 %v931, %v952
  %v961 = vadd.f32 %v853, %v957
  %v962 = vadd.f32 %v854, %v958
  %v963 = vadd.f32 %v855, %v959
  %v964 = vadd.f32 %v856, %v960
  %s965 = scalar_lea.vmem %s5, 6
  %v966 = vld [vmem:[%s965] ss:$8 sm:$0xf]
  %v967 = vld [vmem:[%s965] ss:$8 sm:$0x30]
  %v968 = vor.u32 %v966, %v967
  %v970 = vlaneseq
  %v971 = vshrl.u32 %v970, 7
  %v972 = vsub.s32 0, %v971
  %v973 = vrot.slane %v968, %v972
  %v974 = vlaneseq
  %v975 = vshrl.u32 %v974, 7
  %v976 = vsub.s32 1, %v975
  %v977 = vrot.slane %v968, %v976
  %v978 = vlaneseq
  %v979 = vshrl.u32 %v978, 7
  %v980 = vsub.s32 4, %v979
  %v981 = vrot.slane %v968, %v980
  %v982 = vlaneseq
  %v983 = vshrl.u32 %v982, 7
  %v984 = vsub.s32 5, %v983
  %v985 = vrot.slane %v968, %v984
  %990 = vrot.lane.b32.xlu0 %v641, 45
  %v991 = vpop.permute.xlu0 %990
  %992 = vrot.lane.b32.xlu0 %v649, 45
  %v993 = vpop.permute.xlu0 %992
  %994 = vrot.lane.b32.xlu0 %v648, 45
  %v995 = vpop.permute.xlu0 %994
  %996 = vrot.lane.b32.xlu0 %v657, 45
  %v997 = vpop.permute.xlu0 %996
  %998 = vrot.lane.b32.xlu0 %v665, 45
  %v999 = vpop.permute.xlu0 %998
  %1000 = vrot.lane.b32.xlu0 %v664, 45
  %v1001 = vpop.permute.xlu0 %1000
  %vm1002 = vcmask 367616
  %v1003 = vsel %vm1002, %v991, %v993
  %v1004 = vsel %vm1002, %v993, %v995
  %v1005 = vsel %vm1002, %v997, %v999
  %v1006 = vsel %vm1002, %v999, %v1001
  %v1011 = vmul.f32 %v973, %v1003
  %v1012 = vmul.f32 %v977, %v1004
  %v1013 = vmul.f32 %v981, %v1005
  %v1014 = vmul.f32 %v985, %v1006
  %v1015 = vadd.f32 %v907, %v1011
  %v1016 = vadd.f32 %v908, %v1012
  %v1017 = vadd.f32 %v909, %v1013
  %v1018 = vadd.f32 %v910, %v1014
  %s1019 = scalar_lea.vmem %s5, 7
  %v1020 = vld [vmem:[%s1019] ss:$8 sm:$0xf]
  %v1021 = vld [vmem:[%s1019] ss:$8 sm:$0x30]
  %v1022 = vor.u32 %v1020, %v1021
  %v1024 = vlaneseq
  %v1025 = vshrl.u32 %v1024, 7
  %v1026 = vsub.s32 0, %v1025
  %v1027 = vrot.slane %v1022, %v1026
  %v1028 = vlaneseq
  %v1029 = vshrl.u32 %v1028, 7
  %v1030 = vsub.s32 1, %v1029
  %v1031 = vrot.slane %v1022, %v1030
  %v1032 = vlaneseq
  %v1033 = vshrl.u32 %v1032, 7
  %v1034 = vsub.s32 4, %v1033
  %v1035 = vrot.slane %v1022, %v1034
  %v1036 = vlaneseq
  %v1037 = vshrl.u32 %v1036, 7
  %v1038 = vsub.s32 5, %v1037
  %v1039 = vrot.slane %v1022, %v1038
  %1044 = vrot.lane.b32.xlu0 %v641, 35
  %v1045 = vpop.permute.xlu0 %1044
  %1046 = vrot.lane.b32.xlu0 %v649, 35
  %v1047 = vpop.permute.xlu0 %1046
  %1048 = vrot.lane.b32.xlu0 %v648, 35
  %v1049 = vpop.permute.xlu0 %1048
  %1050 = vrot.lane.b32.xlu0 %v657, 35
  %v1051 = vpop.permute.xlu0 %1050
  %1052 = vrot.lane.b32.xlu0 %v665, 35
  %v1053 = vpop.permute.xlu0 %1052
  %1054 = vrot.lane.b32.xlu0 %v664, 35
  %v1055 = vpop.permute.xlu0 %1054
  %vm1056 = vcmask 285696
  %v1057 = vsel %vm1056, %v1045, %v1047
  %v1058 = vsel %vm1056, %v1047, %v1049
  %v1059 = vsel %vm1056, %v1051, %v1053
  %v1060 = vsel %vm1056, %v1053, %v1055
  %v1065 = vmul.f32 %v1027, %v1057
  %v1066 = vmul.f32 %v1031, %v1058
  %v1067 = vmul.f32 %v1035, %v1059
  %v1068 = vmul.f32 %v1039, %v1060
  %v1069 = vadd.f32 %v961, %v1065
  %v1070 = vadd.f32 %v962, %v1066
  %v1071 = vadd.f32 %v963, %v1067
  %v1072 = vadd.f32 %v964, %v1068
  %s1073 = scalar_lea.vmem %s5, 48
  %v1074 = vld [vmem:[%s1073] ss:$8 sm:$0xf]
  %v1075 = vld [vmem:[%s1073] ss:$8 sm:$0x30]
  %v1076 = vor.u32 %v1074, %v1075
  %v1078 = vlaneseq
  %v1079 = vshrl.u32 %v1078, 7
  %v1080 = vsub.s32 0, %v1079
  %v1081 = vrot.slane %v1076, %v1080
  %v1082 = vlaneseq
  %v1083 = vshrl.u32 %v1082, 7
  %v1084 = vsub.s32 1, %v1083
  %v1085 = vrot.slane %v1076, %v1084
  %v1086 = vlaneseq
  %v1087 = vshrl.u32 %v1086, 7
  %v1088 = vsub.s32 4, %v1087
  %v1089 = vrot.slane %v1076, %v1088
  %v1090 = vlaneseq
  %v1091 = vshrl.u32 %v1090, 7
  %v1092 = vsub.s32 5, %v1091
  %v1093 = vrot.slane %v1076, %v1092
  %1098 = vrot.lane.b32.xlu0 %v641, 34
  %v1099 = vpop.permute.xlu0 %1098
  %1100 = vrot.lane.b32.xlu0 %v649, 34
  %v1101 = vpop.permute.xlu0 %1100
  %1102 = vrot.lane.b32.xlu0 %v648, 34
  %v1103 = vpop.permute.xlu0 %1102
  %1104 = vrot.lane.b32.xlu0 %v657, 34
  %v1105 = vpop.permute.xlu0 %1104
  %1106 = vrot.lane.b32.xlu0 %v665, 34
  %v1107 = vpop.permute.xlu0 %1106
  %1108 = vrot.lane.b32.xlu0 %v664, 34
  %v1109 = vpop.permute.xlu0 %1108
  %vm1110 = vcmask 277504
  %v1111 = vsel %vm1110, %v1099, %v1101
  %v1112 = vsel %vm1110, %v1101, %v1103
  %v1113 = vsel %vm1110, %v1105, %v1107
  %v1114 = vsel %vm1110, %v1107, %v1109
  %v1119 = vmul.f32 %v1081, %v1111
  %v1120 = vmul.f32 %v1085, %v1112
  %v1121 = vmul.f32 %v1089, %v1113
  %v1122 = vmul.f32 %v1093, %v1114
  %v1123 = vadd.f32 %v1015, %v1119
  %v1124 = vadd.f32 %v1016, %v1120
  %v1125 = vadd.f32 %v1017, %v1121
  %v1126 = vadd.f32 %v1018, %v1122
  %s1127 = scalar_lea.vmem %s5, 49
  %v1128 = vld [vmem:[%s1127] ss:$8 sm:$0xf]
  %v1129 = vld [vmem:[%s1127] ss:$8 sm:$0x30]
  %v1130 = vor.u32 %v1128, %v1129
  %v1132 = vlaneseq
  %v1133 = vshrl.u32 %v1132, 7
  %v1134 = vsub.s32 0, %v1133
  %v1135 = vrot.slane %v1130, %v1134
  %v1136 = vlaneseq
  %v1137 = vshrl.u32 %v1136, 7
  %v1138 = vsub.s32 1, %v1137
  %v1139 = vrot.slane %v1130, %v1138
  %v1140 = vlaneseq
  %v1141 = vshrl.u32 %v1140, 7
  %v1142 = vsub.s32 4, %v1141
  %v1143 = vrot.slane %v1130, %v1142
  %v1144 = vlaneseq
  %v1145 = vshrl.u32 %v1144, 7
  %v1146 = vsub.s32 5, %v1145
  %v1147 = vrot.slane %v1130, %v1146
  %1152 = vrot.lane.b32.xlu0 %v641, 33
  %v1153 = vpop.permute.xlu0 %1152
  %1154 = vrot.lane.b32.xlu0 %v649, 33
  %v1155 = vpop.permute.xlu0 %1154
  %1156 = vrot.lane.b32.xlu0 %v648, 33
  %v1157 = vpop.permute.xlu0 %1156
  %1158 = vrot.lane.b32.xlu0 %v657, 33
  %v1159 = vpop.permute.xlu0 %1158
  %1160 = vrot.lane.b32.xlu0 %v665, 33
  %v1161 = vpop.permute.xlu0 %1160
  %1162 = vrot.lane.b32.xlu0 %v664, 33
  %v1163 = vpop.permute.xlu0 %1162
  %vm1164 = vcmask 269312
  %v1165 = vsel %vm1164, %v1153, %v1155
  %v1166 = vsel %vm1164, %v1155, %v1157
  %v1167 = vsel %vm1164, %v1159, %v1161
  %v1168 = vsel %vm1164, %v1161, %v1163
  %v1173 = vmul.f32 %v1135, %v1165
  %v1174 = vmul.f32 %v1139, %v1166
  %v1175 = vmul.f32 %v1143, %v1167
  %v1176 = vmul.f32 %v1147, %v1168
  %v1177 = vadd.f32 %v1069, %v1173
  %v1178 = vadd.f32 %v1070, %v1174
  %v1179 = vadd.f32 %v1071, %v1175
  %v1180 = vadd.f32 %v1072, %v1176
  %s1181 = scalar_lea.vmem %s5, 50
  %v1182 = vld [vmem:[%s1181] ss:$8 sm:$0xf]
  %v1183 = vld [vmem:[%s1181] ss:$8 sm:$0x30]
  %v1184 = vor.u32 %v1182, %v1183
  %v1186 = vlaneseq
  %v1187 = vshrl.u32 %v1186, 7
  %v1188 = vsub.s32 0, %v1187
  %v1189 = vrot.slane %v1184, %v1188
  %v1190 = vlaneseq
  %v1191 = vshrl.u32 %v1190, 7
  %v1192 = vsub.s32 1, %v1191
  %v1193 = vrot.slane %v1184, %v1192
  %v1194 = vlaneseq
  %v1195 = vshrl.u32 %v1194, 7
  %v1196 = vsub.s32 4, %v1195
  %v1197 = vrot.slane %v1184, %v1196
  %v1198 = vlaneseq
  %v1199 = vshrl.u32 %v1198, 7
  %v1200 = vsub.s32 5, %v1199
  %v1201 = vrot.slane %v1184, %v1200
  %1206 = vrot.lane.b32.xlu0 %v641, 32
  %v1207 = vpop.permute.xlu0 %1206
  %1208 = vrot.lane.b32.xlu0 %v649, 32
  %v1209 = vpop.permute.xlu0 %1208
  %1210 = vrot.lane.b32.xlu0 %v648, 32
  %v1211 = vpop.permute.xlu0 %1210
  %1212 = vrot.lane.b32.xlu0 %v657, 32
  %v1213 = vpop.permute.xlu0 %1212
  %1214 = vrot.lane.b32.xlu0 %v665, 32
  %v1215 = vpop.permute.xlu0 %1214
  %1216 = vrot.lane.b32.xlu0 %v664, 32
  %v1217 = vpop.permute.xlu0 %1216
  %vm1218 = vcmask 261120
  %v1219 = vsel %vm1218, %v1207, %v1209
  %v1220 = vsel %vm1218, %v1209, %v1211
  %v1221 = vsel %vm1218, %v1213, %v1215
  %v1222 = vsel %vm1218, %v1215, %v1217
  %v1227 = vmul.f32 %v1189, %v1219
  %v1228 = vmul.f32 %v1193, %v1220
  %v1229 = vmul.f32 %v1197, %v1221
  %v1230 = vmul.f32 %v1201, %v1222
  %v1231 = vadd.f32 %v1123, %v1227
  %v1232 = vadd.f32 %v1124, %v1228
  %v1233 = vadd.f32 %v1125, %v1229
  %v1234 = vadd.f32 %v1126, %v1230
  %s1235 = scalar_lea.vmem %s5, 51
  %v1236 = vld [vmem:[%s1235] ss:$8 sm:$0xf]
  %v1237 = vld [vmem:[%s1235] ss:$8 sm:$0x30]
  %v1238 = vor.u32 %v1236, %v1237
  %v1240 = vlaneseq
  %v1241 = vshrl.u32 %v1240, 7
  %v1242 = vsub.s32 0, %v1241
  %v1243 = vrot.slane %v1238, %v1242
  %v1244 = vlaneseq
  %v1245 = vshrl.u32 %v1244, 7
  %v1246 = vsub.s32 1, %v1245
  %v1247 = vrot.slane %v1238, %v1246
  %v1248 = vlaneseq
  %v1249 = vshrl.u32 %v1248, 7
  %v1250 = vsub.s32 4, %v1249
  %v1251 = vrot.slane %v1238, %v1250
  %v1252 = vlaneseq
  %v1253 = vshrl.u32 %v1252, 7
  %v1254 = vsub.s32 5, %v1253
  %v1255 = vrot.slane %v1238, %v1254
  %1260 = vrot.lane.b32.xlu0 %v641, 31
  %v1261 = vpop.permute.xlu0 %1260
  %1262 = vrot.lane.b32.xlu0 %v649, 31
  %v1263 = vpop.permute.xlu0 %1262
  %1264 = vrot.lane.b32.xlu0 %v648, 31
  %v1265 = vpop.permute.xlu0 %1264
  %1266 = vrot.lane.b32.xlu0 %v657, 31
  %v1267 = vpop.permute.xlu0 %1266
  %1268 = vrot.lane.b32.xlu0 %v665, 31
  %v1269 = vpop.permute.xlu0 %1268
  %1270 = vrot.lane.b32.xlu0 %v664, 31
  %v1271 = vpop.permute.xlu0 %1270
  %vm1272 = vcmask 252928
  %v1273 = vsel %vm1272, %v1261, %v1263
  %v1274 = vsel %vm1272, %v1263, %v1265
  %v1275 = vsel %vm1272, %v1267, %v1269
  %v1276 = vsel %vm1272, %v1269, %v1271
  %v1281 = vmul.f32 %v1243, %v1273
  %v1282 = vmul.f32 %v1247, %v1274
  %v1283 = vmul.f32 %v1251, %v1275
  %v1284 = vmul.f32 %v1255, %v1276
  %v1285 = vadd.f32 %v1177, %v1281
  %v1286 = vadd.f32 %v1178, %v1282
  %v1287 = vadd.f32 %v1179, %v1283
  %v1288 = vadd.f32 %v1180, %v1284
  %s1289 = scalar_lea.vmem %s5, 52
  %v1290 = vld [vmem:[%s1289] ss:$8 sm:$0xf]
  %v1291 = vld [vmem:[%s1289] ss:$8 sm:$0x30]
  %v1292 = vor.u32 %v1290, %v1291
  %v1294 = vlaneseq
  %v1295 = vshrl.u32 %v1294, 7
  %v1296 = vsub.s32 0, %v1295
  %v1297 = vrot.slane %v1292, %v1296
  %v1298 = vlaneseq
  %v1299 = vshrl.u32 %v1298, 7
  %v1300 = vsub.s32 1, %v1299
  %v1301 = vrot.slane %v1292, %v1300
  %v1302 = vlaneseq
  %v1303 = vshrl.u32 %v1302, 7
  %v1304 = vsub.s32 4, %v1303
  %v1305 = vrot.slane %v1292, %v1304
  %v1306 = vlaneseq
  %v1307 = vshrl.u32 %v1306, 7
  %v1308 = vsub.s32 5, %v1307
  %v1309 = vrot.slane %v1292, %v1308
  %1314 = vrot.lane.b32.xlu0 %v641, 30
  %v1315 = vpop.permute.xlu0 %1314
  %1316 = vrot.lane.b32.xlu0 %v649, 30
  %v1317 = vpop.permute.xlu0 %1316
  %1318 = vrot.lane.b32.xlu0 %v648, 30
  %v1319 = vpop.permute.xlu0 %1318
  %1320 = vrot.lane.b32.xlu0 %v657, 30
  %v1321 = vpop.permute.xlu0 %1320
  %1322 = vrot.lane.b32.xlu0 %v665, 30
  %v1323 = vpop.permute.xlu0 %1322
  %1324 = vrot.lane.b32.xlu0 %v664, 30
  %v1325 = vpop.permute.xlu0 %1324
  %vm1326 = vcmask 244736
  %v1327 = vsel %vm1326, %v1315, %v1317
  %v1328 = vsel %vm1326, %v1317, %v1319
  %v1329 = vsel %vm1326, %v1321, %v1323
  %v1330 = vsel %vm1326, %v1323, %v1325
  %v1335 = vmul.f32 %v1297, %v1327
  %v1336 = vmul.f32 %v1301, %v1328
  %v1337 = vmul.f32 %v1305, %v1329
  %v1338 = vmul.f32 %v1309, %v1330
  %v1339 = vadd.f32 %v1231, %v1335
  %v1340 = vadd.f32 %v1232, %v1336
  %v1341 = vadd.f32 %v1233, %v1337
  %v1342 = vadd.f32 %v1234, %v1338
  %s1343 = scalar_lea.vmem %s5, 53
  %v1344 = vld [vmem:[%s1343] ss:$8 sm:$0xf]
  %v1345 = vld [vmem:[%s1343] ss:$8 sm:$0x30]
  %v1346 = vor.u32 %v1344, %v1345
  %v1348 = vlaneseq
  %v1349 = vshrl.u32 %v1348, 7
  %v1350 = vsub.s32 0, %v1349
  %v1351 = vrot.slane %v1346, %v1350
  %v1352 = vlaneseq
  %v1353 = vshrl.u32 %v1352, 7
  %v1354 = vsub.s32 1, %v1353
  %v1355 = vrot.slane %v1346, %v1354
  %v1356 = vlaneseq
  %v1357 = vshrl.u32 %v1356, 7
  %v1358 = vsub.s32 4, %v1357
  %v1359 = vrot.slane %v1346, %v1358
  %v1360 = vlaneseq
  %v1361 = vshrl.u32 %v1360, 7
  %v1362 = vsub.s32 5, %v1361
  %v1363 = vrot.slane %v1346, %v1362
  %1368 = vrot.lane.b32.xlu0 %v641, 29
  %v1369 = vpop.permute.xlu0 %1368
  %1370 = vrot.lane.b32.xlu0 %v649, 29
  %v1371 = vpop.permute.xlu0 %1370
  %1372 = vrot.lane.b32.xlu0 %v648, 29
  %v1373 = vpop.permute.xlu0 %1372
  %1374 = vrot.lane.b32.xlu0 %v657, 29
  %v1375 = vpop.permute.xlu0 %1374
  %1376 = vrot.lane.b32.xlu0 %v665, 29
  %v1377 = vpop.permute.xlu0 %1376
  %1378 = vrot.lane.b32.xlu0 %v664, 29
  %v1379 = vpop.permute.xlu0 %1378
  %vm1380 = vcmask 236544
  %v1381 = vsel %vm1380, %v1369, %v1371
  %v1382 = vsel %vm1380, %v1371, %v1373
  %v1383 = vsel %vm1380, %v1375, %v1377
  %v1384 = vsel %vm1380, %v1377, %v1379
  %v1389 = vmul.f32 %v1351, %v1381
  %v1390 = vmul.f32 %v1355, %v1382
  %v1391 = vmul.f32 %v1359, %v1383
  %v1392 = vmul.f32 %v1363, %v1384
  %v1393 = vadd.f32 %v1285, %v1389
  %v1394 = vadd.f32 %v1286, %v1390
  %v1395 = vadd.f32 %v1287, %v1391
  %v1396 = vadd.f32 %v1288, %v1392
  %s1397 = scalar_lea.vmem %s5, 54
  %v1398 = vld [vmem:[%s1397] ss:$8 sm:$0xf]
  %v1399 = vld [vmem:[%s1397] ss:$8 sm:$0x30]
  %v1400 = vor.u32 %v1398, %v1399
  %v1402 = vlaneseq
  %v1403 = vshrl.u32 %v1402, 7
  %v1404 = vsub.s32 0, %v1403
  %v1405 = vrot.slane %v1400, %v1404
  %v1406 = vlaneseq
  %v1407 = vshrl.u32 %v1406, 7
  %v1408 = vsub.s32 1, %v1407
  %v1409 = vrot.slane %v1400, %v1408
  %v1410 = vlaneseq
  %v1411 = vshrl.u32 %v1410, 7
  %v1412 = vsub.s32 4, %v1411
  %v1413 = vrot.slane %v1400, %v1412
  %v1414 = vlaneseq
  %v1415 = vshrl.u32 %v1414, 7
  %v1416 = vsub.s32 5, %v1415
  %v1417 = vrot.slane %v1400, %v1416
  %1422 = vrot.lane.b32.xlu0 %v641, 19
  %v1423 = vpop.permute.xlu0 %1422
  %1424 = vrot.lane.b32.xlu0 %v649, 19
  %v1425 = vpop.permute.xlu0 %1424
  %1426 = vrot.lane.b32.xlu0 %v648, 19
  %v1427 = vpop.permute.xlu0 %1426
  %1428 = vrot.lane.b32.xlu0 %v657, 19
  %v1429 = vpop.permute.xlu0 %1428
  %1430 = vrot.lane.b32.xlu0 %v665, 19
  %v1431 = vpop.permute.xlu0 %1430
  %1432 = vrot.lane.b32.xlu0 %v664, 19
  %v1433 = vpop.permute.xlu0 %1432
  %vm1434 = vcmask 154624
  %v1435 = vsel %vm1434, %v1423, %v1425
  %v1436 = vsel %vm1434, %v1425, %v1427
  %v1437 = vsel %vm1434, %v1429, %v1431
  %v1438 = vsel %vm1434, %v1431, %v1433
  %v1443 = vmul.f32 %v1405, %v1435
  %v1444 = vmul.f32 %v1409, %v1436
  %v1445 = vmul.f32 %v1413, %v1437
  %v1446 = vmul.f32 %v1417, %v1438
  %v1447 = vadd.f32 %v1339, %v1443
  %v1448 = vadd.f32 %v1340, %v1444
  %v1449 = vadd.f32 %v1341, %v1445
  %v1450 = vadd.f32 %v1342, %v1446
  %s1451 = scalar_lea.vmem %s5, 55
  %v1452 = vld [vmem:[%s1451] ss:$8 sm:$0xf]
  %v1453 = vld [vmem:[%s1451] ss:$8 sm:$0x30]
  %v1454 = vor.u32 %v1452, %v1453
  %v1456 = vlaneseq
  %v1457 = vshrl.u32 %v1456, 7
  %v1458 = vsub.s32 0, %v1457
  %v1459 = vrot.slane %v1454, %v1458
  %v1460 = vlaneseq
  %v1461 = vshrl.u32 %v1460, 7
  %v1462 = vsub.s32 1, %v1461
  %v1463 = vrot.slane %v1454, %v1462
  %v1464 = vlaneseq
  %v1465 = vshrl.u32 %v1464, 7
  %v1466 = vsub.s32 4, %v1465
  %v1467 = vrot.slane %v1454, %v1466
  %v1468 = vlaneseq
  %v1469 = vshrl.u32 %v1468, 7
  %v1470 = vsub.s32 5, %v1469
  %v1471 = vrot.slane %v1454, %v1470
  %1476 = vrot.lane.b32.xlu0 %v641, 18
  %v1477 = vpop.permute.xlu0 %1476
  %1478 = vrot.lane.b32.xlu0 %v649, 18
  %v1479 = vpop.permute.xlu0 %1478
  %1480 = vrot.lane.b32.xlu0 %v648, 18
  %v1481 = vpop.permute.xlu0 %1480
  %1482 = vrot.lane.b32.xlu0 %v657, 18
  %v1483 = vpop.permute.xlu0 %1482
  %1484 = vrot.lane.b32.xlu0 %v665, 18
  %v1485 = vpop.permute.xlu0 %1484
  %1486 = vrot.lane.b32.xlu0 %v664, 18
  %v1487 = vpop.permute.xlu0 %1486
  %vm1488 = vcmask 146432
  %v1489 = vsel %vm1488, %v1477, %v1479
  %v1490 = vsel %vm1488, %v1479, %v1481
  %v1491 = vsel %vm1488, %v1483, %v1485
  %v1492 = vsel %vm1488, %v1485, %v1487
  %v1497 = vmul.f32 %v1459, %v1489
  %v1498 = vmul.f32 %v1463, %v1490
  %v1499 = vmul.f32 %v1467, %v1491
  %v1500 = vmul.f32 %v1471, %v1492
  %v1501 = vadd.f32 %v1393, %v1497
  %v1502 = vadd.f32 %v1394, %v1498
  %v1503 = vadd.f32 %v1395, %v1499
  %v1504 = vadd.f32 %v1396, %v1500
  %s1505 = scalar_lea.vmem %s5, 96
  %v1506 = vld [vmem:[%s1505] ss:$8 sm:$0xf]
  %v1507 = vld [vmem:[%s1505] ss:$8 sm:$0x30]
  %v1508 = vor.u32 %v1506, %v1507
  %v1510 = vlaneseq
  %v1511 = vshrl.u32 %v1510, 7
  %v1512 = vsub.s32 0, %v1511
  %v1513 = vrot.slane %v1508, %v1512
  %v1514 = vlaneseq
  %v1515 = vshrl.u32 %v1514, 7
  %v1516 = vsub.s32 1, %v1515
  %v1517 = vrot.slane %v1508, %v1516
  %v1518 = vlaneseq
  %v1519 = vshrl.u32 %v1518, 7
  %v1520 = vsub.s32 4, %v1519
  %v1521 = vrot.slane %v1508, %v1520
  %v1522 = vlaneseq
  %v1523 = vshrl.u32 %v1522, 7
  %v1524 = vsub.s32 5, %v1523
  %v1525 = vrot.slane %v1508, %v1524
  %1530 = vrot.lane.b32.xlu0 %v641, 17
  %v1531 = vpop.permute.xlu0 %1530
  %1532 = vrot.lane.b32.xlu0 %v649, 17
  %v1533 = vpop.permute.xlu0 %1532
  %1534 = vrot.lane.b32.xlu0 %v648, 17
  %v1535 = vpop.permute.xlu0 %1534
  %1536 = vrot.lane.b32.xlu0 %v657, 17
  %v1537 = vpop.permute.xlu0 %1536
  %1538 = vrot.lane.b32.xlu0 %v665, 17
  %v1539 = vpop.permute.xlu0 %1538
  %1540 = vrot.lane.b32.xlu0 %v664, 17
  %v1541 = vpop.permute.xlu0 %1540
  %vm1542 = vcmask 138240
  %v1543 = vsel %vm1542, %v1531, %v1533
  %v1544 = vsel %vm1542, %v1533, %v1535
  %v1545 = vsel %vm1542, %v1537, %v1539
  %v1546 = vsel %vm1542, %v1539, %v1541
  %v1551 = vmul.f32 %v1513, %v1543
  %v1552 = vmul.f32 %v1517, %v1544
  %v1553 = vmul.f32 %v1521, %v1545
  %v1554 = vmul.f32 %v1525, %v1546
  %v1555 = vadd.f32 %v1447, %v1551
  %v1556 = vadd.f32 %v1448, %v1552
  %v1557 = vadd.f32 %v1449, %v1553
  %v1558 = vadd.f32 %v1450, %v1554
  %s1559 = scalar_lea.vmem %s5, 97
  %v1560 = vld [vmem:[%s1559] ss:$8 sm:$0xf]
  %v1561 = vld [vmem:[%s1559] ss:$8 sm:$0x30]
  %v1562 = vor.u32 %v1560, %v1561
  %v1564 = vlaneseq
  %v1565 = vshrl.u32 %v1564, 7
  %v1566 = vsub.s32 0, %v1565
  %v1567 = vrot.slane %v1562, %v1566
  %v1568 = vlaneseq
  %v1569 = vshrl.u32 %v1568, 7
  %v1570 = vsub.s32 1, %v1569
  %v1571 = vrot.slane %v1562, %v1570
  %v1572 = vlaneseq
  %v1573 = vshrl.u32 %v1572, 7
  %v1574 = vsub.s32 4, %v1573
  %v1575 = vrot.slane %v1562, %v1574
  %v1576 = vlaneseq
  %v1577 = vshrl.u32 %v1576, 7
  %v1578 = vsub.s32 5, %v1577
  %v1579 = vrot.slane %v1562, %v1578
  %1584 = vrot.lane.b32.xlu0 %v641, 16
  %v1585 = vpop.permute.xlu0 %1584
  %1586 = vrot.lane.b32.xlu0 %v649, 16
  %v1587 = vpop.permute.xlu0 %1586
  %1588 = vrot.lane.b32.xlu0 %v648, 16
  %v1589 = vpop.permute.xlu0 %1588
  %1590 = vrot.lane.b32.xlu0 %v657, 16
  %v1591 = vpop.permute.xlu0 %1590
  %1592 = vrot.lane.b32.xlu0 %v665, 16
  %v1593 = vpop.permute.xlu0 %1592
  %1594 = vrot.lane.b32.xlu0 %v664, 16
  %v1595 = vpop.permute.xlu0 %1594
  %v1596 = vsel %vm67, %v1585, %v1587
  %v1597 = vsel %vm67, %v1587, %v1589
  %v1598 = vsel %vm67, %v1591, %v1593
  %v1599 = vsel %vm67, %v1593, %v1595
  %v1604 = vmul.f32 %v1567, %v1596
  %v1605 = vmul.f32 %v1571, %v1597
  %v1606 = vmul.f32 %v1575, %v1598
  %v1607 = vmul.f32 %v1579, %v1599
  %v1608 = vadd.f32 %v1501, %v1604
  %v1609 = vadd.f32 %v1502, %v1605
  %v1610 = vadd.f32 %v1503, %v1606
  %v1611 = vadd.f32 %v1504, %v1607
  %s1612 = scalar_lea.vmem %s5, 98
  %v1613 = vld [vmem:[%s1612] ss:$8 sm:$0xf]
  %v1614 = vld [vmem:[%s1612] ss:$8 sm:$0x30]
  %v1615 = vor.u32 %v1613, %v1614
  %v1617 = vlaneseq
  %v1618 = vshrl.u32 %v1617, 7
  %v1619 = vsub.s32 0, %v1618
  %v1620 = vrot.slane %v1615, %v1619
  %v1621 = vlaneseq
  %v1622 = vshrl.u32 %v1621, 7
  %v1623 = vsub.s32 1, %v1622
  %v1624 = vrot.slane %v1615, %v1623
  %v1625 = vlaneseq
  %v1626 = vshrl.u32 %v1625, 7
  %v1627 = vsub.s32 4, %v1626
  %v1628 = vrot.slane %v1615, %v1627
  %v1629 = vlaneseq
  %v1630 = vshrl.u32 %v1629, 7
  %v1631 = vsub.s32 5, %v1630
  %v1632 = vrot.slane %v1615, %v1631
  %1637 = vrot.lane.b32.xlu0 %v641, 15
  %v1638 = vpop.permute.xlu0 %1637
  %1639 = vrot.lane.b32.xlu0 %v649, 15
  %v1640 = vpop.permute.xlu0 %1639
  %1641 = vrot.lane.b32.xlu0 %v648, 15
  %v1642 = vpop.permute.xlu0 %1641
  %1643 = vrot.lane.b32.xlu0 %v657, 15
  %v1644 = vpop.permute.xlu0 %1643
  %1645 = vrot.lane.b32.xlu0 %v665, 15
  %v1646 = vpop.permute.xlu0 %1645
  %1647 = vrot.lane.b32.xlu0 %v664, 15
  %v1648 = vpop.permute.xlu0 %1647
  %vm1649 = vcmask 121856
  %v1650 = vsel %vm1649, %v1638, %v1640
  %v1651 = vsel %vm1649, %v1640, %v1642
  %v1652 = vsel %vm1649, %v1644, %v1646
  %v1653 = vsel %vm1649, %v1646, %v1648
  %v1658 = vmul.f32 %v1620, %v1650
  %v1659 = vmul.f32 %v1624, %v1651
  %v1660 = vmul.f32 %v1628, %v1652
  %v1661 = vmul.f32 %v1632, %v1653
  %v1662 = vadd.f32 %v1555, %v1658
  %v1663 = vadd.f32 %v1556, %v1659
  %v1664 = vadd.f32 %v1557, %v1660
  %v1665 = vadd.f32 %v1558, %v1661
  %s1666 = scalar_lea.vmem %s5, 99
  %v1667 = vld [vmem:[%s1666] ss:$8 sm:$0xf]
  %v1668 = vld [vmem:[%s1666] ss:$8 sm:$0x30]
  %v1669 = vor.u32 %v1667, %v1668
  %v1671 = vlaneseq
  %v1672 = vshrl.u32 %v1671, 7
  %v1673 = vsub.s32 0, %v1672
  %v1674 = vrot.slane %v1669, %v1673
  %v1675 = vlaneseq
  %v1676 = vshrl.u32 %v1675, 7
  %v1677 = vsub.s32 1, %v1676
  %v1678 = vrot.slane %v1669, %v1677
  %v1679 = vlaneseq
  %v1680 = vshrl.u32 %v1679, 7
  %v1681 = vsub.s32 4, %v1680
  %v1682 = vrot.slane %v1669, %v1681
  %v1683 = vlaneseq
  %v1684 = vshrl.u32 %v1683, 7
  %v1685 = vsub.s32 5, %v1684
  %v1686 = vrot.slane %v1669, %v1685
  %1691 = vrot.lane.b32.xlu0 %v641, 14
  %v1692 = vpop.permute.xlu0 %1691
  %1693 = vrot.lane.b32.xlu0 %v649, 14
  %v1694 = vpop.permute.xlu0 %1693
  %1695 = vrot.lane.b32.xlu0 %v648, 14
  %v1696 = vpop.permute.xlu0 %1695
  %1697 = vrot.lane.b32.xlu0 %v657, 14
  %v1698 = vpop.permute.xlu0 %1697
  %1699 = vrot.lane.b32.xlu0 %v665, 14
  %v1700 = vpop.permute.xlu0 %1699
  %1701 = vrot.lane.b32.xlu0 %v664, 14
  %v1702 = vpop.permute.xlu0 %1701
  %vm1703 = vcmask 113664
  %v1704 = vsel %vm1703, %v1692, %v1694
  %v1705 = vsel %vm1703, %v1694, %v1696
  %v1706 = vsel %vm1703, %v1698, %v1700
  %v1707 = vsel %vm1703, %v1700, %v1702
  %v1712 = vmul.f32 %v1674, %v1704
  %v1713 = vmul.f32 %v1678, %v1705
  %v1714 = vmul.f32 %v1682, %v1706
  %v1715 = vmul.f32 %v1686, %v1707
  %v1716 = vadd.f32 %v1608, %v1712
  %v1717 = vadd.f32 %v1609, %v1713
  %v1718 = vadd.f32 %v1610, %v1714
  %v1719 = vadd.f32 %v1611, %v1715
  %s1720 = scalar_lea.vmem %s5, 100
  %v1721 = vld [vmem:[%s1720] ss:$8 sm:$0xf]
  %v1722 = vld [vmem:[%s1720] ss:$8 sm:$0x30]
  %v1723 = vor.u32 %v1721, %v1722
  %v1725 = vlaneseq
  %v1726 = vshrl.u32 %v1725, 7
  %v1727 = vsub.s32 0, %v1726
  %v1728 = vrot.slane %v1723, %v1727
  %v1729 = vlaneseq
  %v1730 = vshrl.u32 %v1729, 7
  %v1731 = vsub.s32 1, %v1730
  %v1732 = vrot.slane %v1723, %v1731
  %v1733 = vlaneseq
  %v1734 = vshrl.u32 %v1733, 7
  %v1735 = vsub.s32 4, %v1734
  %v1736 = vrot.slane %v1723, %v1735
  %v1737 = vlaneseq
  %v1738 = vshrl.u32 %v1737, 7
  %v1739 = vsub.s32 5, %v1738
  %v1740 = vrot.slane %v1723, %v1739
  %1745 = vrot.lane.b32.xlu0 %v641, 13
  %v1746 = vpop.permute.xlu0 %1745
  %1747 = vrot.lane.b32.xlu0 %v649, 13
  %v1748 = vpop.permute.xlu0 %1747
  %1749 = vrot.lane.b32.xlu0 %v648, 13
  %v1750 = vpop.permute.xlu0 %1749
  %1751 = vrot.lane.b32.xlu0 %v657, 13
  %v1752 = vpop.permute.xlu0 %1751
  %1753 = vrot.lane.b32.xlu0 %v665, 13
  %v1754 = vpop.permute.xlu0 %1753
  %1755 = vrot.lane.b32.xlu0 %v664, 13
  %v1756 = vpop.permute.xlu0 %1755
  %vm1757 = vcmask 105472
  %v1758 = vsel %vm1757, %v1746, %v1748
  %v1759 = vsel %vm1757, %v1748, %v1750
  %v1760 = vsel %vm1757, %v1752, %v1754
  %v1761 = vsel %vm1757, %v1754, %v1756
  %v1766 = vmul.f32 %v1728, %v1758
  %v1767 = vmul.f32 %v1732, %v1759
  %v1768 = vmul.f32 %v1736, %v1760
  %v1769 = vmul.f32 %v1740, %v1761
  %v1770 = vadd.f32 %v1662, %v1766
  %v1771 = vadd.f32 %v1663, %v1767
  %v1772 = vadd.f32 %v1664, %v1768
  %v1773 = vadd.f32 %v1665, %v1769
  %s1774 = scalar_lea.vmem %s5, 101
  %v1775 = vld [vmem:[%s1774] ss:$8 sm:$0xf]
  %v1776 = vld [vmem:[%s1774] ss:$8 sm:$0x30]
  %v1777 = vor.u32 %v1775, %v1776
  %v1779 = vlaneseq
  %v1780 = vshrl.u32 %v1779, 7
  %v1781 = vsub.s32 0, %v1780
  %v1782 = vrot.slane %v1777, %v1781
  %v1783 = vlaneseq
  %v1784 = vshrl.u32 %v1783, 7
  %v1785 = vsub.s32 1, %v1784
  %v1786 = vrot.slane %v1777, %v1785
  %v1787 = vlaneseq
  %v1788 = vshrl.u32 %v1787, 7
  %v1789 = vsub.s32 4, %v1788
  %v1790 = vrot.slane %v1777, %v1789
  %v1791 = vlaneseq
  %v1792 = vshrl.u32 %v1791, 7
  %v1793 = vsub.s32 5, %v1792
  %v1794 = vrot.slane %v1777, %v1793
  %1799 = vrot.lane.b32.xlu0 %v641, 3
  %v1800 = vpop.permute.xlu0 %1799
  %1801 = vrot.lane.b32.xlu0 %v649, 3
  %v1802 = vpop.permute.xlu0 %1801
  %1803 = vrot.lane.b32.xlu0 %v648, 3
  %v1804 = vpop.permute.xlu0 %1803
  %1805 = vrot.lane.b32.xlu0 %v657, 3
  %v1806 = vpop.permute.xlu0 %1805
  %1807 = vrot.lane.b32.xlu0 %v665, 3
  %v1808 = vpop.permute.xlu0 %1807
  %1809 = vrot.lane.b32.xlu0 %v664, 3
  %v1810 = vpop.permute.xlu0 %1809
  %vm1811 = vcmask 23552
  %v1812 = vsel %vm1811, %v1800, %v1802
  %v1813 = vsel %vm1811, %v1802, %v1804
  %v1814 = vsel %vm1811, %v1806, %v1808
  %v1815 = vsel %vm1811, %v1808, %v1810
  %v1820 = vmul.f32 %v1782, %v1812
  %v1821 = vmul.f32 %v1786, %v1813
  %v1822 = vmul.f32 %v1790, %v1814
  %v1823 = vmul.f32 %v1794, %v1815
  %v1824 = vadd.f32 %v1716, %v1820
  %v1825 = vadd.f32 %v1717, %v1821
  %v1826 = vadd.f32 %v1718, %v1822
  %v1827 = vadd.f32 %v1719, %v1823
  %s1828 = scalar_lea.vmem %s5, 102
  %v1829 = vld [vmem:[%s1828] ss:$8 sm:$0xf]
  %v1830 = vld [vmem:[%s1828] ss:$8 sm:$0x30]
  %v1831 = vor.u32 %v1829, %v1830
  %v1833 = vlaneseq
  %v1834 = vshrl.u32 %v1833, 7
  %v1835 = vsub.s32 0, %v1834
  %v1836 = vrot.slane %v1831, %v1835
  %v1837 = vlaneseq
  %v1838 = vshrl.u32 %v1837, 7
  %v1839 = vsub.s32 1, %v1838
  %v1840 = vrot.slane %v1831, %v1839
  %v1841 = vlaneseq
  %v1842 = vshrl.u32 %v1841, 7
  %v1843 = vsub.s32 4, %v1842
  %v1844 = vrot.slane %v1831, %v1843
  %v1845 = vlaneseq
  %v1846 = vshrl.u32 %v1845, 7
  %v1847 = vsub.s32 5, %v1846
  %v1848 = vrot.slane %v1831, %v1847
  %1853 = vrot.lane.b32.xlu0 %v641, 2
  %v1854 = vpop.permute.xlu0 %1853
  %1855 = vrot.lane.b32.xlu0 %v649, 2
  %v1856 = vpop.permute.xlu0 %1855
  %1857 = vrot.lane.b32.xlu0 %v648, 2
  %v1858 = vpop.permute.xlu0 %1857
  %1859 = vrot.lane.b32.xlu0 %v657, 2
  %v1860 = vpop.permute.xlu0 %1859
  %1861 = vrot.lane.b32.xlu0 %v665, 2
  %v1862 = vpop.permute.xlu0 %1861
  %1863 = vrot.lane.b32.xlu0 %v664, 2
  %v1864 = vpop.permute.xlu0 %1863
  %v1865 = vsel %vm152, %v1854, %v1856
  %v1866 = vsel %vm152, %v1856, %v1858
  %v1867 = vsel %vm152, %v1860, %v1862
  %v1868 = vsel %vm152, %v1862, %v1864
  %v1873 = vmul.f32 %v1836, %v1865
  %v1874 = vmul.f32 %v1840, %v1866
  %v1875 = vmul.f32 %v1844, %v1867
  %v1876 = vmul.f32 %v1848, %v1868
  %v1877 = vadd.f32 %v1770, %v1873
  %v1878 = vadd.f32 %v1771, %v1874
  %v1879 = vadd.f32 %v1772, %v1875
  %v1880 = vadd.f32 %v1773, %v1876
  %s1881 = scalar_lea.vmem %s5, 103
  %v1882 = vld [vmem:[%s1881] ss:$8 sm:$0xf]
  %v1883 = vld [vmem:[%s1881] ss:$8 sm:$0x30]
  %v1884 = vor.u32 %v1882, %v1883
  %v1886 = vlaneseq
  %v1887 = vshrl.u32 %v1886, 7
  %v1888 = vsub.s32 0, %v1887
  %v1889 = vrot.slane %v1884, %v1888
  %v1890 = vlaneseq
  %v1891 = vshrl.u32 %v1890, 7
  %v1892 = vsub.s32 1, %v1891
  %v1893 = vrot.slane %v1884, %v1892
  %v1894 = vlaneseq
  %v1895 = vshrl.u32 %v1894, 7
  %v1896 = vsub.s32 4, %v1895
  %v1897 = vrot.slane %v1884, %v1896
  %v1898 = vlaneseq
  %v1899 = vshrl.u32 %v1898, 7
  %v1900 = vsub.s32 5, %v1899
  %v1901 = vrot.slane %v1884, %v1900
  %1906 = vrot.lane.b32.xlu0 %v641, 1
  %v1907 = vpop.permute.xlu0 %1906
  %1908 = vrot.lane.b32.xlu0 %v649, 1
  %v1909 = vpop.permute.xlu0 %1908
  %1910 = vrot.lane.b32.xlu0 %v648, 1
  %v1911 = vpop.permute.xlu0 %1910
  %1912 = vrot.lane.b32.xlu0 %v657, 1
  %v1913 = vpop.permute.xlu0 %1912
  %1914 = vrot.lane.b32.xlu0 %v665, 1
  %v1915 = vpop.permute.xlu0 %1914
  %1916 = vrot.lane.b32.xlu0 %v664, 1
  %v1917 = vpop.permute.xlu0 %1916
  %vm1918 = vcmask 7168
  %v1919 = vsel %vm1918, %v1907, %v1909
  %v1920 = vsel %vm1918, %v1909, %v1911
  %v1921 = vsel %vm1918, %v1913, %v1915
  %v1922 = vsel %vm1918, %v1915, %v1917
  %v1927 = vmul.f32 %v1889, %v1919
  %v1928 = vmul.f32 %v1893, %v1920
  %v1929 = vmul.f32 %v1897, %v1921
  %v1930 = vmul.f32 %v1901, %v1922
  %v1931 = vadd.f32 %v1824, %v1927
  %v1932 = vadd.f32 %v1825, %v1928
  %v1933 = vadd.f32 %v1826, %v1929
  %v1934 = vadd.f32 %v1827, %v1930
  %s1935 = scalar_lea.vmem %s5, 144
  %v1936 = vld [vmem:[%s1935] ss:$8 sm:$0xf]
  %v1937 = vld [vmem:[%s1935] ss:$8 sm:$0x30]
  %v1938 = vor.u32 %v1936, %v1937
  %v1939 = vld [vmem:[#allocation3 + $0x2] sm:$0xff]
  %v1940 = vld [vmem:[#allocation3 + $0xa] sm:$0xf]
  %v1942 = vlaneseq
  %v1943 = vshrl.u32 %v1942, 7
  %v1944 = vsub.s32 0, %v1943
  %v1945 = vrot.slane %v1938, %v1944
  %v1946 = vlaneseq
  %v1947 = vshrl.u32 %v1946, 7
  %v1948 = vsub.s32 1, %v1947
  %v1949 = vrot.slane %v1938, %v1948
  %v1950 = vlaneseq
  %v1951 = vshrl.u32 %v1950, 7
  %v1952 = vsub.s32 4, %v1951
  %v1953 = vrot.slane %v1938, %v1952
  %v1954 = vlaneseq
  %v1955 = vshrl.u32 %v1954, 7
  %v1956 = vsub.s32 5, %v1955
  %v1957 = vrot.slane %v1938, %v1956
  %v1965 = vunpack.c.l.s4 1983009808
  %v1966 = vunpack.c.0.s8 %v1965
  %v1967 = vlaneseq
  %v1968 = vshrl.u32 %v1967, 7
  %v1969 = vsub.s32 %v1966, %v1968
  %v1970 = vrot.slane %v1939, %v1969
  %v1971 = vcombine.high %v1970, %v1970
  %v1973 = vunpack.c.l.s4 1983009808
  %v1974 = vunpack.c.0.s8 %v1973
  %v1975 = vlaneseq
  %v1976 = vshrl.u32 %v1975, 7
  %v1977 = vsub.s32 %v1974, %v1976
  %v1978 = vrot.slane %v1940, %v1977
  %v1979 = vcombine.high %v1978, %v1978
  %v1984 = vmul.f32 %v1945, %v1970
  %v1985 = vmul.f32 %v1949, %v1971
  %v1986 = vmul.f32 %v1953, %v1978
  %v1987 = vmul.f32 %v1957, %v1979
  %v1988 = vadd.f32 %v1877, %v1984
  %v1989 = vadd.f32 %v1878, %v1985
  %v1990 = vadd.f32 %v1879, %v1986
  %v1991 = vadd.f32 %v1880, %v1987
  %s1992 = scalar_lea.vmem %s5, 145
  %v1993 = vld [vmem:[%s1992] ss:$8 sm:$0xf]
  %v1994 = vld [vmem:[%s1992] ss:$8 sm:$0x30]
  %v1995 = vor.u32 %v1993, %v1994
  %v1996 = vld [vmem:[#allocation3 + $0x2] sm:$0xff]
  %v1997 = vld [vmem:[#allocation3 + $0xa] sm:$0x3f]
  %v1999 = vlaneseq
  %v2000 = vshrl.u32 %v1999, 7
  %v2001 = vsub.s32 0, %v2000
  %v2002 = vrot.slane %v1995, %v2001
  %v2003 = vlaneseq
  %v2004 = vshrl.u32 %v2003, 7
  %v2005 = vsub.s32 1, %v2004
  %v2006 = vrot.slane %v1995, %v2005
  %v2007 = vlaneseq
  %v2008 = vshrl.u32 %v2007, 7
  %v2009 = vsub.s32 4, %v2008
  %v2010 = vrot.slane %v1995, %v2009
  %v2011 = vlaneseq
  %v2012 = vshrl.u32 %v2011, 7
  %v2013 = vsub.s32 5, %v2012
  %v2014 = vrot.slane %v1995, %v2013
  %v2021 = vcombine.high %v1996, %v1996
  %v2023 = vunpack.c.l.s4 1983009808
  %v2024 = vunpack.c.0.s8 %v2023
  %v2025 = vlaneseq
  %v2026 = vshrl.u32 %v2025, 7
  %v2027 = vsub.s32 %v2024, %v2026
  %v2028 = vrot.slane %v1996, %v2027
  %v2030 = vunpack.c.l.s4 1983009808
  %v2031 = vunpack.c.0.s8 %v2030
  %v2032 = vlaneseq
  %v2033 = vshrl.u32 %v2032, 7
  %v2034 = vsub.s32 %v2031, %v2033
  %v2035 = vrot.slane %v2021, %v2034
  %v2036 = vcombine.high %v2028, %v2028
  %v2037 = vcombine.high %v1997, %v1997
  %v2039 = vunpack.c.l.s4 1983009808
  %v2040 = vunpack.c.0.s8 %v2039
  %v2041 = vlaneseq
  %v2042 = vshrl.u32 %v2041, 7
  %v2043 = vsub.s32 %v2040, %v2042
  %v2044 = vrot.slane %v1997, %v2043
  %v2046 = vunpack.c.l.s4 1983009808
  %v2047 = vunpack.c.0.s8 %v2046
  %v2048 = vlaneseq
  %v2049 = vshrl.u32 %v2048, 7
  %v2050 = vsub.s32 %v2047, %v2049
  %v2051 = vrot.slane %v2037, %v2050
  %v2052 = vcombine.high %v2044, %v2044
  %2053 = vrot.lane.b32.xlu0 %v2028, 127
  %v2054 = vpop.permute.xlu0 %2053
  %2055 = vrot.lane.b32.xlu0 %v2036, 127
  %v2056 = vpop.permute.xlu0 %2055
  %2057 = vrot.lane.b32.xlu0 %v2035, 127
  %v2058 = vpop.permute.xlu0 %2057
  %2059 = vrot.lane.b32.xlu0 %v2044, 127
  %v2060 = vpop.permute.xlu0 %2059
  %2061 = vrot.lane.b32.xlu0 %v2052, 127
  %v2062 = vpop.permute.xlu0 %2061
  %2063 = vrot.lane.b32.xlu0 %v2051, 127
  %v2064 = vpop.permute.xlu0 %2063
  %vm2065 = vcmask 1039360
  %v2066 = vsel %vm2065, %v2054, %v2056
  %v2067 = vsel %vm2065, %v2056, %v2058
  %v2068 = vsel %vm2065, %v2060, %v2062
  %v2069 = vsel %vm2065, %v2062, %v2064
  %v2074 = vmul.f32 %v2002, %v2066
  %v2075 = vmul.f32 %v2006, %v2067
  %v2076 = vmul.f32 %v2010, %v2068
  %v2077 = vmul.f32 %v2014, %v2069
  %v2078 = vadd.f32 %v1931, %v2074
  %v2079 = vadd.f32 %v1932, %v2075
  %v2080 = vadd.f32 %v1933, %v2076
  %v2081 = vadd.f32 %v1934, %v2077
  %s2082 = scalar_lea.vmem %s5, 146
  %v2083 = vld [vmem:[%s2082] ss:$8 sm:$0xf]
  %v2084 = vld [vmem:[%s2082] ss:$8 sm:$0x30]
  %v2085 = vor.u32 %v2083, %v2084
  %v2087 = vlaneseq
  %v2088 = vshrl.u32 %v2087, 7
  %v2089 = vsub.s32 0, %v2088
  %v2090 = vrot.slane %v2085, %v2089
  %v2091 = vlaneseq
  %v2092 = vshrl.u32 %v2091, 7
  %v2093 = vsub.s32 1, %v2092
  %v2094 = vrot.slane %v2085, %v2093
  %v2095 = vlaneseq
  %v2096 = vshrl.u32 %v2095, 7
  %v2097 = vsub.s32 4, %v2096
  %v2098 = vrot.slane %v2085, %v2097
  %v2099 = vlaneseq
  %v2100 = vshrl.u32 %v2099, 7
  %v2101 = vsub.s32 5, %v2100
  %v2102 = vrot.slane %v2085, %v2101
  %2107 = vrot.lane.b32.xlu0 %v2028, 126
  %v2108 = vpop.permute.xlu0 %2107
  %2109 = vrot.lane.b32.xlu0 %v2036, 126
  %v2110 = vpop.permute.xlu0 %2109
  %2111 = vrot.lane.b32.xlu0 %v2035, 126
  %v2112 = vpop.permute.xlu0 %2111
  %2113 = vrot.lane.b32.xlu0 %v2044, 126
  %v2114 = vpop.permute.xlu0 %2113
  %2115 = vrot.lane.b32.xlu0 %v2052, 126
  %v2116 = vpop.permute.xlu0 %2115
  %2117 = vrot.lane.b32.xlu0 %v2051, 126
  %v2118 = vpop.permute.xlu0 %2117
  %vm2119 = vcmask 1031168
  %v2120 = vsel %vm2119, %v2108, %v2110
  %v2121 = vsel %vm2119, %v2110, %v2112
  %v2122 = vsel %vm2119, %v2114, %v2116
  %v2123 = vsel %vm2119, %v2116, %v2118
  %v2128 = vmul.f32 %v2090, %v2120
  %v2129 = vmul.f32 %v2094, %v2121
  %v2130 = vmul.f32 %v2098, %v2122
  %v2131 = vmul.f32 %v2102, %v2123
  %v2132 = vadd.f32 %v1988, %v2128
  %v2133 = vadd.f32 %v1989, %v2129
  %v2134 = vadd.f32 %v1990, %v2130
  %v2135 = vadd.f32 %v1991, %v2131
  %s2136 = scalar_lea.vmem %s5, 147
  %v2137 = vld [vmem:[%s2136] ss:$8 sm:$0xf]
  %v2138 = vld [vmem:[%s2136] ss:$8 sm:$0x30]
  %v2139 = vor.u32 %v2137, %v2138
  %v2141 = vlaneseq
  %v2142 = vshrl.u32 %v2141, 7
  %v2143 = vsub.s32 0, %v2142
  %v2144 = vrot.slane %v2139, %v2143
  %v2145 = vlaneseq
  %v2146 = vshrl.u32 %v2145, 7
  %v2147 = vsub.s32 1, %v2146
  %v2148 = vrot.slane %v2139, %v2147
  %v2149 = vlaneseq
  %v2150 = vshrl.u32 %v2149, 7
  %v2151 = vsub.s32 4, %v2150
  %v2152 = vrot.slane %v2139, %v2151
  %v2153 = vlaneseq
  %v2154 = vshrl.u32 %v2153, 7
  %v2155 = vsub.s32 5, %v2154
  %v2156 = vrot.slane %v2139, %v2155
  %2161 = vrot.lane.b32.xlu0 %v2028, 125
  %v2162 = vpop.permute.xlu0 %2161
  %2163 = vrot.lane.b32.xlu0 %v2036, 125
  %v2164 = vpop.permute.xlu0 %2163
  %2165 = vrot.lane.b32.xlu0 %v2035, 125
  %v2166 = vpop.permute.xlu0 %2165
  %2167 = vrot.lane.b32.xlu0 %v2044, 125
  %v2168 = vpop.permute.xlu0 %2167
  %2169 = vrot.lane.b32.xlu0 %v2052, 125
  %v2170 = vpop.permute.xlu0 %2169
  %2171 = vrot.lane.b32.xlu0 %v2051, 125
  %v2172 = vpop.permute.xlu0 %2171
  %vm2173 = vcmask 1022976
  %v2174 = vsel %vm2173, %v2162, %v2164
  %v2175 = vsel %vm2173, %v2164, %v2166
  %v2176 = vsel %vm2173, %v2168, %v2170
  %v2177 = vsel %vm2173, %v2170, %v2172
  %v2182 = vmul.f32 %v2144, %v2174
  %v2183 = vmul.f32 %v2148, %v2175
  %v2184 = vmul.f32 %v2152, %v2176
  %v2185 = vmul.f32 %v2156, %v2177
  %v2186 = vadd.f32 %v2078, %v2182
  %v2187 = vadd.f32 %v2079, %v2183
  %v2188 = vadd.f32 %v2080, %v2184
  %v2189 = vadd.f32 %v2081, %v2185
  %s2190 = scalar_lea.vmem %s5, 148
  %v2191 = vld [vmem:[%s2190] ss:$8 sm:$0xf]
  %v2192 = vld [vmem:[%s2190] ss:$8 sm:$0x30]
  %v2193 = vor.u32 %v2191, %v2192
  %v2195 = vlaneseq
  %v2196 = vshrl.u32 %v2195, 7
  %v2197 = vsub.s32 0, %v2196
  %v2198 = vrot.slane %v2193, %v2197
  %v2199 = vlaneseq
  %v2200 = vshrl.u32 %v2199, 7
  %v2201 = vsub.s32 1, %v2200
  %v2202 = vrot.slane %v2193, %v2201
  %v2203 = vlaneseq
  %v2204 = vshrl.u32 %v2203, 7
  %v2205 = vsub.s32 4, %v2204
  %v2206 = vrot.slane %v2193, %v2205
  %v2207 = vlaneseq
  %v2208 = vshrl.u32 %v2207, 7
  %v2209 = vsub.s32 5, %v2208
  %v2210 = vrot.slane %v2193, %v2209
  %2215 = vrot.lane.b32.xlu0 %v2028, 115
  %v2216 = vpop.permute.xlu0 %2215
  %2217 = vrot.lane.b32.xlu0 %v2036, 115
  %v2218 = vpop.permute.xlu0 %2217
  %2219 = vrot.lane.b32.xlu0 %v2035, 115
  %v2220 = vpop.permute.xlu0 %2219
  %2221 = vrot.lane.b32.xlu0 %v2044, 115
  %v2222 = vpop.permute.xlu0 %2221
  %2223 = vrot.lane.b32.xlu0 %v2052, 115
  %v2224 = vpop.permute.xlu0 %2223
  %2225 = vrot.lane.b32.xlu0 %v2051, 115
  %v2226 = vpop.permute.xlu0 %2225
  %vm2227 = vcmask 941056
  %v2228 = vsel %vm2227, %v2216, %v2218
  %v2229 = vsel %vm2227, %v2218, %v2220
  %v2230 = vsel %vm2227, %v2222, %v2224
  %v2231 = vsel %vm2227, %v2224, %v2226
  %v2236 = vmul.f32 %v2198, %v2228
  %v2237 = vmul.f32 %v2202, %v2229
  %v2238 = vmul.f32 %v2206, %v2230
  %v2239 = vmul.f32 %v2210, %v2231
  %v2240 = vadd.f32 %v2132, %v2236
  %v2241 = vadd.f32 %v2133, %v2237
  %v2242 = vadd.f32 %v2134, %v2238
  %v2243 = vadd.f32 %v2135, %v2239
  %s2244 = scalar_lea.vmem %s5, 149
  %v2245 = vld [vmem:[%s2244] ss:$8 sm:$0xf]
  %v2246 = vld [vmem:[%s2244] ss:$8 sm:$0x30]
  %v2247 = vor.u32 %v2245, %v2246
  %v2249 = vlaneseq
  %v2250 = vshrl.u32 %v2249, 7
  %v2251 = vsub.s32 0, %v2250
  %v2252 = vrot.slane %v2247, %v2251
  %v2253 = vlaneseq
  %v2254 = vshrl.u32 %v2253, 7
  %v2255 = vsub.s32 1, %v2254
  %v2256 = vrot.slane %v2247, %v2255
  %v2257 = vlaneseq
  %v2258 = vshrl.u32 %v2257, 7
  %v2259 = vsub.s32 4, %v2258
  %v2260 = vrot.slane %v2247, %v2259
  %v2261 = vlaneseq
  %v2262 = vshrl.u32 %v2261, 7
  %v2263 = vsub.s32 5, %v2262
  %v2264 = vrot.slane %v2247, %v2263
  %2269 = vrot.lane.b32.xlu0 %v2028, 114
  %v2270 = vpop.permute.xlu0 %2269
  %2271 = vrot.lane.b32.xlu0 %v2036, 114
  %v2272 = vpop.permute.xlu0 %2271
  %2273 = vrot.lane.b32.xlu0 %v2035, 114
  %v2274 = vpop.permute.xlu0 %2273
  %2275 = vrot.lane.b32.xlu0 %v2044, 114
  %v2276 = vpop.permute.xlu0 %2275
  %2277 = vrot.lane.b32.xlu0 %v2052, 114
  %v2278 = vpop.permute.xlu0 %2277
  %2279 = vrot.lane.b32.xlu0 %v2051, 114
  %v2280 = vpop.permute.xlu0 %2279
  %vm2281 = vcmask 932864
  %v2282 = vsel %vm2281, %v2270, %v2272
  %v2283 = vsel %vm2281, %v2272, %v2274
  %v2284 = vsel %vm2281, %v2276, %v2278
  %v2285 = vsel %vm2281, %v2278, %v2280
  %v2290 = vmul.f32 %v2252, %v2282
  %v2291 = vmul.f32 %v2256, %v2283
  %v2292 = vmul.f32 %v2260, %v2284
  %v2293 = vmul.f32 %v2264, %v2285
  %v2294 = vadd.f32 %v2186, %v2290
  %v2295 = vadd.f32 %v2187, %v2291
  %v2296 = vadd.f32 %v2188, %v2292
  %v2297 = vadd.f32 %v2189, %v2293
  %s2298 = scalar_lea.vmem %s5, 150
  %v2299 = vld [vmem:[%s2298] ss:$8 sm:$0xf]
  %v2300 = vld [vmem:[%s2298] ss:$8 sm:$0x30]
  %v2301 = vor.u32 %v2299, %v2300
  %v2303 = vlaneseq
  %v2304 = vshrl.u32 %v2303, 7
  %v2305 = vsub.s32 0, %v2304
  %v2306 = vrot.slane %v2301, %v2305
  %v2307 = vlaneseq
  %v2308 = vshrl.u32 %v2307, 7
  %v2309 = vsub.s32 1, %v2308
  %v2310 = vrot.slane %v2301, %v2309
  %v2311 = vlaneseq
  %v2312 = vshrl.u32 %v2311, 7
  %v2313 = vsub.s32 4, %v2312
  %v2314 = vrot.slane %v2301, %v2313
  %v2315 = vlaneseq
  %v2316 = vshrl.u32 %v2315, 7
  %v2317 = vsub.s32 5, %v2316
  %v2318 = vrot.slane %v2301, %v2317
  %2323 = vrot.lane.b32.xlu0 %v2028, 113
  %v2324 = vpop.permute.xlu0 %2323
  %2325 = vrot.lane.b32.xlu0 %v2036, 113
  %v2326 = vpop.permute.xlu0 %2325
  %2327 = vrot.lane.b32.xlu0 %v2035, 113
  %v2328 = vpop.permute.xlu0 %2327
  %2329 = vrot.lane.b32.xlu0 %v2044, 113
  %v2330 = vpop.permute.xlu0 %2329
  %2331 = vrot.lane.b32.xlu0 %v2052, 113
  %v2332 = vpop.permute.xlu0 %2331
  %2333 = vrot.lane.b32.xlu0 %v2051, 113
  %v2334 = vpop.permute.xlu0 %2333
  %vm2335 = vcmask 924672
  %v2336 = vsel %vm2335, %v2324, %v2326
  %v2337 = vsel %vm2335, %v2326, %v2328
  %v2338 = vsel %vm2335, %v2330, %v2332
  %v2339 = vsel %vm2335, %v2332, %v2334
  %v2344 = vmul.f32 %v2306, %v2336
  %v2345 = vmul.f32 %v2310, %v2337
  %v2346 = vmul.f32 %v2314, %v2338
  %v2347 = vmul.f32 %v2318, %v2339
  %v2348 = vadd.f32 %v2240, %v2344
  %v2349 = vadd.f32 %v2241, %v2345
  %v2350 = vadd.f32 %v2242, %v2346
  %v2351 = vadd.f32 %v2243, %v2347
  %s2352 = scalar_lea.vmem %s5, 151
  %v2353 = vld [vmem:[%s2352] ss:$8 sm:$0xf]
  %v2354 = vld [vmem:[%s2352] ss:$8 sm:$0x30]
  %v2355 = vor.u32 %v2353, %v2354
  %v2357 = vlaneseq
  %v2358 = vshrl.u32 %v2357, 7
  %v2359 = vsub.s32 0, %v2358
  %v2360 = vrot.slane %v2355, %v2359
  %v2361 = vlaneseq
  %v2362 = vshrl.u32 %v2361, 7
  %v2363 = vsub.s32 1, %v2362
  %v2364 = vrot.slane %v2355, %v2363
  %v2365 = vlaneseq
  %v2366 = vshrl.u32 %v2365, 7
  %v2367 = vsub.s32 4, %v2366
  %v2368 = vrot.slane %v2355, %v2367
  %v2369 = vlaneseq
  %v2370 = vshrl.u32 %v2369, 7
  %v2371 = vsub.s32 5, %v2370
  %v2372 = vrot.slane %v2355, %v2371
  %2377 = vrot.lane.b32.xlu0 %v2028, 112
  %v2378 = vpop.permute.xlu0 %2377
  %2379 = vrot.lane.b32.xlu0 %v2036, 112
  %v2380 = vpop.permute.xlu0 %2379
  %2381 = vrot.lane.b32.xlu0 %v2035, 112
  %v2382 = vpop.permute.xlu0 %2381
  %2383 = vrot.lane.b32.xlu0 %v2044, 112
  %v2384 = vpop.permute.xlu0 %2383
  %2385 = vrot.lane.b32.xlu0 %v2052, 112
  %v2386 = vpop.permute.xlu0 %2385
  %2387 = vrot.lane.b32.xlu0 %v2051, 112
  %v2388 = vpop.permute.xlu0 %2387
  %vm2389 = vcmask 916480
  %v2390 = vsel %vm2389, %v2378, %v2380
  %v2391 = vsel %vm2389, %v2380, %v2382
  %v2392 = vsel %vm2389, %v2384, %v2386
  %v2393 = vsel %vm2389, %v2386, %v2388
  %v2398 = vmul.f32 %v2360, %v2390
  %v2399 = vmul.f32 %v2364, %v2391
  %v2400 = vmul.f32 %v2368, %v2392
  %v2401 = vmul.f32 %v2372, %v2393
  %v2402 = vadd.f32 %v2294, %v2398
  %v2403 = vadd.f32 %v2295, %v2399
  %v2404 = vadd.f32 %v2296, %v2400
  %v2405 = vadd.f32 %v2297, %v2401
  %s2406 = scalar_lea.vmem %s5, 192
  %v2407 = vld [vmem:[%s2406] ss:$8 sm:$0xf]
  %v2408 = vld [vmem:[%s2406] ss:$8 sm:$0x30]
  %v2409 = vor.u32 %v2407, %v2408
  %v2411 = vlaneseq
  %v2412 = vshrl.u32 %v2411, 7
  %v2413 = vsub.s32 0, %v2412
  %v2414 = vrot.slane %v2409, %v2413
  %v2415 = vlaneseq
  %v2416 = vshrl.u32 %v2415, 7
  %v2417 = vsub.s32 1, %v2416
  %v2418 = vrot.slane %v2409, %v2417
  %v2419 = vlaneseq
  %v2420 = vshrl.u32 %v2419, 7
  %v2421 = vsub.s32 4, %v2420
  %v2422 = vrot.slane %v2409, %v2421
  %v2423 = vlaneseq
  %v2424 = vshrl.u32 %v2423, 7
  %v2425 = vsub.s32 5, %v2424
  %v2426 = vrot.slane %v2409, %v2425
  %2431 = vrot.lane.b32.xlu0 %v2028, 111
  %v2432 = vpop.permute.xlu0 %2431
  %2433 = vrot.lane.b32.xlu0 %v2036, 111
  %v2434 = vpop.permute.xlu0 %2433
  %2435 = vrot.lane.b32.xlu0 %v2035, 111
  %v2436 = vpop.permute.xlu0 %2435
  %2437 = vrot.lane.b32.xlu0 %v2044, 111
  %v2438 = vpop.permute.xlu0 %2437
  %2439 = vrot.lane.b32.xlu0 %v2052, 111
  %v2440 = vpop.permute.xlu0 %2439
  %2441 = vrot.lane.b32.xlu0 %v2051, 111
  %v2442 = vpop.permute.xlu0 %2441
  %vm2443 = vcmask 908288
  %v2444 = vsel %vm2443, %v2432, %v2434
  %v2445 = vsel %vm2443, %v2434, %v2436
  %v2446 = vsel %vm2443, %v2438, %v2440
  %v2447 = vsel %vm2443, %v2440, %v2442
  %v2452 = vmul.f32 %v2414, %v2444
  %v2453 = vmul.f32 %v2418, %v2445
  %v2454 = vmul.f32 %v2422, %v2446
  %v2455 = vmul.f32 %v2426, %v2447
  %v2456 = vadd.f32 %v2348, %v2452
  %v2457 = vadd.f32 %v2349, %v2453
  %v2458 = vadd.f32 %v2350, %v2454
  %v2459 = vadd.f32 %v2351, %v2455
  %s2460 = scalar_lea.vmem %s5, 193
  %v2461 = vld [vmem:[%s2460] ss:$8 sm:$0xf]
  %v2462 = vld [vmem:[%s2460] ss:$8 sm:$0x30]
  %v2463 = vor.u32 %v2461, %v2462
  %v2465 = vlaneseq
  %v2466 = vshrl.u32 %v2465, 7
  %v2467 = vsub.s32 0, %v2466
  %v2468 = vrot.slane %v2463, %v2467
  %v2469 = vlaneseq
  %v2470 = vshrl.u32 %v2469, 7
  %v2471 = vsub.s32 1, %v2470
  %v2472 = vrot.slane %v2463, %v2471
  %v2473 = vlaneseq
  %v2474 = vshrl.u32 %v2473, 7
  %v2475 = vsub.s32 4, %v2474
  %v2476 = vrot.slane %v2463, %v2475
  %v2477 = vlaneseq
  %v2478 = vshrl.u32 %v2477, 7
  %v2479 = vsub.s32 5, %v2478
  %v2480 = vrot.slane %v2463, %v2479
  %2485 = vrot.lane.b32.xlu0 %v2028, 110
  %v2486 = vpop.permute.xlu0 %2485
  %2487 = vrot.lane.b32.xlu0 %v2036, 110
  %v2488 = vpop.permute.xlu0 %2487
  %2489 = vrot.lane.b32.xlu0 %v2035, 110
  %v2490 = vpop.permute.xlu0 %2489
  %2491 = vrot.lane.b32.xlu0 %v2044, 110
  %v2492 = vpop.permute.xlu0 %2491
  %2493 = vrot.lane.b32.xlu0 %v2052, 110
  %v2494 = vpop.permute.xlu0 %2493
  %2495 = vrot.lane.b32.xlu0 %v2051, 110
  %v2496 = vpop.permute.xlu0 %2495
  %vm2497 = vcmask 900096
  %v2498 = vsel %vm2497, %v2486, %v2488
  %v2499 = vsel %vm2497, %v2488, %v2490
  %v2500 = vsel %vm2497, %v2492, %v2494
  %v2501 = vsel %vm2497, %v2494, %v2496
  %v2506 = vmul.f32 %v2468, %v2498
  %v2507 = vmul.f32 %v2472, %v2499
  %v2508 = vmul.f32 %v2476, %v2500
  %v2509 = vmul.f32 %v2480, %v2501
  %v2510 = vadd.f32 %v2402, %v2506
  %v2511 = vadd.f32 %v2403, %v2507
  %v2512 = vadd.f32 %v2404, %v2508
  %v2513 = vadd.f32 %v2405, %v2509
  %s2514 = scalar_lea.vmem %s5, 194
  %v2515 = vld [vmem:[%s2514] ss:$8 sm:$0xf]
  %v2516 = vld [vmem:[%s2514] ss:$8 sm:$0x30]
  %v2517 = vor.u32 %v2515, %v2516
  %v2519 = vlaneseq
  %v2520 = vshrl.u32 %v2519, 7
  %v2521 = vsub.s32 0, %v2520
  %v2522 = vrot.slane %v2517, %v2521
  %v2523 = vlaneseq
  %v2524 = vshrl.u32 %v2523, 7
  %v2525 = vsub.s32 1, %v2524
  %v2526 = vrot.slane %v2517, %v2525
  %v2527 = vlaneseq
  %v2528 = vshrl.u32 %v2527, 7
  %v2529 = vsub.s32 4, %v2528
  %v2530 = vrot.slane %v2517, %v2529
  %v2531 = vlaneseq
  %v2532 = vshrl.u32 %v2531, 7
  %v2533 = vsub.s32 5, %v2532
  %v2534 = vrot.slane %v2517, %v2533
  %2539 = vrot.lane.b32.xlu0 %v2028, 109
  %v2540 = vpop.permute.xlu0 %2539
  %2541 = vrot.lane.b32.xlu0 %v2036, 109
  %v2542 = vpop.permute.xlu0 %2541
  %2543 = vrot.lane.b32.xlu0 %v2035, 109
  %v2544 = vpop.permute.xlu0 %2543
  %2545 = vrot.lane.b32.xlu0 %v2044, 109
  %v2546 = vpop.permute.xlu0 %2545
  %2547 = vrot.lane.b32.xlu0 %v2052, 109
  %v2548 = vpop.permute.xlu0 %2547
  %2549 = vrot.lane.b32.xlu0 %v2051, 109
  %v2550 = vpop.permute.xlu0 %2549
  %vm2551 = vcmask 891904
  %v2552 = vsel %vm2551, %v2540, %v2542
  %v2553 = vsel %vm2551, %v2542, %v2544
  %v2554 = vsel %vm2551, %v2546, %v2548
  %v2555 = vsel %vm2551, %v2548, %v2550
  %v2560 = vmul.f32 %v2522, %v2552
  %v2561 = vmul.f32 %v2526, %v2553
  %v2562 = vmul.f32 %v2530, %v2554
  %v2563 = vmul.f32 %v2534, %v2555
  %v2564 = vadd.f32 %v2456, %v2560
  %v2565 = vadd.f32 %v2457, %v2561
  %v2566 = vadd.f32 %v2458, %v2562
  %v2567 = vadd.f32 %v2459, %v2563
  %s2568 = scalar_lea.vmem %s5, 195
  %v2569 = vld [vmem:[%s2568] ss:$8 sm:$0xf]
  %v2570 = vld [vmem:[%s2568] ss:$8 sm:$0x30]
  %v2571 = vor.u32 %v2569, %v2570
  %v2573 = vlaneseq
  %v2574 = vshrl.u32 %v2573, 7
  %v2575 = vsub.s32 0, %v2574
  %v2576 = vrot.slane %v2571, %v2575
  %v2577 = vlaneseq
  %v2578 = vshrl.u32 %v2577, 7
  %v2579 = vsub.s32 1, %v2578
  %v2580 = vrot.slane %v2571, %v2579
  %v2581 = vlaneseq
  %v2582 = vshrl.u32 %v2581, 7
  %v2583 = vsub.s32 4, %v2582
  %v2584 = vrot.slane %v2571, %v2583
  %v2585 = vlaneseq
  %v2586 = vshrl.u32 %v2585, 7
  %v2587 = vsub.s32 5, %v2586
  %v2588 = vrot.slane %v2571, %v2587
  %2593 = vrot.lane.b32.xlu0 %v2028, 99
  %v2594 = vpop.permute.xlu0 %2593
  %2595 = vrot.lane.b32.xlu0 %v2036, 99
  %v2596 = vpop.permute.xlu0 %2595
  %2597 = vrot.lane.b32.xlu0 %v2035, 99
  %v2598 = vpop.permute.xlu0 %2597
  %2599 = vrot.lane.b32.xlu0 %v2044, 99
  %v2600 = vpop.permute.xlu0 %2599
  %2601 = vrot.lane.b32.xlu0 %v2052, 99
  %v2602 = vpop.permute.xlu0 %2601
  %2603 = vrot.lane.b32.xlu0 %v2051, 99
  %v2604 = vpop.permute.xlu0 %2603
  %vm2605 = vcmask 809984
  %v2606 = vsel %vm2605, %v2594, %v2596
  %v2607 = vsel %vm2605, %v2596, %v2598
  %v2608 = vsel %vm2605, %v2600, %v2602
  %v2609 = vsel %vm2605, %v2602, %v2604
  %v2614 = vmul.f32 %v2576, %v2606
  %v2615 = vmul.f32 %v2580, %v2607
  %v2616 = vmul.f32 %v2584, %v2608
  %v2617 = vmul.f32 %v2588, %v2609
  %v2618 = vadd.f32 %v2510, %v2614
  %v2619 = vadd.f32 %v2511, %v2615
  %v2620 = vadd.f32 %v2512, %v2616
  %v2621 = vadd.f32 %v2513, %v2617
  %s2622 = scalar_lea.vmem %s5, 196
  %v2623 = vld [vmem:[%s2622] ss:$8 sm:$0xf]
  %v2624 = vld [vmem:[%s2622] ss:$8 sm:$0x30]
  %v2625 = vor.u32 %v2623, %v2624
  %v2627 = vlaneseq
  %v2628 = vshrl.u32 %v2627, 7
  %v2629 = vsub.s32 0, %v2628
  %v2630 = vrot.slane %v2625, %v2629
  %v2631 = vlaneseq
  %v2632 = vshrl.u32 %v2631, 7
  %v2633 = vsub.s32 1, %v2632
  %v2634 = vrot.slane %v2625, %v2633
  %v2635 = vlaneseq
  %v2636 = vshrl.u32 %v2635, 7
  %v2637 = vsub.s32 4, %v2636
  %v2638 = vrot.slane %v2625, %v2637
  %v2639 = vlaneseq
  %v2640 = vshrl.u32 %v2639, 7
  %v2641 = vsub.s32 5, %v2640
  %v2642 = vrot.slane %v2625, %v2641
  %2647 = vrot.lane.b32.xlu0 %v2028, 98
  %v2648 = vpop.permute.xlu0 %2647
  %2649 = vrot.lane.b32.xlu0 %v2036, 98
  %v2650 = vpop.permute.xlu0 %2649
  %2651 = vrot.lane.b32.xlu0 %v2035, 98
  %v2652 = vpop.permute.xlu0 %2651
  %2653 = vrot.lane.b32.xlu0 %v2044, 98
  %v2654 = vpop.permute.xlu0 %2653
  %2655 = vrot.lane.b32.xlu0 %v2052, 98
  %v2656 = vpop.permute.xlu0 %2655
  %2657 = vrot.lane.b32.xlu0 %v2051, 98
  %v2658 = vpop.permute.xlu0 %2657
  %vm2659 = vcmask 801792
  %v2660 = vsel %vm2659, %v2648, %v2650
  %v2661 = vsel %vm2659, %v2650, %v2652
  %v2662 = vsel %vm2659, %v2654, %v2656
  %v2663 = vsel %vm2659, %v2656, %v2658
  %v2668 = vmul.f32 %v2630, %v2660
  %v2669 = vmul.f32 %v2634, %v2661
  %v2670 = vmul.f32 %v2638, %v2662
  %v2671 = vmul.f32 %v2642, %v2663
  %v2672 = vadd.f32 %v2564, %v2668
  %v2673 = vadd.f32 %v2565, %v2669
  %v2674 = vadd.f32 %v2566, %v2670
  %v2675 = vadd.f32 %v2567, %v2671
  %s2676 = scalar_lea.vmem %s5, 197
  %v2677 = vld [vmem:[%s2676] ss:$8 sm:$0xf]
  %v2678 = vld [vmem:[%s2676] ss:$8 sm:$0x30]
  %v2679 = vor.u32 %v2677, %v2678
  %v2681 = vlaneseq
  %v2682 = vshrl.u32 %v2681, 7
  %v2683 = vsub.s32 0, %v2682
  %v2684 = vrot.slane %v2679, %v2683
  %v2685 = vlaneseq
  %v2686 = vshrl.u32 %v2685, 7
  %v2687 = vsub.s32 1, %v2686
  %v2688 = vrot.slane %v2679, %v2687
  %v2689 = vlaneseq
  %v2690 = vshrl.u32 %v2689, 7
  %v2691 = vsub.s32 4, %v2690
  %v2692 = vrot.slane %v2679, %v2691
  %v2693 = vlaneseq
  %v2694 = vshrl.u32 %v2693, 7
  %v2695 = vsub.s32 5, %v2694
  %v2696 = vrot.slane %v2679, %v2695
  %2701 = vrot.lane.b32.xlu0 %v2028, 97
  %v2702 = vpop.permute.xlu0 %2701
  %2703 = vrot.lane.b32.xlu0 %v2036, 97
  %v2704 = vpop.permute.xlu0 %2703
  %2705 = vrot.lane.b32.xlu0 %v2035, 97
  %v2706 = vpop.permute.xlu0 %2705
  %2707 = vrot.lane.b32.xlu0 %v2044, 97
  %v2708 = vpop.permute.xlu0 %2707
  %2709 = vrot.lane.b32.xlu0 %v2052, 97
  %v2710 = vpop.permute.xlu0 %2709
  %2711 = vrot.lane.b32.xlu0 %v2051, 97
  %v2712 = vpop.permute.xlu0 %2711
  %vm2713 = vcmask 793600
  %v2714 = vsel %vm2713, %v2702, %v2704
  %v2715 = vsel %vm2713, %v2704, %v2706
  %v2716 = vsel %vm2713, %v2708, %v2710
  %v2717 = vsel %vm2713, %v2710, %v2712
  %v2722 = vmul.f32 %v2684, %v2714
  %v2723 = vmul.f32 %v2688, %v2715
  %v2724 = vmul.f32 %v2692, %v2716
  %v2725 = vmul.f32 %v2696, %v2717
  %v2726 = vadd.f32 %v2618, %v2722
  %v2727 = vadd.f32 %v2619, %v2723
  %v2728 = vadd.f32 %v2620, %v2724
  %v2729 = vadd.f32 %v2621, %v2725
  %s2730 = scalar_lea.vmem %s5, 198
  %v2731 = vld [vmem:[%s2730] ss:$8 sm:$0xf]
  %v2732 = vld [vmem:[%s2730] ss:$8 sm:$0x30]
  %v2733 = vor.u32 %v2731, %v2732
  %v2735 = vlaneseq
  %v2736 = vshrl.u32 %v2735, 7
  %v2737 = vsub.s32 0, %v2736
  %v2738 = vrot.slane %v2733, %v2737
  %v2739 = vlaneseq
  %v2740 = vshrl.u32 %v2739, 7
  %v2741 = vsub.s32 1, %v2740
  %v2742 = vrot.slane %v2733, %v2741
  %v2743 = vlaneseq
  %v2744 = vshrl.u32 %v2743, 7
  %v2745 = vsub.s32 4, %v2744
  %v2746 = vrot.slane %v2733, %v2745
  %v2747 = vlaneseq
  %v2748 = vshrl.u32 %v2747, 7
  %v2749 = vsub.s32 5, %v2748
  %v2750 = vrot.slane %v2733, %v2749
  %2755 = vrot.lane.b32.xlu0 %v2028, 96
  %v2756 = vpop.permute.xlu0 %2755
  %2757 = vrot.lane.b32.xlu0 %v2036, 96
  %v2758 = vpop.permute.xlu0 %2757
  %2759 = vrot.lane.b32.xlu0 %v2035, 96
  %v2760 = vpop.permute.xlu0 %2759
  %2761 = vrot.lane.b32.xlu0 %v2044, 96
  %v2762 = vpop.permute.xlu0 %2761
  %2763 = vrot.lane.b32.xlu0 %v2052, 96
  %v2764 = vpop.permute.xlu0 %2763
  %2765 = vrot.lane.b32.xlu0 %v2051, 96
  %v2766 = vpop.permute.xlu0 %2765
  %vm2767 = vcmask 785408
  %v2768 = vsel %vm2767, %v2756, %v2758
  %v2769 = vsel %vm2767, %v2758, %v2760
  %v2770 = vsel %vm2767, %v2762, %v2764
  %v2771 = vsel %vm2767, %v2764, %v2766
  %v2776 = vmul.f32 %v2738, %v2768
  %v2777 = vmul.f32 %v2742, %v2769
  %v2778 = vmul.f32 %v2746, %v2770
  %v2779 = vmul.f32 %v2750, %v2771
  %v2780 = vadd.f32 %v2672, %v2776
  %v2781 = vadd.f32 %v2673, %v2777
  %v2782 = vadd.f32 %v2674, %v2778
  %v2783 = vadd.f32 %v2675, %v2779
  %s2784 = scalar_lea.vmem %s5, 199
  %v2785 = vld [vmem:[%s2784] ss:$8 sm:$0xf]
  %v2786 = vld [vmem:[%s2784] ss:$8 sm:$0x30]
  %v2787 = vor.u32 %v2785, %v2786
  %v2789 = vlaneseq
  %v2790 = vshrl.u32 %v2789, 7
  %v2791 = vsub.s32 0, %v2790
  %v2792 = vrot.slane %v2787, %v2791
  %v2793 = vlaneseq
  %v2794 = vshrl.u32 %v2793, 7
  %v2795 = vsub.s32 1, %v2794
  %v2796 = vrot.slane %v2787, %v2795
  %v2797 = vlaneseq
  %v2798 = vshrl.u32 %v2797, 7
  %v2799 = vsub.s32 4, %v2798
  %v2800 = vrot.slane %v2787, %v2799
  %v2801 = vlaneseq
  %v2802 = vshrl.u32 %v2801, 7
  %v2803 = vsub.s32 5, %v2802
  %v2804 = vrot.slane %v2787, %v2803
  %2809 = vrot.lane.b32.xlu0 %v2028, 95
  %v2810 = vpop.permute.xlu0 %2809
  %2811 = vrot.lane.b32.xlu0 %v2036, 95
  %v2812 = vpop.permute.xlu0 %2811
  %2813 = vrot.lane.b32.xlu0 %v2035, 95
  %v2814 = vpop.permute.xlu0 %2813
  %2815 = vrot.lane.b32.xlu0 %v2044, 95
  %v2816 = vpop.permute.xlu0 %2815
  %2817 = vrot.lane.b32.xlu0 %v2052, 95
  %v2818 = vpop.permute.xlu0 %2817
  %2819 = vrot.lane.b32.xlu0 %v2051, 95
  %v2820 = vpop.permute.xlu0 %2819
  %vm2821 = vcmask 777216
  %v2822 = vsel %vm2821, %v2810, %v2812
  %v2823 = vsel %vm2821, %v2812, %v2814
  %v2824 = vsel %vm2821, %v2816, %v2818
  %v2825 = vsel %vm2821, %v2818, %v2820
  %v2830 = vmul.f32 %v2792, %v2822
  %v2831 = vmul.f32 %v2796, %v2823
  %v2832 = vmul.f32 %v2800, %v2824
  %v2833 = vmul.f32 %v2804, %v2825
  %v2834 = vadd.f32 %v2726, %v2830
  %v2835 = vadd.f32 %v2727, %v2831
  %v2836 = vadd.f32 %v2728, %v2832
  %v2837 = vadd.f32 %v2729, %v2833
  %s2838 = scalar_lea.vmem %s5, 240
  %v2839 = vld [vmem:[%s2838] ss:$8 sm:$0xf]
  %v2840 = vld [vmem:[%s2838] ss:$8 sm:$0x30]
  %v2841 = vor.u32 %v2839, %v2840
  %v2843 = vlaneseq
  %v2844 = vshrl.u32 %v2843, 7
  %v2845 = vsub.s32 0, %v2844
  %v2846 = vrot.slane %v2841, %v2845
  %v2847 = vlaneseq
  %v2848 = vshrl.u32 %v2847, 7
  %v2849 = vsub.s32 1, %v2848
  %v2850 = vrot.slane %v2841, %v2849
  %v2851 = vlaneseq
  %v2852 = vshrl.u32 %v2851, 7
  %v2853 = vsub.s32 4, %v2852
  %v2854 = vrot.slane %v2841, %v2853
  %v2855 = vlaneseq
  %v2856 = vshrl.u32 %v2855, 7
  %v2857 = vsub.s32 5, %v2856
  %v2858 = vrot.slane %v2841, %v2857
  %2863 = vrot.lane.b32.xlu0 %v2028, 94
  %v2864 = vpop.permute.xlu0 %2863
  %2865 = vrot.lane.b32.xlu0 %v2036, 94
  %v2866 = vpop.permute.xlu0 %2865
  %2867 = vrot.lane.b32.xlu0 %v2035, 94
  %v2868 = vpop.permute.xlu0 %2867
  %2869 = vrot.lane.b32.xlu0 %v2044, 94
  %v2870 = vpop.permute.xlu0 %2869
  %2871 = vrot.lane.b32.xlu0 %v2052, 94
  %v2872 = vpop.permute.xlu0 %2871
  %2873 = vrot.lane.b32.xlu0 %v2051, 94
  %v2874 = vpop.permute.xlu0 %2873
  %vm2875 = vcmask 769024
  %v2876 = vsel %vm2875, %v2864, %v2866
  %v2877 = vsel %vm2875, %v2866, %v2868
  %v2878 = vsel %vm2875, %v2870, %v2872
  %v2879 = vsel %vm2875, %v2872, %v2874
  %v2884 = vmul.f32 %v2846, %v2876
  %v2885 = vmul.f32 %v2850, %v2877
  %v2886 = vmul.f32 %v2854, %v2878
  %v2887 = vmul.f32 %v2858, %v2879
  %v2888 = vadd.f32 %v2780, %v2884
  %v2889 = vadd.f32 %v2781, %v2885
  %v2890 = vadd.f32 %v2782, %v2886
  %v2891 = vadd.f32 %v2783, %v2887
  %s2892 = scalar_lea.vmem %s5, 241
  %v2893 = vld [vmem:[%s2892] ss:$8 sm:$0xf]
  %v2894 = vld [vmem:[%s2892] ss:$8 sm:$0x30]
  %v2895 = vor.u32 %v2893, %v2894
  %v2897 = vlaneseq
  %v2898 = vshrl.u32 %v2897, 7
  %v2899 = vsub.s32 0, %v2898
  %v2900 = vrot.slane %v2895, %v2899
  %v2901 = vlaneseq
  %v2902 = vshrl.u32 %v2901, 7
  %v2903 = vsub.s32 1, %v2902
  %v2904 = vrot.slane %v2895, %v2903
  %v2905 = vlaneseq
  %v2906 = vshrl.u32 %v2905, 7
  %v2907 = vsub.s32 4, %v2906
  %v2908 = vrot.slane %v2895, %v2907
  %v2909 = vlaneseq
  %v2910 = vshrl.u32 %v2909, 7
  %v2911 = vsub.s32 5, %v2910
  %v2912 = vrot.slane %v2895, %v2911
  %2917 = vrot.lane.b32.xlu0 %v2028, 93
  %v2918 = vpop.permute.xlu0 %2917
  %2919 = vrot.lane.b32.xlu0 %v2036, 93
  %v2920 = vpop.permute.xlu0 %2919
  %2921 = vrot.lane.b32.xlu0 %v2035, 93
  %v2922 = vpop.permute.xlu0 %2921
  %2923 = vrot.lane.b32.xlu0 %v2044, 93
  %v2924 = vpop.permute.xlu0 %2923
  %2925 = vrot.lane.b32.xlu0 %v2052, 93
  %v2926 = vpop.permute.xlu0 %2925
  %2927 = vrot.lane.b32.xlu0 %v2051, 93
  %v2928 = vpop.permute.xlu0 %2927
  %vm2929 = vcmask 760832
  %v2930 = vsel %vm2929, %v2918, %v2920
  %v2931 = vsel %vm2929, %v2920, %v2922
  %v2932 = vsel %vm2929, %v2924, %v2926
  %v2933 = vsel %vm2929, %v2926, %v2928
  %v2938 = vmul.f32 %v2900, %v2930
  %v2939 = vmul.f32 %v2904, %v2931
  %v2940 = vmul.f32 %v2908, %v2932
  %v2941 = vmul.f32 %v2912, %v2933
  %v2942 = vadd.f32 %v2834, %v2938
  %v2943 = vadd.f32 %v2835, %v2939
  %v2944 = vadd.f32 %v2836, %v2940
  %v2945 = vadd.f32 %v2837, %v2941
  %s2946 = scalar_lea.vmem %s5, 242
  %v2947 = vld [vmem:[%s2946] ss:$8 sm:$0xf]
  %v2948 = vld [vmem:[%s2946] ss:$8 sm:$0x30]
  %v2949 = vor.u32 %v2947, %v2948
  %v2951 = vlaneseq
  %v2952 = vshrl.u32 %v2951, 7
  %v2953 = vsub.s32 0, %v2952
  %v2954 = vrot.slane %v2949, %v2953
  %v2955 = vlaneseq
  %v2956 = vshrl.u32 %v2955, 7
  %v2957 = vsub.s32 1, %v2956
  %v2958 = vrot.slane %v2949, %v2957
  %v2959 = vlaneseq
  %v2960 = vshrl.u32 %v2959, 7
  %v2961 = vsub.s32 4, %v2960
  %v2962 = vrot.slane %v2949, %v2961
  %v2963 = vlaneseq
  %v2964 = vshrl.u32 %v2963, 7
  %v2965 = vsub.s32 5, %v2964
  %v2966 = vrot.slane %v2949, %v2965
  %2971 = vrot.lane.b32.xlu0 %v2028, 83
  %v2972 = vpop.permute.xlu0 %2971
  %2973 = vrot.lane.b32.xlu0 %v2036, 83
  %v2974 = vpop.permute.xlu0 %2973
  %2975 = vrot.lane.b32.xlu0 %v2035, 83
  %v2976 = vpop.permute.xlu0 %2975
  %2977 = vrot.lane.b32.xlu0 %v2044, 83
  %v2978 = vpop.permute.xlu0 %2977
  %2979 = vrot.lane.b32.xlu0 %v2052, 83
  %v2980 = vpop.permute.xlu0 %2979
  %2981 = vrot.lane.b32.xlu0 %v2051, 83
  %v2982 = vpop.permute.xlu0 %2981
  %vm2983 = vcmask 678912
  %v2984 = vsel %vm2983, %v2972, %v2974
  %v2985 = vsel %vm2983, %v2974, %v2976
  %v2986 = vsel %vm2983, %v2978, %v2980
  %v2987 = vsel %vm2983, %v2980, %v2982
  %v2992 = vmul.f32 %v2954, %v2984
  %v2993 = vmul.f32 %v2958, %v2985
  %v2994 = vmul.f32 %v2962, %v2986
  %v2995 = vmul.f32 %v2966, %v2987
  %v2996 = vadd.f32 %v2888, %v2992
  %v2997 = vadd.f32 %v2889, %v2993
  %v2998 = vadd.f32 %v2890, %v2994
  %v2999 = vadd.f32 %v2891, %v2995
  %s3000 = scalar_lea.vmem %s5, 243
  %v3001 = vld [vmem:[%s3000] ss:$8 sm:$0xf]
  %v3002 = vld [vmem:[%s3000] ss:$8 sm:$0x30]
  %v3003 = vor.u32 %v3001, %v3002
  %v3005 = vlaneseq
  %v3006 = vshrl.u32 %v3005, 7
  %v3007 = vsub.s32 0, %v3006
  %v3008 = vrot.slane %v3003, %v3007
  %v3009 = vlaneseq
  %v3010 = vshrl.u32 %v3009, 7
  %v3011 = vsub.s32 1, %v3010
  %v3012 = vrot.slane %v3003, %v3011
  %v3013 = vlaneseq
  %v3014 = vshrl.u32 %v3013, 7
  %v3015 = vsub.s32 4, %v3014
  %v3016 = vrot.slane %v3003, %v3015
  %v3017 = vlaneseq
  %v3018 = vshrl.u32 %v3017, 7
  %v3019 = vsub.s32 5, %v3018
  %v3020 = vrot.slane %v3003, %v3019
  %3025 = vrot.lane.b32.xlu0 %v2028, 82
  %v3026 = vpop.permute.xlu0 %3025
  %3027 = vrot.lane.b32.xlu0 %v2036, 82
  %v3028 = vpop.permute.xlu0 %3027
  %3029 = vrot.lane.b32.xlu0 %v2035, 82
  %v3030 = vpop.permute.xlu0 %3029
  %3031 = vrot.lane.b32.xlu0 %v2044, 82
  %v3032 = vpop.permute.xlu0 %3031
  %3033 = vrot.lane.b32.xlu0 %v2052, 82
  %v3034 = vpop.permute.xlu0 %3033
  %3035 = vrot.lane.b32.xlu0 %v2051, 82
  %v3036 = vpop.permute.xlu0 %3035
  %vm3037 = vcmask 670720
  %v3038 = vsel %vm3037, %v3026, %v3028
  %v3039 = vsel %vm3037, %v3028, %v3030
  %v3040 = vsel %vm3037, %v3032, %v3034
  %v3041 = vsel %vm3037, %v3034, %v3036
  %v3046 = vmul.f32 %v3008, %v3038
  %v3047 = vmul.f32 %v3012, %v3039
  %v3048 = vmul.f32 %v3016, %v3040
  %v3049 = vmul.f32 %v3020, %v3041
  %v3050 = vadd.f32 %v2942, %v3046
  %v3051 = vadd.f32 %v2943, %v3047
  %v3052 = vadd.f32 %v2944, %v3048
  %v3053 = vadd.f32 %v2945, %v3049
  %s3054 = scalar_lea.vmem %s5, 244
  %v3055 = vld [vmem:[%s3054] ss:$8 sm:$0xf]
  %v3056 = vld [vmem:[%s3054] ss:$8 sm:$0x30]
  %v3057 = vor.u32 %v3055, %v3056
  %v3059 = vlaneseq
  %v3060 = vshrl.u32 %v3059, 7
  %v3061 = vsub.s32 0, %v3060
  %v3062 = vrot.slane %v3057, %v3061
  %v3063 = vlaneseq
  %v3064 = vshrl.u32 %v3063, 7
  %v3065 = vsub.s32 1, %v3064
  %v3066 = vrot.slane %v3057, %v3065
  %v3067 = vlaneseq
  %v3068 = vshrl.u32 %v3067, 7
  %v3069 = vsub.s32 4, %v3068
  %v3070 = vrot.slane %v3057, %v3069
  %v3071 = vlaneseq
  %v3072 = vshrl.u32 %v3071, 7
  %v3073 = vsub.s32 5, %v3072
  %v3074 = vrot.slane %v3057, %v3073
  %3079 = vrot.lane.b32.xlu0 %v2028, 81
  %v3080 = vpop.permute.xlu0 %3079
  %3081 = vrot.lane.b32.xlu0 %v2036, 81
  %v3082 = vpop.permute.xlu0 %3081
  %3083 = vrot.lane.b32.xlu0 %v2035, 81
  %v3084 = vpop.permute.xlu0 %3083
  %3085 = vrot.lane.b32.xlu0 %v2044, 81
  %v3086 = vpop.permute.xlu0 %3085
  %3087 = vrot.lane.b32.xlu0 %v2052, 81
  %v3088 = vpop.permute.xlu0 %3087
  %3089 = vrot.lane.b32.xlu0 %v2051, 81
  %v3090 = vpop.permute.xlu0 %3089
  %vm3091 = vcmask 662528
  %v3092 = vsel %vm3091, %v3080, %v3082
  %v3093 = vsel %vm3091, %v3082, %v3084
  %v3094 = vsel %vm3091, %v3086, %v3088
  %v3095 = vsel %vm3091, %v3088, %v3090
  %v3100 = vmul.f32 %v3062, %v3092
  %v3101 = vmul.f32 %v3066, %v3093
  %v3102 = vmul.f32 %v3070, %v3094
  %v3103 = vmul.f32 %v3074, %v3095
  %v3104 = vadd.f32 %v2996, %v3100
  %v3105 = vadd.f32 %v2997, %v3101
  %v3106 = vadd.f32 %v2998, %v3102
  %v3107 = vadd.f32 %v2999, %v3103
  %s3108 = scalar_lea.vmem %s5, 245
  %v3109 = vld [vmem:[%s3108] ss:$8 sm:$0xf]
  %v3110 = vld [vmem:[%s3108] ss:$8 sm:$0x30]
  %v3111 = vor.u32 %v3109, %v3110
  %v3113 = vlaneseq
  %v3114 = vshrl.u32 %v3113, 7
  %v3115 = vsub.s32 0, %v3114
  %v3116 = vrot.slane %v3111, %v3115
  %v3117 = vlaneseq
  %v3118 = vshrl.u32 %v3117, 7
  %v3119 = vsub.s32 1, %v3118
  %v3120 = vrot.slane %v3111, %v3119
  %v3121 = vlaneseq
  %v3122 = vshrl.u32 %v3121, 7
  %v3123 = vsub.s32 4, %v3122
  %v3124 = vrot.slane %v3111, %v3123
  %v3125 = vlaneseq
  %v3126 = vshrl.u32 %v3125, 7
  %v3127 = vsub.s32 5, %v3126
  %v3128 = vrot.slane %v3111, %v3127
  %3133 = vrot.lane.b32.xlu0 %v2028, 80
  %v3134 = vpop.permute.xlu0 %3133
  %3135 = vrot.lane.b32.xlu0 %v2036, 80
  %v3136 = vpop.permute.xlu0 %3135
  %3137 = vrot.lane.b32.xlu0 %v2035, 80
  %v3138 = vpop.permute.xlu0 %3137
  %3139 = vrot.lane.b32.xlu0 %v2044, 80
  %v3140 = vpop.permute.xlu0 %3139
  %3141 = vrot.lane.b32.xlu0 %v2052, 80
  %v3142 = vpop.permute.xlu0 %3141
  %3143 = vrot.lane.b32.xlu0 %v2051, 80
  %v3144 = vpop.permute.xlu0 %3143
  %vm3145 = vcmask 654336
  %v3146 = vsel %vm3145, %v3134, %v3136
  %v3147 = vsel %vm3145, %v3136, %v3138
  %v3148 = vsel %vm3145, %v3140, %v3142
  %v3149 = vsel %vm3145, %v3142, %v3144
  %v3154 = vmul.f32 %v3116, %v3146
  %v3155 = vmul.f32 %v3120, %v3147
  %v3156 = vmul.f32 %v3124, %v3148
  %v3157 = vmul.f32 %v3128, %v3149
  %v3158 = vadd.f32 %v3050, %v3154
  %v3159 = vadd.f32 %v3051, %v3155
  %v3160 = vadd.f32 %v3052, %v3156
  %v3161 = vadd.f32 %v3053, %v3157
  %s3162 = scalar_lea.vmem %s5, 246
  %v3163 = vld [vmem:[%s3162] ss:$8 sm:$0xf]
  %v3164 = vld [vmem:[%s3162] ss:$8 sm:$0x30]
  %v3165 = vor.u32 %v3163, %v3164
  %v3167 = vlaneseq
  %v3168 = vshrl.u32 %v3167, 7
  %v3169 = vsub.s32 0, %v3168
  %v3170 = vrot.slane %v3165, %v3169
  %v3171 = vlaneseq
  %v3172 = vshrl.u32 %v3171, 7
  %v3173 = vsub.s32 1, %v3172
  %v3174 = vrot.slane %v3165, %v3173
  %v3175 = vlaneseq
  %v3176 = vshrl.u32 %v3175, 7
  %v3177 = vsub.s32 4, %v3176
  %v3178 = vrot.slane %v3165, %v3177
  %v3179 = vlaneseq
  %v3180 = vshrl.u32 %v3179, 7
  %v3181 = vsub.s32 5, %v3180
  %v3182 = vrot.slane %v3165, %v3181
  %3187 = vrot.lane.b32.xlu0 %v2028, 79
  %v3188 = vpop.permute.xlu0 %3187
  %3189 = vrot.lane.b32.xlu0 %v2036, 79
  %v3190 = vpop.permute.xlu0 %3189
  %3191 = vrot.lane.b32.xlu0 %v2035, 79
  %v3192 = vpop.permute.xlu0 %3191
  %3193 = vrot.lane.b32.xlu0 %v2044, 79
  %v3194 = vpop.permute.xlu0 %3193
  %3195 = vrot.lane.b32.xlu0 %v2052, 79
  %v3196 = vpop.permute.xlu0 %3195
  %3197 = vrot.lane.b32.xlu0 %v2051, 79
  %v3198 = vpop.permute.xlu0 %3197
  %vm3199 = vcmask 646144
  %v3200 = vsel %vm3199, %v3188, %v3190
  %v3201 = vsel %vm3199, %v3190, %v3192
  %v3202 = vsel %vm3199, %v3194, %v3196
  %v3203 = vsel %vm3199, %v3196, %v3198
  %v3208 = vmul.f32 %v3170, %v3200
  %v3209 = vmul.f32 %v3174, %v3201
  %v3210 = vmul.f32 %v3178, %v3202
  %v3211 = vmul.f32 %v3182, %v3203
  %v3212 = vadd.f32 %v3104, %v3208
  %v3213 = vadd.f32 %v3105, %v3209
  %v3214 = vadd.f32 %v3106, %v3210
  %v3215 = vadd.f32 %v3107, %v3211
  %s3216 = scalar_lea.vmem %s5, 247
  %v3217 = vld [vmem:[%s3216] ss:$8 sm:$0xf]
  %v3218 = vld [vmem:[%s3216] ss:$8 sm:$0x30]
  %v3219 = vor.u32 %v3217, %v3218
  %v3221 = vlaneseq
  %v3222 = vshrl.u32 %v3221, 7
  %v3223 = vsub.s32 0, %v3222
  %v3224 = vrot.slane %v3219, %v3223
  %v3225 = vlaneseq
  %v3226 = vshrl.u32 %v3225, 7
  %v3227 = vsub.s32 1, %v3226
  %v3228 = vrot.slane %v3219, %v3227
  %v3229 = vlaneseq
  %v3230 = vshrl.u32 %v3229, 7
  %v3231 = vsub.s32 4, %v3230
  %v3232 = vrot.slane %v3219, %v3231
  %v3233 = vlaneseq
  %v3234 = vshrl.u32 %v3233, 7
  %v3235 = vsub.s32 5, %v3234
  %v3236 = vrot.slane %v3219, %v3235
  %3241 = vrot.lane.b32.xlu0 %v2028, 78
  %v3242 = vpop.permute.xlu0 %3241
  %3243 = vrot.lane.b32.xlu0 %v2036, 78
  %v3244 = vpop.permute.xlu0 %3243
  %3245 = vrot.lane.b32.xlu0 %v2035, 78
  %v3246 = vpop.permute.xlu0 %3245
  %3247 = vrot.lane.b32.xlu0 %v2044, 78
  %v3248 = vpop.permute.xlu0 %3247
  %3249 = vrot.lane.b32.xlu0 %v2052, 78
  %v3250 = vpop.permute.xlu0 %3249
  %3251 = vrot.lane.b32.xlu0 %v2051, 78
  %v3252 = vpop.permute.xlu0 %3251
  %vm3253 = vcmask 637952
  %v3254 = vsel %vm3253, %v3242, %v3244
  %v3255 = vsel %vm3253, %v3244, %v3246
  %v3256 = vsel %vm3253, %v3248, %v3250
  %v3257 = vsel %vm3253, %v3250, %v3252
  %v3262 = vmul.f32 %v3224, %v3254
  %v3263 = vmul.f32 %v3228, %v3255
  %v3264 = vmul.f32 %v3232, %v3256
  %v3265 = vmul.f32 %v3236, %v3257
  %v3266 = vadd.f32 %v3158, %v3262
  %v3267 = vadd.f32 %v3159, %v3263
  %v3268 = vadd.f32 %v3160, %v3264
  %v3269 = vadd.f32 %v3161, %v3265
  %s3270 = scalar_lea.vmem %s5, 288
  %v3271 = vld [vmem:[%s3270] ss:$8 sm:$0xf]
  %v3272 = vld [vmem:[%s3270] ss:$8 sm:$0x30]
  %v3273 = vor.u32 %v3271, %v3272
  %v3275 = vlaneseq
  %v3276 = vshrl.u32 %v3275, 7
  %v3277 = vsub.s32 0, %v3276
  %v3278 = vrot.slane %v3273, %v3277
  %v3279 = vlaneseq
  %v3280 = vshrl.u32 %v3279, 7
  %v3281 = vsub.s32 1, %v3280
  %v3282 = vrot.slane %v3273, %v3281
  %v3283 = vlaneseq
  %v3284 = vshrl.u32 %v3283, 7
  %v3285 = vsub.s32 4, %v3284
  %v3286 = vrot.slane %v3273, %v3285
  %v3287 = vlaneseq
  %v3288 = vshrl.u32 %v3287, 7
  %v3289 = vsub.s32 5, %v3288
  %v3290 = vrot.slane %v3273, %v3289
  %3295 = vrot.lane.b32.xlu0 %v2028, 77
  %v3296 = vpop.permute.xlu0 %3295
  %3297 = vrot.lane.b32.xlu0 %v2036, 77
  %v3298 = vpop.permute.xlu0 %3297
  %3299 = vrot.lane.b32.xlu0 %v2035, 77
  %v3300 = vpop.permute.xlu0 %3299
  %3301 = vrot.lane.b32.xlu0 %v2044, 77
  %v3302 = vpop.permute.xlu0 %3301
  %3303 = vrot.lane.b32.xlu0 %v2052, 77
  %v3304 = vpop.permute.xlu0 %3303
  %3305 = vrot.lane.b32.xlu0 %v2051, 77
  %v3306 = vpop.permute.xlu0 %3305
  %vm3307 = vcmask 629760
  %v3308 = vsel %vm3307, %v3296, %v3298
  %v3309 = vsel %vm3307, %v3298, %v3300
  %v3310 = vsel %vm3307, %v3302, %v3304
  %v3311 = vsel %vm3307, %v3304, %v3306
  %v3316 = vmul.f32 %v3278, %v3308
  %v3317 = vmul.f32 %v3282, %v3309
  %v3318 = vmul.f32 %v3286, %v3310
  %v3319 = vmul.f32 %v3290, %v3311
  %v3320 = vadd.f32 %v3212, %v3316
  %v3321 = vadd.f32 %v3213, %v3317
  %v3322 = vadd.f32 %v3214, %v3318
  %v3323 = vadd.f32 %v3215, %v3319
  %v3324 = vadd.f32 %v3320, %v3266
  %v3325 = vadd.f32 %v3321, %v3267
  %v3326 = vadd.f32 %v3322, %v3268
  %v3327 = vadd.f32 %v3323, %v3269
  %v3328 = vadd.f32 %v3324, %v3326
  %v3329 = vadd.f32 %v3325, %v3327
  %s3330 = sld [smem:[#allocation4]]
  %v3331 = vstv %s3330
  %v3332 = vadd.f32 %v3328, %v3331
  %v3333 = vadd.f32 %v3329, %v3331
  %v3334 = vxor.u32 %v3332, 2147483648
  %v3335 = vxor.u32 %v3333, 2147483648
  %v3336 = vmul.f32 %v3334, 1.442695
  %v3337 = vpow.pop %v3336
  %v3338 = vmul.f32 %v3335, 1.442695
  %v3339 = vpow.pop %v3338
  %v3340 = vadd.f32 %v3337, 1.0
  %v3341 = vadd.f32 %v3339, 1.0
  %v3342 = vrcp.pop %v3340
  %v3343 = vmul.f32 1.0, %v3342
  %v3344 = vrcp.pop %v3341
  %v3345 = vmul.f32 1.0, %v3344
  %v3346 = vld [vmem:[#allocation2] sm:$0xff]
  %v3347 = vld [vmem:[#allocation2 + $0x8] sm:$0xff]
  %v3348 = vld [vmem:[#allocation2 + $0x10] sm:$0xff]
  %v3349 = vld [vmem:[#allocation2 + $0x18] sm:$0xff]
  %v3350 = vld [vmem:[#allocation2 + $0x20] sm:$0xff]
  %v3351 = vld [vmem:[#allocation2 + $0x28] sm:$0xff]
  %v3352 = vld [vmem:[#allocation2 + $0x30] sm:$0xff]
  %v3353 = vld [vmem:[#allocation2 + $0x38] sm:$0xff]
  %v3356 = vcombine.low %v3343, %v3345
  %v3358 = vunpack.c.l.s4 1966171168
  %v3359 = vunpack.c.0.s8 %v3358
  %v3360 = vlaneseq
  %v3361 = vshrl.u32 %v3360, 7
  %v3362 = vsub.s32 %v3359, %v3361
  %v3363 = vrot.slane %v3356, %v3362
  %v3364 = vcombine.high %v3363, %v3363
  %v3366 = vunpack.c.l.s4 1966171168
  %v3367 = vunpack.c.0.s8 %v3366
  %v3368 = vlaneseq
  %v3369 = vshrl.u32 %v3368, 7
  %v3370 = vsub.s32 %v3367, %v3369
  %v3371 = vrot.slane %v3363, %v3370
  %v3373 = vunpack.c.l.s4 1966171168
  %v3374 = vunpack.c.0.s8 %v3373
  %v3375 = vlaneseq
  %v3376 = vshrl.u32 %v3375, 7
  %v3377 = vsub.s32 %v3374, %v3376
  %v3378 = vrot.slane %v3364, %v3377
  %v3379 = vlaneseq
  %v3380 = vshrl.u32 %v3379, 7
  %v3381 = vsub.s32 0, %v3380
  %v3382 = vrot.slane %v3371, %v3381
  %v3383 = vlaneseq
  %v3384 = vshrl.u32 %v3383, 7
  %v3385 = vsub.s32 1, %v3384
  %v3386 = vrot.slane %v3371, %v3385
  %v3387 = vlaneseq
  %v3388 = vshrl.u32 %v3387, 7
  %v3389 = vsub.s32 0, %v3388
  %v3390 = vrot.slane %v3378, %v3389
  %v3391 = vlaneseq
  %v3392 = vshrl.u32 %v3391, 7
  %v3393 = vsub.s32 1, %v3392
  %v3394 = vrot.slane %v3378, %v3393
  %v3399 = vmul.f32 %v3346, %v3382
  %v3400 = vmul.f32 %v3347, %v3386
  %v3401 = vmul.f32 %v3348, %v3382
  %v3402 = vmul.f32 %v3349, %v3386
  %v3403 = vmul.f32 %v3350, %v3390
  %v3404 = vmul.f32 %v3351, %v3394
  %v3405 = vmul.f32 %v3352, %v3390
  %v3406 = vmul.f32 %v3353, %v3394
  %3407 = vst [vmem:[%s7] sm:$0xff] %v3399
  %3408 = vst [vmem:[%s7 + $0x8] sm:$0xff] %v3400
  %3409 = vst [vmem:[%s7 + $0x10] sm:$0xff] %v3401
  %3410 = vst [vmem:[%s7 + $0x18] sm:$0xff] %v3402
  %3411 = vst [vmem:[%s7 + $0x20] sm:$0xff] %v3403
  %3412 = vst [vmem:[%s7 + $0x28] sm:$0xff] %v3404
  %3413 = vst [vmem:[%s7 + $0x30] sm:$0xff] %v3405
  %3414 = vst [vmem:[%s7 + $0x38] sm:$0xff] %v3406
  // Predicated region
  $region30: #{_lam_call.1} parent=0 // pred_check
    _
  $region31: #{_lam_call.1} parent=0 // pred_check_branch
    %3416 = sbr.rel (0) target = $region33
  $region32: #{_lam_call.1} parent=0 // pred_region
    _
  $region33: #{_lam_call.1} parent=0 // pred_fallthru
    _
  // Predicated region
  $region34: #{_lam_call.1} parent=0 // pred_check
    _
  $region35: #{_lam_call.1} parent=0 // pred_check_branch
    %3418 = sbr.rel (0) target = $region37
  $region36: #{_lam_call.1} parent=0 // pred_region
    _
  $region37: #{_lam_call.1} parent=0 // pred_fallthru
    _

</llo_original>
